<compile_context>
chip_gen: v7x
topology: tpu7x:2x2x1
jax: 0.10.0
libtpu: 0.0.40
codegen_flags: <defaults>
</compile_context>

<pallas_src>
import functools

import numpy as np

import jax
import jax.numpy as jnp
from jax import lax
from jax.experimental import pallas as pl


# ---------------------------------------------------------------------------
# Fused MRS kernel: both networks, all layers, both directions, all timesteps.
# ---------------------------------------------------------------------------
def _mrs_fused_kernel(*refs, T, B, H, L):
    """refs = (x0, wx_0, wh_0, b_0, ..., wx_{L-1}, wh_{L-1}, b_{L-1}, out).

    x0  : (T*B, Kx0)  stream-packed layer-0 inputs (built in the wrapper)
    wx_l: (Kx_l, 16H) block-structured input->gate weights (gate-major columns)
    wh_l: (4H,   16H) block-diagonal  hidden->gate weights
    b_l : (1,    16H) combined bias (b_ih + b_hh), gate-major columns
    out : (T, B, 4H)  time-aligned [opts - opts_sim (2H) | opts_sim (2H)]

    Stream lane order (width H each): [netA fwd | netA rev | netB fwd | netB rev].
    Gate column order (width 4H each): [i | f | g | o]  (PyTorch gate order).
    """
    x0_ref = refs[0]
    w_refs = refs[1:1 + 3 * L]
    out_ref = refs[1 + 3 * L]
    SH = 4 * H                       # packed hidden width: 4 streams x H = 128

    def run_layer(gx, wh_ref):
        # gx: (T*B, 4*SH) precomputed x-projections (+bias) for every timestep.
        h = jnp.zeros((B, SH), jnp.float32)
        c = jnp.zeros((B, SH), jnp.float32)
        outs = []
        for t in range(T):                       # static unrolled recurrence
            gates = gx[t * B:(t + 1) * B, :]
            if t > 0:                            # h == 0 at t == 0, skip the dot
                gates = gates + jnp.dot(h, wh_ref[...],
                                        preferred_element_type=jnp.float32)
            i_g = jax.nn.sigmoid(gates[:, 0 * SH:1 * SH])
            f_g = jax.nn.sigmoid(gates[:, 1 * SH:2 * SH])
            g_g = jnp.tanh(gates[:, 2 * SH:3 * SH])
            o_g = jax.nn.sigmoid(gates[:, 3 * SH:4 * SH])
            c = f_g * c + i_g * g_g
            h = o_g * jnp.tanh(c)                # (B, SH) — 128-lane dense
            outs.append(h)
        # outs[u] = [hAf(u) | hAr(T-1-u) | hBf(u) | hBr(T-1-u)]   ("raw" order)
        return outs

    raw = None
    for l in range(L):
        wx_ref, wh_ref, b_ref = w_refs[3 * l:3 * l + 3]
        if l == 0:
            x = x0_ref[...]                                        # (T*B, Kx0)
        else:
            # Layer input at step t is [raw[t] | raw[T-1-t]]; the time/direction
            # realignment is encoded in the ROW placement of wx_l.
            x = jnp.concatenate(
                [jnp.concatenate([raw[t], raw[T - 1 - t]], axis=-1)
                 for t in range(T)], axis=0)                       # (T*B, 2*SH)
        # One big MXU pass for every timestep's x-projection, bias folded in.
        gx = (jnp.dot(x, wx_ref[...], preferred_element_type=jnp.float32)
              + b_ref[...])
        raw = run_layer(gx, wh_ref)

    # Time-align reverse-direction streams (lane-mask select, no lane movement)
    # and emit [opts - opts_sim | opts_sim] as a lane-dense (B, 4H) row per step.
    lane = lax.broadcasted_iota(jnp.int32, (1, SH), 1)
    fwd_mask = (lane < H) | ((lane >= 2 * H) & (lane < 3 * H))     # streams 0, 2
    for t in range(T):
        aligned = jnp.where(fwd_mask, raw[t], raw[T - 1 - t])      # (B, SH)
        opts = aligned[:, 0:2 * H]          # [hAf(t) | hAr(t)]
        sim = aligned[:, 2 * H:4 * H]       # [hBf(t) | hBr(t)]
        out_ref[t] = jnp.concatenate([opts - sim, sim], axis=-1)


# ---------------------------------------------------------------------------
# Wrapper: input packing, single pallas_call, trivial output unpack.
# ---------------------------------------------------------------------------
def _build_x0(stock, market):
    """Pack layer-0 inputs for all 4 streams: (T*B, Kx0).

    Lane layout per row: [stock(t) | stock(T-1-t) | cat(t) | cat(T-1-t) | pad]
    (cat = [stock, market]); padded up to a multiple of 128 lanes.
    """
    B, T, D = stock.shape
    sm = jnp.concatenate([stock, market], axis=-1)                 # (B, T, 2D)
    st = jnp.transpose(stock, (1, 0, 2)).astype(jnp.float32)       # (T, B, D)
    smt = jnp.transpose(sm, (1, 0, 2)).astype(jnp.float32)         # (T, B, 2D)
    k_used = 2 * D + 2 * (2 * D)
    k_pad = (-k_used) % 128
    parts = [st, st[::-1], smt, smt[::-1]]
    if k_pad:
        parts.append(jnp.zeros((T, B, k_pad), jnp.float32))
    x0 = jnp.concatenate(parts, axis=-1)                           # (T, B, Kx0)
    return x0.reshape(T * B, k_used + k_pad)


def mrs_forward(stock, market, packed, *, hidden):
    """stock, market: (B, T, ipt_dim) batch-first, like the PyTorch module."""
    B, T, _ = stock.shape
    L = len(packed) // 3
    x0 = _build_x0(stock, market)
    kern = functools.partial(_mrs_fused_kernel, T=T, B=B, H=hidden, L=L)
    out = pl.pallas_call(
        kern,
        out_shape=jax.ShapeDtypeStruct((T, B, 4 * hidden), jnp.float32),
    )(x0, *packed)
    out = jnp.transpose(out, (1, 0, 2))                            # (B, T, 4H)
    diff = out[..., :2 * hidden]
    opts_sim = out[..., 2 * hidden:]
    return diff, opts_sim


# ---------------------------------------------------------------------------
# Parameter construction (PyTorch nn.LSTM layout) + stream/gate packing.
# ---------------------------------------------------------------------------
def init_lstm_raw(key, input_size, hidden, num_layers):
    layers = []
    for layer in range(num_layers):
        d_in = input_size if layer == 0 else 2 * hidden
        dirs = []
        for _direction in range(2):
            key, k1, k2, k3, k4 = jax.random.split(key, 5)
            w_ih = 0.1 * jax.random.normal(k1, (4 * hidden, d_in), jnp.float32)
            w_hh = 0.1 * jax.random.normal(k2, (4 * hidden, hidden), jnp.float32)
            b_ih = 0.1 * jax.random.normal(k3, (4 * hidden,), jnp.float32)
            b_hh = 0.1 * jax.random.normal(k4, (4 * hidden,), jnp.float32)
            dirs.append((w_ih, w_hh, b_ih, b_hh))
        layers.append(dirs)
    return key, layers


def pack_mrs_params(rawA, rawB, ipt_dim, hidden):
    """Pack both networks' params into per-layer (wx, wh, b) block matrices."""
    H = hidden
    S = 4                       # streams: (A,fwd), (A,rev), (B,fwd), (B,rev)
    SH = S * H
    G = 4 * SH                  # gate columns: [i|f|g|o] x 4 streams x H
    L = len(rawA)
    d_a, d_b = ipt_dim, 2 * ipt_dim
    kx0_used = 2 * d_a + 2 * d_b
    kx0 = kx0_used + ((-kx0_used) % 128)
    # Layer-0 x row offsets per stream (matches _build_x0 lane layout).
    x_off0 = [0, d_a, 2 * d_a, 2 * d_a + d_b]
    # Layers >= 1: (fwd-feature rows, rev-feature rows) per stream in the
    # [raw[t] | raw[T-1-t]] input layout (widths H each).
    x_off_deep = [(0, 5 * H), (4 * H, H), (2 * H, 7 * H), (6 * H, 3 * H)]
    streams = [(rawA, 0), (rawA, 1), (rawB, 0), (rawB, 1)]

    def place(big, row0, s, wt):
        # wt: (k, 4H) with PyTorch gate columns i|f|g|o for stream s.
        for gi in range(4):
            big[row0:row0 + wt.shape[0],
                gi * SH + s * H: gi * SH + (s + 1) * H] = wt[:, gi * H:(gi + 1) * H]

    packed = []
    for l in range(L):
        kx = kx0 if l == 0 else 2 * SH
        wx = np.zeros((kx, G), np.float32)
        wh = np.zeros((SH, G), np.float32)
        b = np.zeros((1, G), np.float32)
        for s, (net, d) in enumerate(streams):
            w_ih, w_hh, b_ih, b_hh = (np.asarray(a) for a in net[l][d])
            if l == 0:
                place(wx, x_off0[s], s, w_ih.T)
            else:
                wt = w_ih.T                      # (2H, 4H): rows 0:H fwd, H:2H rev
                fwd_row, rev_row = x_off_deep[s]
                place(wx, fwd_row, s, wt[:H])
                place(wx, rev_row, s, wt[H:])
            place(wh, s * H, s, w_hh.T)
            bb = b_ih + b_hh
            for gi in range(4):
                b[0, gi * SH + s * H: gi * SH + (s + 1) * H] = bb[gi * H:(gi + 1) * H]
        packed.extend([jnp.asarray(wx), jnp.asarray(wh), jnp.asarray(b)])
    return tuple(packed)


# ---------------------------------------------------------------------------
# Pure-JAX reference mirroring PyTorch nn.LSTM / MRS.forward.
# ---------------------------------------------------------------------------
def lstm_ref(x_btd, raw_layers, hidden):
    B, T, _ = x_btd.shape
    x = x_btd.astype(jnp.float32)
    for dirs in raw_layers:
        outs = []
        for direction, (w_ih, w_hh, b_ih, b_hh) in enumerate(dirs):
            h = jnp.zeros((B, hidden), jnp.float32)
            c = jnp.zeros((B, hidden), jnp.float32)
            order = range(T) if direction == 0 else range(T - 1, -1, -1)
            ys = [None] * T
            for t in order:
                x_t = x[:, t, :]
                gates = x_t @ w_ih.T + h @ w_hh.T + b_ih + b_hh
                i = jax.nn.sigmoid(gates[:, 0:hidden])
                f = jax.nn.sigmoid(gates[:, hidden:2 * hidden])
                g = jnp.tanh(gates[:, 2 * hidden:3 * hidden])
                o = jax.nn.sigmoid(gates[:, 3 * hidden:4 * hidden])
                c = f * c + i * g
                h = o * jnp.tanh(c)
                ys[t] = h
            outs.append(jnp.stack(ys, axis=1))           # (B, T, H)
        x = jnp.concatenate(outs, axis=-1)               # (B, T, 2H)
    return x


def mrs_ref(stock, market, rawA, rawB, hidden):
    opts = lstm_ref(stock, rawA, hidden)
    opts_sim = lstm_ref(jnp.concatenate([stock, market], axis=-1), rawB, hidden)
    return opts - opts_sim, opts_sim


# ---------------------------------------------------------------------------
if __name__ == "__main__":
    batch, seq = 2, 8
    ipt_dim = 8
    hid_dim = 32
    lr_num = 2

    key = jax.random.PRNGKey(0)
    key, rawA = init_lstm_raw(key, ipt_dim, hid_dim, lr_num)
    key, rawB = init_lstm_raw(key, 2 * ipt_dim, hid_dim, lr_num)
    packed = pack_mrs_params(rawA, rawB, ipt_dim, hid_dim)

    key, ks, km = jax.random.split(key, 3)
    stock = jax.random.normal(ks, (batch, seq, ipt_dim), jnp.float32)
    market = jax.random.normal(km, (batch, seq, ipt_dim), jnp.float32)

    fwd = jax.jit(functools.partial(mrs_forward, hidden=hid_dim))
    diff, opts_sim = fwd(stock, market, packed)
    jax.block_until_ready((diff, opts_sim))

    diff_ref, opts_sim_ref = mrs_ref(stock, market, rawA, rawB, hid_dim)
    assert diff.shape == (batch, seq, 2 * hid_dim)
    assert opts_sim.shape == (batch, seq, 2 * hid_dim)
    assert jnp.allclose(diff, diff_ref, atol=1e-4, rtol=1e-4), "diff mismatch"
    assert jnp.allclose(opts_sim, opts_sim_ref, atol=1e-4, rtol=1e-4), \
        "opts_sim mismatch"

    print("KERNEL_OK")
</pallas_src>

<mosaic_0001>
module attributes {stable_mosaic.version = 11 : i64} {
  func.func @_mrs_fused_kernel(%arg0: memref<16x128xf32, #tpu.memory_space<vmem>>, %arg1: memref<128x512xf32, #tpu.memory_space<vmem>>, %arg2: memref<128x512xf32, #tpu.memory_space<vmem>>, %arg3: memref<1x512xf32, #tpu.memory_space<vmem>>, %arg4: memref<256x512xf32, #tpu.memory_space<vmem>>, %arg5: memref<128x512xf32, #tpu.memory_space<vmem>>, %arg6: memref<1x512xf32, #tpu.memory_space<vmem>>, %arg7: memref<8x2x128xf32, #tpu.memory_space<vmem>>) attributes {dimension_semantics = [], scalar_prefetch = 0 : i64, scratch_operands = 0 : i64, tpu.core_type = #tpu.core_type<tc>} {
    %c0 = arith.constant 0 : index
    %c0_0 = arith.constant 0 : index
    %0 = vector.load %arg0[%c0, %c0_0] : memref<16x128xf32, #tpu.memory_space<vmem>>, vector<16x128xf32>
    %c0_1 = arith.constant 0 : index
    %c0_2 = arith.constant 0 : index
    %1 = vector.load %arg1[%c0_1, %c0_2] : memref<128x512xf32, #tpu.memory_space<vmem>>, vector<128x512xf32>
    %cst = arith.constant dense<0.000000e+00> : vector<16x512xf32>
    %2 = tpu.matmul %0, %1, %cst {dimension_numbers = #tpu.dot_dimension_numbers<[1], [0], [0], [1], [0, 0, 1, 1], [], []>} : vector<16x128xf32>, vector<128x512xf32>, vector<16x512xf32> -> vector<16x512xf32>
    %c0_3 = arith.constant 0 : index
    %c0_4 = arith.constant 0 : index
    %3 = vector.load %arg3[%c0_3, %c0_4] : memref<1x512xf32, #tpu.memory_space<vmem>>, vector<1x512xf32>
    %4 = vector.broadcast %3 : vector<1x512xf32> to vector<16x512xf32>
    %5 = arith.addf %2, %4 : vector<16x512xf32>
    %cst_5 = arith.constant 0.000000e+00 : f32
    %6 = vector.broadcast %cst_5 : f32 to vector<2x128xf32>
    %7 = vector.extract_strided_slice %5 {offsets = [0, 0], sizes = [2, 512], strides = [1, 1]} : vector<16x512xf32> to vector<2x512xf32>
    %8 = vector.extract_strided_slice %7 {offsets = [0, 0], sizes = [2, 128], strides = [1, 1]} : vector<2x512xf32> to vector<2x128xf32>
    %9 = arith.negf %8 : vector<2x128xf32>
    %10 = math.exp %9 : vector<2x128xf32>
    %cst_6 = arith.constant 1.000000e+00 : f32
    %11 = vector.broadcast %cst_6 : f32 to vector<2x128xf32>
    %12 = arith.addf %11, %10 : vector<2x128xf32>
    %13 = arith.divf %11, %12 : vector<2x128xf32>
    %14 = vector.extract_strided_slice %7 {offsets = [0, 128], sizes = [2, 128], strides = [1, 1]} : vector<2x512xf32> to vector<2x128xf32>
    %15 = arith.negf %14 : vector<2x128xf32>
    %16 = math.exp %15 : vector<2x128xf32>
    %cst_7 = arith.constant 1.000000e+00 : f32
    %17 = vector.broadcast %cst_7 : f32 to vector<2x128xf32>
    %18 = arith.addf %17, %16 : vector<2x128xf32>
    %19 = arith.divf %17, %18 : vector<2x128xf32>
    %20 = vector.extract_strided_slice %7 {offsets = [0, 256], sizes = [2, 128], strides = [1, 1]} : vector<2x512xf32> to vector<2x128xf32>
    %21 = math.tanh %20 : vector<2x128xf32>
    %22 = vector.extract_strided_slice %7 {offsets = [0, 384], sizes = [2, 128], strides = [1, 1]} : vector<2x512xf32> to vector<2x128xf32>
    %23 = arith.negf %22 : vector<2x128xf32>
    %24 = math.exp %23 : vector<2x128xf32>
    %cst_8 = arith.constant 1.000000e+00 : f32
    %25 = vector.broadcast %cst_8 : f32 to vector<2x128xf32>
    %26 = arith.addf %25, %24 : vector<2x128xf32>
    %27 = arith.divf %25, %26 : vector<2x128xf32>
    %28 = arith.mulf %19, %6 : vector<2x128xf32>
    %29 = arith.mulf %13, %21 : vector<2x128xf32>
    %30 = arith.addf %28, %29 : vector<2x128xf32>
    %31 = math.tanh %30 : vector<2x128xf32>
    %32 = arith.mulf %27, %31 : vector<2x128xf32>
    %33 = vector.extract_strided_slice %5 {offsets = [2, 0], sizes = [2, 512], strides = [1, 1]} : vector<16x512xf32> to vector<2x512xf32>
    %c0_9 = arith.constant 0 : index
    %c0_10 = arith.constant 0 : index
    %34 = vector.load %arg2[%c0_9, %c0_10] : memref<128x512xf32, #tpu.memory_space<vmem>>, vector<128x512xf32>
    %cst_11 = arith.constant dense<0.000000e+00> : vector<2x512xf32>
    %35 = tpu.matmul %32, %34, %cst_11 {dimension_numbers = #tpu.dot_dimension_numbers<[1], [0], [0], [1], [0, 0, 1, 1], [], []>} : vector<2x128xf32>, vector<128x512xf32>, vector<2x512xf32> -> vector<2x512xf32>
    %36 = arith.addf %33, %35 : vector<2x512xf32>
    %37 = vector.extract_strided_slice %36 {offsets = [0, 0], sizes = [2, 128], strides = [1, 1]} : vector<2x512xf32> to vector<2x128xf32>
    %38 = arith.negf %37 : vector<2x128xf32>
    %39 = math.exp %38 : vector<2x128xf32>
    %cst_12 = arith.constant 1.000000e+00 : f32
    %40 = vector.broadcast %cst_12 : f32 to vector<2x128xf32>
    %41 = arith.addf %40, %39 : vector<2x128xf32>
    %42 = arith.divf %40, %41 : vector<2x128xf32>
    %43 = vector.extract_strided_slice %36 {offsets = [0, 128], sizes = [2, 128], strides = [1, 1]} : vector<2x512xf32> to vector<2x128xf32>
    %44 = arith.negf %43 : vector<2x128xf32>
    %45 = math.exp %44 : vector<2x128xf32>
    %cst_13 = arith.constant 1.000000e+00 : f32
    %46 = vector.broadcast %cst_13 : f32 to vector<2x128xf32>
    %47 = arith.addf %46, %45 : vector<2x128xf32>
    %48 = arith.divf %46, %47 : vector<2x128xf32>
    %49 = vector.extract_strided_slice %36 {offsets = [0, 256], sizes = [2, 128], strides = [1, 1]} : vector<2x512xf32> to vector<2x128xf32>
    %50 = math.tanh %49 : vector<2x128xf32>
    %51 = vector.extract_strided_slice %36 {offsets = [0, 384], sizes = [2, 128], strides = [1, 1]} : vector<2x512xf32> to vector<2x128xf32>
    %52 = arith.negf %51 : vector<2x128xf32>
    %53 = math.exp %52 : vector<2x128xf32>
    %cst_14 = arith.constant 1.000000e+00 : f32
    %54 = vector.broadcast %cst_14 : f32 to vector<2x128xf32>
    %55 = arith.addf %54, %53 : vector<2x128xf32>
    %56 = arith.divf %54, %55 : vector<2x128xf32>
    %57 = arith.mulf %48, %30 : vector<2x128xf32>
    %58 = arith.mulf %42, %50 : vector<2x128xf32>
    %59 = arith.addf %57, %58 : vector<2x128xf32>
    %60 = math.tanh %59 : vector<2x128xf32>
    %61 = arith.mulf %56, %60 : vector<2x128xf32>
    %62 = vector.extract_strided_slice %5 {offsets = [4, 0], sizes = [2, 512], strides = [1, 1]} : vector<16x512xf32> to vector<2x512xf32>
    %c0_15 = arith.constant 0 : index
    %c0_16 = arith.constant 0 : index
    %63 = vector.load %arg2[%c0_15, %c0_16] : memref<128x512xf32, #tpu.memory_space<vmem>>, vector<128x512xf32>
    %cst_17 = arith.constant dense<0.000000e+00> : vector<2x512xf32>
    %64 = tpu.matmul %61, %63, %cst_17 {dimension_numbers = #tpu.dot_dimension_numbers<[1], [0], [0], [1], [0, 0, 1, 1], [], []>} : vector<2x128xf32>, vector<128x512xf32>, vector<2x512xf32> -> vector<2x512xf32>
    %65 = arith.addf %62, %64 : vector<2x512xf32>
    %66 = vector.extract_strided_slice %65 {offsets = [0, 0], sizes = [2, 128], strides = [1, 1]} : vector<2x512xf32> to vector<2x128xf32>
    %67 = arith.negf %66 : vector<2x128xf32>
    %68 = math.exp %67 : vector<2x128xf32>
    %cst_18 = arith.constant 1.000000e+00 : f32
    %69 = vector.broadcast %cst_18 : f32 to vector<2x128xf32>
    %70 = arith.addf %69, %68 : vector<2x128xf32>
    %71 = arith.divf %69, %70 : vector<2x128xf32>
    %72 = vector.extract_strided_slice %65 {offsets = [0, 128], sizes = [2, 128], strides = [1, 1]} : vector<2x512xf32> to vector<2x128xf32>
    %73 = arith.negf %72 : vector<2x128xf32>
    %74 = math.exp %73 : vector<2x128xf32>
    %cst_19 = arith.constant 1.000000e+00 : f32
    %75 = vector.broadcast %cst_19 : f32 to vector<2x128xf32>
    %76 = arith.addf %75, %74 : vector<2x128xf32>
    %77 = arith.divf %75, %76 : vector<2x128xf32>
    %78 = vector.extract_strided_slice %65 {offsets = [0, 256], sizes = [2, 128], strides = [1, 1]} : vector<2x512xf32> to vector<2x128xf32>
    %79 = math.tanh %78 : vector<2x128xf32>
    %80 = vector.extract_strided_slice %65 {offsets = [0, 384], sizes = [2, 128], strides = [1, 1]} : vector<2x512xf32> to vector<2x128xf32>
    %81 = arith.negf %80 : vector<2x128xf32>
    %82 = math.exp %81 : vector<2x128xf32>
    %cst_20 = arith.constant 1.000000e+00 : f32
    %83 = vector.broadcast %cst_20 : f32 to vector<2x128xf32>
    %84 = arith.addf %83, %82 : vector<2x128xf32>
    %85 = arith.divf %83, %84 : vector<2x128xf32>
    %86 = arith.mulf %77, %59 : vector<2x128xf32>
    %87 = arith.mulf %71, %79 : vector<2x128xf32>
    %88 = arith.addf %86, %87 : vector<2x128xf32>
    %89 = math.tanh %88 : vector<2x128xf32>
    %90 = arith.mulf %85, %89 : vector<2x128xf32>
    %91 = vector.extract_strided_slice %5 {offsets = [6, 0], sizes = [2, 512], strides = [1, 1]} : vector<16x512xf32> to vector<2x512xf32>
    %c0_21 = arith.constant 0 : index
    %c0_22 = arith.constant 0 : index
    %92 = vector.load %arg2[%c0_21, %c0_22] : memref<128x512xf32, #tpu.memory_space<vmem>>, vector<128x512xf32>
    %cst_23 = arith.constant dense<0.000000e+00> : vector<2x512xf32>
    %93 = tpu.matmul %90, %92, %cst_23 {dimension_numbers = #tpu.dot_dimension_numbers<[1], [0], [0], [1], [0, 0, 1, 1], [], []>} : vector<2x128xf32>, vector<128x512xf32>, vector<2x512xf32> -> vector<2x512xf32>
    %94 = arith.addf %91, %93 : vector<2x512xf32>
    %95 = vector.extract_strided_slice %94 {offsets = [0, 0], sizes = [2, 128], strides = [1, 1]} : vector<2x512xf32> to vector<2x128xf32>
    %96 = arith.negf %95 : vector<2x128xf32>
    %97 = math.exp %96 : vector<2x128xf32>
    %cst_24 = arith.constant 1.000000e+00 : f32
    %98 = vector.broadcast %cst_24 : f32 to vector<2x128xf32>
    %99 = arith.addf %98, %97 : vector<2x128xf32>
    %100 = arith.divf %98, %99 : vector<2x128xf32>
    %101 = vector.extract_strided_slice %94 {offsets = [0, 128], sizes = [2, 128], strides = [1, 1]} : vector<2x512xf32> to vector<2x128xf32>
    %102 = arith.negf %101 : vector<2x128xf32>
    %103 = math.exp %102 : vector<2x128xf32>
    %cst_25 = arith.constant 1.000000e+00 : f32
    %104 = vector.broadcast %cst_25 : f32 to vector<2x128xf32>
    %105 = arith.addf %104, %103 : vector<2x128xf32>
    %106 = arith.divf %104, %105 : vector<2x128xf32>
    %107 = vector.extract_strided_slice %94 {offsets = [0, 256], sizes = [2, 128], strides = [1, 1]} : vector<2x512xf32> to vector<2x128xf32>
    %108 = math.tanh %107 : vector<2x128xf32>
    %109 = vector.extract_strided_slice %94 {offsets = [0, 384], sizes = [2, 128], strides = [1, 1]} : vector<2x512xf32> to vector<2x128xf32>
    %110 = arith.negf %109 : vector<2x128xf32>
    %111 = math.exp %110 : vector<2x128xf32>
    %cst_26 = arith.constant 1.000000e+00 : f32
    %112 = vector.broadcast %cst_26 : f32 to vector<2x128xf32>
    %113 = arith.addf %112, %111 : vector<2x128xf32>
    %114 = arith.divf %112, %113 : vector<2x128xf32>
    %115 = arith.mulf %106, %88 : vector<2x128xf32>
    %116 = arith.mulf %100, %108 : vector<2x128xf32>
    %117 = arith.addf %115, %116 : vector<2x128xf32>
    %118 = math.tanh %117 : vector<2x128xf32>
    %119 = arith.mulf %114, %118 : vector<2x128xf32>
    %120 = vector.extract_strided_slice %5 {offsets = [8, 0], sizes = [2, 512], strides = [1, 1]} : vector<16x512xf32> to vector<2x512xf32>
    %c0_27 = arith.constant 0 : index
    %c0_28 = arith.constant 0 : index
    %121 = vector.load %arg2[%c0_27, %c0_28] : memref<128x512xf32, #tpu.memory_space<vmem>>, vector<128x512xf32>
    %cst_29 = arith.constant dense<0.000000e+00> : vector<2x512xf32>
    %122 = tpu.matmul %119, %121, %cst_29 {dimension_numbers = #tpu.dot_dimension_numbers<[1], [0], [0], [1], [0, 0, 1, 1], [], []>} : vector<2x128xf32>, vector<128x512xf32>, vector<2x512xf32> -> vector<2x512xf32>
    %123 = arith.addf %120, %122 : vector<2x512xf32>
    %124 = vector.extract_strided_slice %123 {offsets = [0, 0], sizes = [2, 128], strides = [1, 1]} : vector<2x512xf32> to vector<2x128xf32>
    %125 = arith.negf %124 : vector<2x128xf32>
    %126 = math.exp %125 : vector<2x128xf32>
    %cst_30 = arith.constant 1.000000e+00 : f32
    %127 = vector.broadcast %cst_30 : f32 to vector<2x128xf32>
    %128 = arith.addf %127, %126 : vector<2x128xf32>
    %129 = arith.divf %127, %128 : vector<2x128xf32>
    %130 = vector.extract_strided_slice %123 {offsets = [0, 128], sizes = [2, 128], strides = [1, 1]} : vector<2x512xf32> to vector<2x128xf32>
    %131 = arith.negf %130 : vector<2x128xf32>
    %132 = math.exp %131 : vector<2x128xf32>
    %cst_31 = arith.constant 1.000000e+00 : f32
    %133 = vector.broadcast %cst_31 : f32 to vector<2x128xf32>
    %134 = arith.addf %133, %132 : vector<2x128xf32>
    %135 = arith.divf %133, %134 : vector<2x128xf32>
    %136 = vector.extract_strided_slice %123 {offsets = [0, 256], sizes = [2, 128], strides = [1, 1]} : vector<2x512xf32> to vector<2x128xf32>
    %137 = math.tanh %136 : vector<2x128xf32>
    %138 = vector.extract_strided_slice %123 {offsets = [0, 384], sizes = [2, 128], strides = [1, 1]} : vector<2x512xf32> to vector<2x128xf32>
    %139 = arith.negf %138 : vector<2x128xf32>
    %140 = math.exp %139 : vector<2x128xf32>
    %cst_32 = arith.constant 1.000000e+00 : f32
    %141 = vector.broadcast %cst_32 : f32 to vector<2x128xf32>
    %142 = arith.addf %141, %140 : vector<2x128xf32>
    %143 = arith.divf %141, %142 : vector<2x128xf32>
    %144 = arith.mulf %135, %117 : vector<2x128xf32>
    %145 = arith.mulf %129, %137 : vector<2x128xf32>
    %146 = arith.addf %144, %145 : vector<2x128xf32>
    %147 = math.tanh %146 : vector<2x128xf32>
    %148 = arith.mulf %143, %147 : vector<2x128xf32>
    %149 = vector.extract_strided_slice %5 {offsets = [10, 0], sizes = [2, 512], strides = [1, 1]} : vector<16x512xf32> to vector<2x512xf32>
    %c0_33 = arith.constant 0 : index
    %c0_34 = arith.constant 0 : index
    %150 = vector.load %arg2[%c0_33, %c0_34] : memref<128x512xf32, #tpu.memory_space<vmem>>, vector<128x512xf32>
    %cst_35 = arith.constant dense<0.000000e+00> : vector<2x512xf32>
    %151 = tpu.matmul %148, %150, %cst_35 {dimension_numbers = #tpu.dot_dimension_numbers<[1], [0], [0], [1], [0, 0, 1, 1], [], []>} : vector<2x128xf32>, vector<128x512xf32>, vector<2x512xf32> -> vector<2x512xf32>
    %152 = arith.addf %149, %151 : vector<2x512xf32>
    %153 = vector.extract_strided_slice %152 {offsets = [0, 0], sizes = [2, 128], strides = [1, 1]} : vector<2x512xf32> to vector<2x128xf32>
    %154 = arith.negf %153 : vector<2x128xf32>
    %155 = math.exp %154 : vector<2x128xf32>
    %cst_36 = arith.constant 1.000000e+00 : f32
    %156 = vector.broadcast %cst_36 : f32 to vector<2x128xf32>
    %157 = arith.addf %156, %155 : vector<2x128xf32>
    %158 = arith.divf %156, %157 : vector<2x128xf32>
    %159 = vector.extract_strided_slice %152 {offsets = [0, 128], sizes = [2, 128], strides = [1, 1]} : vector<2x512xf32> to vector<2x128xf32>
    %160 = arith.negf %159 : vector<2x128xf32>
    %161 = math.exp %160 : vector<2x128xf32>
    %cst_37 = arith.constant 1.000000e+00 : f32
    %162 = vector.broadcast %cst_37 : f32 to vector<2x128xf32>
    %163 = arith.addf %162, %161 : vector<2x128xf32>
    %164 = arith.divf %162, %163 : vector<2x128xf32>
    %165 = vector.extract_strided_slice %152 {offsets = [0, 256], sizes = [2, 128], strides = [1, 1]} : vector<2x512xf32> to vector<2x128xf32>
    %166 = math.tanh %165 : vector<2x128xf32>
    %167 = vector.extract_strided_slice %152 {offsets = [0, 384], sizes = [2, 128], strides = [1, 1]} : vector<2x512xf32> to vector<2x128xf32>
    %168 = arith.negf %167 : vector<2x128xf32>
    %169 = math.exp %168 : vector<2x128xf32>
    %cst_38 = arith.constant 1.000000e+00 : f32
    %170 = vector.broadcast %cst_38 : f32 to vector<2x128xf32>
    %171 = arith.addf %170, %169 : vector<2x128xf32>
    %172 = arith.divf %170, %171 : vector<2x128xf32>
    %173 = arith.mulf %164, %146 : vector<2x128xf32>
    %174 = arith.mulf %158, %166 : vector<2x128xf32>
    %175 = arith.addf %173, %174 : vector<2x128xf32>
    %176 = math.tanh %175 : vector<2x128xf32>
    %177 = arith.mulf %172, %176 : vector<2x128xf32>
    %178 = vector.extract_strided_slice %5 {offsets = [12, 0], sizes = [2, 512], strides = [1, 1]} : vector<16x512xf32> to vector<2x512xf32>
    %c0_39 = arith.constant 0 : index
    %c0_40 = arith.constant 0 : index
    %179 = vector.load %arg2[%c0_39, %c0_40] : memref<128x512xf32, #tpu.memory_space<vmem>>, vector<128x512xf32>
    %cst_41 = arith.constant dense<0.000000e+00> : vector<2x512xf32>
    %180 = tpu.matmul %177, %179, %cst_41 {dimension_numbers = #tpu.dot_dimension_numbers<[1], [0], [0], [1], [0, 0, 1, 1], [], []>} : vector<2x128xf32>, vector<128x512xf32>, vector<2x512xf32> -> vector<2x512xf32>
    %181 = arith.addf %178, %180 : vector<2x512xf32>
    %182 = vector.extract_strided_slice %181 {offsets = [0, 0], sizes = [2, 128], strides = [1, 1]} : vector<2x512xf32> to vector<2x128xf32>
    %183 = arith.negf %182 : vector<2x128xf32>
    %184 = math.exp %183 : vector<2x128xf32>
    %cst_42 = arith.constant 1.000000e+00 : f32
    %185 = vector.broadcast %cst_42 : f32 to vector<2x128xf32>
    %186 = arith.addf %185, %184 : vector<2x128xf32>
    %187 = arith.divf %185, %186 : vector<2x128xf32>
    %188 = vector.extract_strided_slice %181 {offsets = [0, 128], sizes = [2, 128], strides = [1, 1]} : vector<2x512xf32> to vector<2x128xf32>
    %189 = arith.negf %188 : vector<2x128xf32>
    %190 = math.exp %189 : vector<2x128xf32>
    %cst_43 = arith.constant 1.000000e+00 : f32
    %191 = vector.broadcast %cst_43 : f32 to vector<2x128xf32>
    %192 = arith.addf %191, %190 : vector<2x128xf32>
    %193 = arith.divf %191, %192 : vector<2x128xf32>
    %194 = vector.extract_strided_slice %181 {offsets = [0, 256], sizes = [2, 128], strides = [1, 1]} : vector<2x512xf32> to vector<2x128xf32>
    %195 = math.tanh %194 : vector<2x128xf32>
    %196 = vector.extract_strided_slice %181 {offsets = [0, 384], sizes = [2, 128], strides = [1, 1]} : vector<2x512xf32> to vector<2x128xf32>
    %197 = arith.negf %196 : vector<2x128xf32>
    %198 = math.exp %197 : vector<2x128xf32>
    %cst_44 = arith.constant 1.000000e+00 : f32
    %199 = vector.broadcast %cst_44 : f32 to vector<2x128xf32>
    %200 = arith.addf %199, %198 : vector<2x128xf32>
    %201 = arith.divf %199, %200 : vector<2x128xf32>
    %202 = arith.mulf %193, %175 : vector<2x128xf32>
    %203 = arith.mulf %187, %195 : vector<2x128xf32>
    %204 = arith.addf %202, %203 : vector<2x128xf32>
    %205 = math.tanh %204 : vector<2x128xf32>
    %206 = arith.mulf %201, %205 : vector<2x128xf32>
    %207 = vector.extract_strided_slice %5 {offsets = [14, 0], sizes = [2, 512], strides = [1, 1]} : vector<16x512xf32> to vector<2x512xf32>
    %c0_45 = arith.constant 0 : index
    %c0_46 = arith.constant 0 : index
    %208 = vector.load %arg2[%c0_45, %c0_46] : memref<128x512xf32, #tpu.memory_space<vmem>>, vector<128x512xf32>
    %cst_47 = arith.constant dense<0.000000e+00> : vector<2x512xf32>
    %209 = tpu.matmul %206, %208, %cst_47 {dimension_numbers = #tpu.dot_dimension_numbers<[1], [0], [0], [1], [0, 0, 1, 1], [], []>} : vector<2x128xf32>, vector<128x512xf32>, vector<2x512xf32> -> vector<2x512xf32>
    %210 = arith.addf %207, %209 : vector<2x512xf32>
    %211 = vector.extract_strided_slice %210 {offsets = [0, 0], sizes = [2, 128], strides = [1, 1]} : vector<2x512xf32> to vector<2x128xf32>
    %212 = arith.negf %211 : vector<2x128xf32>
    %213 = math.exp %212 : vector<2x128xf32>
    %cst_48 = arith.constant 1.000000e+00 : f32
    %214 = vector.broadcast %cst_48 : f32 to vector<2x128xf32>
    %215 = arith.addf %214, %213 : vector<2x128xf32>
    %216 = arith.divf %214, %215 : vector<2x128xf32>
    %217 = vector.extract_strided_slice %210 {offsets = [0, 128], sizes = [2, 128], strides = [1, 1]} : vector<2x512xf32> to vector<2x128xf32>
    %218 = arith.negf %217 : vector<2x128xf32>
    %219 = math.exp %218 : vector<2x128xf32>
    %cst_49 = arith.constant 1.000000e+00 : f32
    %220 = vector.broadcast %cst_49 : f32 to vector<2x128xf32>
    %221 = arith.addf %220, %219 : vector<2x128xf32>
    %222 = arith.divf %220, %221 : vector<2x128xf32>
    %223 = vector.extract_strided_slice %210 {offsets = [0, 256], sizes = [2, 128], strides = [1, 1]} : vector<2x512xf32> to vector<2x128xf32>
    %224 = math.tanh %223 : vector<2x128xf32>
    %225 = vector.extract_strided_slice %210 {offsets = [0, 384], sizes = [2, 128], strides = [1, 1]} : vector<2x512xf32> to vector<2x128xf32>
    %226 = arith.negf %225 : vector<2x128xf32>
    %227 = math.exp %226 : vector<2x128xf32>
    %cst_50 = arith.constant 1.000000e+00 : f32
    %228 = vector.broadcast %cst_50 : f32 to vector<2x128xf32>
    %229 = arith.addf %228, %227 : vector<2x128xf32>
    %230 = arith.divf %228, %229 : vector<2x128xf32>
    %231 = arith.mulf %222, %204 : vector<2x128xf32>
    %232 = arith.mulf %216, %224 : vector<2x128xf32>
    %233 = arith.addf %231, %232 : vector<2x128xf32>
    %234 = math.tanh %233 : vector<2x128xf32>
    %235 = arith.mulf %230, %234 : vector<2x128xf32>
    %236 = tpu.concatenate %32, %235 in 1 : vector<2x128xf32>, vector<2x128xf32> -> vector<2x256xf32>
    %237 = tpu.concatenate %61, %206 in 1 : vector<2x128xf32>, vector<2x128xf32> -> vector<2x256xf32>
    %238 = tpu.concatenate %90, %177 in 1 : vector<2x128xf32>, vector<2x128xf32> -> vector<2x256xf32>
    %239 = tpu.concatenate %119, %148 in 1 : vector<2x128xf32>, vector<2x128xf32> -> vector<2x256xf32>
    %240 = tpu.concatenate %148, %119 in 1 : vector<2x128xf32>, vector<2x128xf32> -> vector<2x256xf32>
    %241 = tpu.concatenate %177, %90 in 1 : vector<2x128xf32>, vector<2x128xf32> -> vector<2x256xf32>
    %242 = tpu.concatenate %206, %61 in 1 : vector<2x128xf32>, vector<2x128xf32> -> vector<2x256xf32>
    %243 = tpu.concatenate %235, %32 in 1 : vector<2x128xf32>, vector<2x128xf32> -> vector<2x256xf32>
    %244 = tpu.concatenate %236, %237, %238, %239, %240, %241, %242, %243 in 0 : vector<2x256xf32>, vector<2x256xf32>, vector<2x256xf32>, vector<2x256xf32>, vector<2x256xf32>, vector<2x256xf32>, vector<2x256xf32>, vector<2x256xf32> -> vector<16x256xf32>
    %c0_51 = arith.constant 0 : index
    %c0_52 = arith.constant 0 : index
    %245 = vector.load %arg4[%c0_51, %c0_52] : memref<256x512xf32, #tpu.memory_space<vmem>>, vector<256x512xf32>
    %cst_53 = arith.constant dense<0.000000e+00> : vector<16x512xf32>
    %246 = tpu.matmul %244, %245, %cst_53 {dimension_numbers = #tpu.dot_dimension_numbers<[1], [0], [0], [1], [0, 0, 1, 1], [], []>} : vector<16x256xf32>, vector<256x512xf32>, vector<16x512xf32> -> vector<16x512xf32>
    %c0_54 = arith.constant 0 : index
    %c0_55 = arith.constant 0 : index
    %247 = vector.load %arg6[%c0_54, %c0_55] : memref<1x512xf32, #tpu.memory_space<vmem>>, vector<1x512xf32>
    %248 = vector.broadcast %247 : vector<1x512xf32> to vector<16x512xf32>
    %249 = arith.addf %246, %248 : vector<16x512xf32>
    %cst_56 = arith.constant 0.000000e+00 : f32
    %250 = vector.broadcast %cst_56 : f32 to vector<2x128xf32>
    %251 = vector.extract_strided_slice %249 {offsets = [0, 0], sizes = [2, 512], strides = [1, 1]} : vector<16x512xf32> to vector<2x512xf32>
    %252 = vector.extract_strided_slice %251 {offsets = [0, 0], sizes = [2, 128], strides = [1, 1]} : vector<2x512xf32> to vector<2x128xf32>
    %253 = arith.negf %252 : vector<2x128xf32>
    %254 = math.exp %253 : vector<2x128xf32>
    %cst_57 = arith.constant 1.000000e+00 : f32
    %255 = vector.broadcast %cst_57 : f32 to vector<2x128xf32>
    %256 = arith.addf %255, %254 : vector<2x128xf32>
    %257 = arith.divf %255, %256 : vector<2x128xf32>
    %258 = vector.extract_strided_slice %251 {offsets = [0, 128], sizes = [2, 128], strides = [1, 1]} : vector<2x512xf32> to vector<2x128xf32>
    %259 = arith.negf %258 : vector<2x128xf32>
    %260 = math.exp %259 : vector<2x128xf32>
    %cst_58 = arith.constant 1.000000e+00 : f32
    %261 = vector.broadcast %cst_58 : f32 to vector<2x128xf32>
    %262 = arith.addf %261, %260 : vector<2x128xf32>
    %263 = arith.divf %261, %262 : vector<2x128xf32>
    %264 = vector.extract_strided_slice %251 {offsets = [0, 256], sizes = [2, 128], strides = [1, 1]} : vector<2x512xf32> to vector<2x128xf32>
    %265 = math.tanh %264 : vector<2x128xf32>
    %266 = vector.extract_strided_slice %251 {offsets = [0, 384], sizes = [2, 128], strides = [1, 1]} : vector<2x512xf32> to vector<2x128xf32>
    %267 = arith.negf %266 : vector<2x128xf32>
    %268 = math.exp %267 : vector<2x128xf32>
    %cst_59 = arith.constant 1.000000e+00 : f32
    %269 = vector.broadcast %cst_59 : f32 to vector<2x128xf32>
    %270 = arith.addf %269, %268 : vector<2x128xf32>
    %271 = arith.divf %269, %270 : vector<2x128xf32>
    %272 = arith.mulf %263, %250 : vector<2x128xf32>
    %273 = arith.mulf %257, %265 : vector<2x128xf32>
    %274 = arith.addf %272, %273 : vector<2x128xf32>
    %275 = math.tanh %274 : vector<2x128xf32>
    %276 = arith.mulf %271, %275 : vector<2x128xf32>
    %277 = vector.extract_strided_slice %249 {offsets = [2, 0], sizes = [2, 512], strides = [1, 1]} : vector<16x512xf32> to vector<2x512xf32>
    %c0_60 = arith.constant 0 : index
    %c0_61 = arith.constant 0 : index
    %278 = vector.load %arg5[%c0_60, %c0_61] : memref<128x512xf32, #tpu.memory_space<vmem>>, vector<128x512xf32>
    %cst_62 = arith.constant dense<0.000000e+00> : vector<2x512xf32>
    %279 = tpu.matmul %276, %278, %cst_62 {dimension_numbers = #tpu.dot_dimension_numbers<[1], [0], [0], [1], [0, 0, 1, 1], [], []>} : vector<2x128xf32>, vector<128x512xf32>, vector<2x512xf32> -> vector<2x512xf32>
    %280 = arith.addf %277, %279 : vector<2x512xf32>
    %281 = vector.extract_strided_slice %280 {offsets = [0, 0], sizes = [2, 128], strides = [1, 1]} : vector<2x512xf32> to vector<2x128xf32>
    %282 = arith.negf %281 : vector<2x128xf32>
    %283 = math.exp %282 : vector<2x128xf32>
    %cst_63 = arith.constant 1.000000e+00 : f32
    %284 = vector.broadcast %cst_63 : f32 to vector<2x128xf32>
    %285 = arith.addf %284, %283 : vector<2x128xf32>
    %286 = arith.divf %284, %285 : vector<2x128xf32>
    %287 = vector.extract_strided_slice %280 {offsets = [0, 128], sizes = [2, 128], strides = [1, 1]} : vector<2x512xf32> to vector<2x128xf32>
    %288 = arith.negf %287 : vector<2x128xf32>
    %289 = math.exp %288 : vector<2x128xf32>
    %cst_64 = arith.constant 1.000000e+00 : f32
    %290 = vector.broadcast %cst_64 : f32 to vector<2x128xf32>
    %291 = arith.addf %290, %289 : vector<2x128xf32>
    %292 = arith.divf %290, %291 : vector<2x128xf32>
    %293 = vector.extract_strided_slice %280 {offsets = [0, 256], sizes = [2, 128], strides = [1, 1]} : vector<2x512xf32> to vector<2x128xf32>
    %294 = math.tanh %293 : vector<2x128xf32>
    %295 = vector.extract_strided_slice %280 {offsets = [0, 384], sizes = [2, 128], strides = [1, 1]} : vector<2x512xf32> to vector<2x128xf32>
    %296 = arith.negf %295 : vector<2x128xf32>
    %297 = math.exp %296 : vector<2x128xf32>
    %cst_65 = arith.constant 1.000000e+00 : f32
    %298 = vector.broadcast %cst_65 : f32 to vector<2x128xf32>
    %299 = arith.addf %298, %297 : vector<2x128xf32>
    %300 = arith.divf %298, %299 : vector<2x128xf32>
    %301 = arith.mulf %292, %274 : vector<2x128xf32>
    %302 = arith.mulf %286, %294 : vector<2x128xf32>
    %303 = arith.addf %301, %302 : vector<2x128xf32>
    %304 = math.tanh %303 : vector<2x128xf32>
    %305 = arith.mulf %300, %304 : vector<2x128xf32>
    %306 = vector.extract_strided_slice %249 {offsets = [4, 0], sizes = [2, 512], strides = [1, 1]} : vector<16x512xf32> to vector<2x512xf32>
    %c0_66 = arith.constant 0 : index
    %c0_67 = arith.constant 0 : index
    %307 = vector.load %arg5[%c0_66, %c0_67] : memref<128x512xf32, #tpu.memory_space<vmem>>, vector<128x512xf32>
    %cst_68 = arith.constant dense<0.000000e+00> : vector<2x512xf32>
    %308 = tpu.matmul %305, %307, %cst_68 {dimension_numbers = #tpu.dot_dimension_numbers<[1], [0], [0], [1], [0, 0, 1, 1], [], []>} : vector<2x128xf32>, vector<128x512xf32>, vector<2x512xf32> -> vector<2x512xf32>
    %309 = arith.addf %306, %308 : vector<2x512xf32>
    %310 = vector.extract_strided_slice %309 {offsets = [0, 0], sizes = [2, 128], strides = [1, 1]} : vector<2x512xf32> to vector<2x128xf32>
    %311 = arith.negf %310 : vector<2x128xf32>
    %312 = math.exp %311 : vector<2x128xf32>
    %cst_69 = arith.constant 1.000000e+00 : f32
    %313 = vector.broadcast %cst_69 : f32 to vector<2x128xf32>
    %314 = arith.addf %313, %312 : vector<2x128xf32>
    %315 = arith.divf %313, %314 : vector<2x128xf32>
    %316 = vector.extract_strided_slice %309 {offsets = [0, 128], sizes = [2, 128], strides = [1, 1]} : vector<2x512xf32> to vector<2x128xf32>
    %317 = arith.negf %316 : vector<2x128xf32>
    %318 = math.exp %317 : vector<2x128xf32>
    %cst_70 = arith.constant 1.000000e+00 : f32
    %319 = vector.broadcast %cst_70 : f32 to vector<2x128xf32>
    %320 = arith.addf %319, %318 : vector<2x128xf32>
    %321 = arith.divf %319, %320 : vector<2x128xf32>
    %322 = vector.extract_strided_slice %309 {offsets = [0, 256], sizes = [2, 128], strides = [1, 1]} : vector<2x512xf32> to vector<2x128xf32>
    %323 = math.tanh %322 : vector<2x128xf32>
    %324 = vector.extract_strided_slice %309 {offsets = [0, 384], sizes = [2, 128], strides = [1, 1]} : vector<2x512xf32> to vector<2x128xf32>
    %325 = arith.negf %324 : vector<2x128xf32>
    %326 = math.exp %325 : vector<2x128xf32>
    %cst_71 = arith.constant 1.000000e+00 : f32
    %327 = vector.broadcast %cst_71 : f32 to vector<2x128xf32>
    %328 = arith.addf %327, %326 : vector<2x128xf32>
    %329 = arith.divf %327, %328 : vector<2x128xf32>
    %330 = arith.mulf %321, %303 : vector<2x128xf32>
    %331 = arith.mulf %315, %323 : vector<2x128xf32>
    %332 = arith.addf %330, %331 : vector<2x128xf32>
    %333 = math.tanh %332 : vector<2x128xf32>
    %334 = arith.mulf %329, %333 : vector<2x128xf32>
    %335 = vector.extract_strided_slice %249 {offsets = [6, 0], sizes = [2, 512], strides = [1, 1]} : vector<16x512xf32> to vector<2x512xf32>
    %c0_72 = arith.constant 0 : index
    %c0_73 = arith.constant 0 : index
    %336 = vector.load %arg5[%c0_72, %c0_73] : memref<128x512xf32, #tpu.memory_space<vmem>>, vector<128x512xf32>
    %cst_74 = arith.constant dense<0.000000e+00> : vector<2x512xf32>
    %337 = tpu.matmul %334, %336, %cst_74 {dimension_numbers = #tpu.dot_dimension_numbers<[1], [0], [0], [1], [0, 0, 1, 1], [], []>} : vector<2x128xf32>, vector<128x512xf32>, vector<2x512xf32> -> vector<2x512xf32>
    %338 = arith.addf %335, %337 : vector<2x512xf32>
    %339 = vector.extract_strided_slice %338 {offsets = [0, 0], sizes = [2, 128], strides = [1, 1]} : vector<2x512xf32> to vector<2x128xf32>
    %340 = arith.negf %339 : vector<2x128xf32>
    %341 = math.exp %340 : vector<2x128xf32>
    %cst_75 = arith.constant 1.000000e+00 : f32
    %342 = vector.broadcast %cst_75 : f32 to vector<2x128xf32>
    %343 = arith.addf %342, %341 : vector<2x128xf32>
    %344 = arith.divf %342, %343 : vector<2x128xf32>
    %345 = vector.extract_strided_slice %338 {offsets = [0, 128], sizes = [2, 128], strides = [1, 1]} : vector<2x512xf32> to vector<2x128xf32>
    %346 = arith.negf %345 : vector<2x128xf32>
    %347 = math.exp %346 : vector<2x128xf32>
    %cst_76 = arith.constant 1.000000e+00 : f32
    %348 = vector.broadcast %cst_76 : f32 to vector<2x128xf32>
    %349 = arith.addf %348, %347 : vector<2x128xf32>
    %350 = arith.divf %348, %349 : vector<2x128xf32>
    %351 = vector.extract_strided_slice %338 {offsets = [0, 256], sizes = [2, 128], strides = [1, 1]} : vector<2x512xf32> to vector<2x128xf32>
    %352 = math.tanh %351 : vector<2x128xf32>
    %353 = vector.extract_strided_slice %338 {offsets = [0, 384], sizes = [2, 128], strides = [1, 1]} : vector<2x512xf32> to vector<2x128xf32>
    %354 = arith.negf %353 : vector<2x128xf32>
    %355 = math.exp %354 : vector<2x128xf32>
    %cst_77 = arith.constant 1.000000e+00 : f32
    %356 = vector.broadcast %cst_77 : f32 to vector<2x128xf32>
    %357 = arith.addf %356, %355 : vector<2x128xf32>
    %358 = arith.divf %356, %357 : vector<2x128xf32>
    %359 = arith.mulf %350, %332 : vector<2x128xf32>
    %360 = arith.mulf %344, %352 : vector<2x128xf32>
    %361 = arith.addf %359, %360 : vector<2x128xf32>
    %362 = math.tanh %361 : vector<2x128xf32>
    %363 = arith.mulf %358, %362 : vector<2x128xf32>
    %364 = vector.extract_strided_slice %249 {offsets = [8, 0], sizes = [2, 512], strides = [1, 1]} : vector<16x512xf32> to vector<2x512xf32>
    %c0_78 = arith.constant 0 : index
    %c0_79 = arith.constant 0 : index
    %365 = vector.load %arg5[%c0_78, %c0_79] : memref<128x512xf32, #tpu.memory_space<vmem>>, vector<128x512xf32>
    %cst_80 = arith.constant dense<0.000000e+00> : vector<2x512xf32>
    %366 = tpu.matmul %363, %365, %cst_80 {dimension_numbers = #tpu.dot_dimension_numbers<[1], [0], [0], [1], [0, 0, 1, 1], [], []>} : vector<2x128xf32>, vector<128x512xf32>, vector<2x512xf32> -> vector<2x512xf32>
    %367 = arith.addf %364, %366 : vector<2x512xf32>
    %368 = vector.extract_strided_slice %367 {offsets = [0, 0], sizes = [2, 128], strides = [1, 1]} : vector<2x512xf32> to vector<2x128xf32>
    %369 = arith.negf %368 : vector<2x128xf32>
    %370 = math.exp %369 : vector<2x128xf32>
    %cst_81 = arith.constant 1.000000e+00 : f32
    %371 = vector.broadcast %cst_81 : f32 to vector<2x128xf32>
    %372 = arith.addf %371, %370 : vector<2x128xf32>
    %373 = arith.divf %371, %372 : vector<2x128xf32>
    %374 = vector.extract_strided_slice %367 {offsets = [0, 128], sizes = [2, 128], strides = [1, 1]} : vector<2x512xf32> to vector<2x128xf32>
    %375 = arith.negf %374 : vector<2x128xf32>
    %376 = math.exp %375 : vector<2x128xf32>
    %cst_82 = arith.constant 1.000000e+00 : f32
    %377 = vector.broadcast %cst_82 : f32 to vector<2x128xf32>
    %378 = arith.addf %377, %376 : vector<2x128xf32>
    %379 = arith.divf %377, %378 : vector<2x128xf32>
    %380 = vector.extract_strided_slice %367 {offsets = [0, 256], sizes = [2, 128], strides = [1, 1]} : vector<2x512xf32> to vector<2x128xf32>
    %381 = math.tanh %380 : vector<2x128xf32>
    %382 = vector.extract_strided_slice %367 {offsets = [0, 384], sizes = [2, 128], strides = [1, 1]} : vector<2x512xf32> to vector<2x128xf32>
    %383 = arith.negf %382 : vector<2x128xf32>
    %384 = math.exp %383 : vector<2x128xf32>
    %cst_83 = arith.constant 1.000000e+00 : f32
    %385 = vector.broadcast %cst_83 : f32 to vector<2x128xf32>
    %386 = arith.addf %385, %384 : vector<2x128xf32>
    %387 = arith.divf %385, %386 : vector<2x128xf32>
    %388 = arith.mulf %379, %361 : vector<2x128xf32>
    %389 = arith.mulf %373, %381 : vector<2x128xf32>
    %390 = arith.addf %388, %389 : vector<2x128xf32>
    %391 = math.tanh %390 : vector<2x128xf32>
    %392 = arith.mulf %387, %391 : vector<2x128xf32>
    %393 = vector.extract_strided_slice %249 {offsets = [10, 0], sizes = [2, 512], strides = [1, 1]} : vector<16x512xf32> to vector<2x512xf32>
    %c0_84 = arith.constant 0 : index
    %c0_85 = arith.constant 0 : index
    %394 = vector.load %arg5[%c0_84, %c0_85] : memref<128x512xf32, #tpu.memory_space<vmem>>, vector<128x512xf32>
    %cst_86 = arith.constant dense<0.000000e+00> : vector<2x512xf32>
    %395 = tpu.matmul %392, %394, %cst_86 {dimension_numbers = #tpu.dot_dimension_numbers<[1], [0], [0], [1], [0, 0, 1, 1], [], []>} : vector<2x128xf32>, vector<128x512xf32>, vector<2x512xf32> -> vector<2x512xf32>
    %396 = arith.addf %393, %395 : vector<2x512xf32>
    %397 = vector.extract_strided_slice %396 {offsets = [0, 0], sizes = [2, 128], strides = [1, 1]} : vector<2x512xf32> to vector<2x128xf32>
    %398 = arith.negf %397 : vector<2x128xf32>
    %399 = math.exp %398 : vector<2x128xf32>
    %cst_87 = arith.constant 1.000000e+00 : f32
    %400 = vector.broadcast %cst_87 : f32 to vector<2x128xf32>
    %401 = arith.addf %400, %399 : vector<2x128xf32>
    %402 = arith.divf %400, %401 : vector<2x128xf32>
    %403 = vector.extract_strided_slice %396 {offsets = [0, 128], sizes = [2, 128], strides = [1, 1]} : vector<2x512xf32> to vector<2x128xf32>
    %404 = arith.negf %403 : vector<2x128xf32>
    %405 = math.exp %404 : vector<2x128xf32>
    %cst_88 = arith.constant 1.000000e+00 : f32
    %406 = vector.broadcast %cst_88 : f32 to vector<2x128xf32>
    %407 = arith.addf %406, %405 : vector<2x128xf32>
    %408 = arith.divf %406, %407 : vector<2x128xf32>
    %409 = vector.extract_strided_slice %396 {offsets = [0, 256], sizes = [2, 128], strides = [1, 1]} : vector<2x512xf32> to vector<2x128xf32>
    %410 = math.tanh %409 : vector<2x128xf32>
    %411 = vector.extract_strided_slice %396 {offsets = [0, 384], sizes = [2, 128], strides = [1, 1]} : vector<2x512xf32> to vector<2x128xf32>
    %412 = arith.negf %411 : vector<2x128xf32>
    %413 = math.exp %412 : vector<2x128xf32>
    %cst_89 = arith.constant 1.000000e+00 : f32
    %414 = vector.broadcast %cst_89 : f32 to vector<2x128xf32>
    %415 = arith.addf %414, %413 : vector<2x128xf32>
    %416 = arith.divf %414, %415 : vector<2x128xf32>
    %417 = arith.mulf %408, %390 : vector<2x128xf32>
    %418 = arith.mulf %402, %410 : vector<2x128xf32>
    %419 = arith.addf %417, %418 : vector<2x128xf32>
    %420 = math.tanh %419 : vector<2x128xf32>
    %421 = arith.mulf %416, %420 : vector<2x128xf32>
    %422 = vector.extract_strided_slice %249 {offsets = [12, 0], sizes = [2, 512], strides = [1, 1]} : vector<16x512xf32> to vector<2x512xf32>
    %c0_90 = arith.constant 0 : index
    %c0_91 = arith.constant 0 : index
    %423 = vector.load %arg5[%c0_90, %c0_91] : memref<128x512xf32, #tpu.memory_space<vmem>>, vector<128x512xf32>
    %cst_92 = arith.constant dense<0.000000e+00> : vector<2x512xf32>
    %424 = tpu.matmul %421, %423, %cst_92 {dimension_numbers = #tpu.dot_dimension_numbers<[1], [0], [0], [1], [0, 0, 1, 1], [], []>} : vector<2x128xf32>, vector<128x512xf32>, vector<2x512xf32> -> vector<2x512xf32>
    %425 = arith.addf %422, %424 : vector<2x512xf32>
    %426 = vector.extract_strided_slice %425 {offsets = [0, 0], sizes = [2, 128], strides = [1, 1]} : vector<2x512xf32> to vector<2x128xf32>
    %427 = arith.negf %426 : vector<2x128xf32>
    %428 = math.exp %427 : vector<2x128xf32>
    %cst_93 = arith.constant 1.000000e+00 : f32
    %429 = vector.broadcast %cst_93 : f32 to vector<2x128xf32>
    %430 = arith.addf %429, %428 : vector<2x128xf32>
    %431 = arith.divf %429, %430 : vector<2x128xf32>
    %432 = vector.extract_strided_slice %425 {offsets = [0, 128], sizes = [2, 128], strides = [1, 1]} : vector<2x512xf32> to vector<2x128xf32>
    %433 = arith.negf %432 : vector<2x128xf32>
    %434 = math.exp %433 : vector<2x128xf32>
    %cst_94 = arith.constant 1.000000e+00 : f32
    %435 = vector.broadcast %cst_94 : f32 to vector<2x128xf32>
    %436 = arith.addf %435, %434 : vector<2x128xf32>
    %437 = arith.divf %435, %436 : vector<2x128xf32>
    %438 = vector.extract_strided_slice %425 {offsets = [0, 256], sizes = [2, 128], strides = [1, 1]} : vector<2x512xf32> to vector<2x128xf32>
    %439 = math.tanh %438 : vector<2x128xf32>
    %440 = vector.extract_strided_slice %425 {offsets = [0, 384], sizes = [2, 128], strides = [1, 1]} : vector<2x512xf32> to vector<2x128xf32>
    %441 = arith.negf %440 : vector<2x128xf32>
    %442 = math.exp %441 : vector<2x128xf32>
    %cst_95 = arith.constant 1.000000e+00 : f32
    %443 = vector.broadcast %cst_95 : f32 to vector<2x128xf32>
    %444 = arith.addf %443, %442 : vector<2x128xf32>
    %445 = arith.divf %443, %444 : vector<2x128xf32>
    %446 = arith.mulf %437, %419 : vector<2x128xf32>
    %447 = arith.mulf %431, %439 : vector<2x128xf32>
    %448 = arith.addf %446, %447 : vector<2x128xf32>
    %449 = math.tanh %448 : vector<2x128xf32>
    %450 = arith.mulf %445, %449 : vector<2x128xf32>
    %451 = vector.extract_strided_slice %249 {offsets = [14, 0], sizes = [2, 512], strides = [1, 1]} : vector<16x512xf32> to vector<2x512xf32>
    %c0_96 = arith.constant 0 : index
    %c0_97 = arith.constant 0 : index
    %452 = vector.load %arg5[%c0_96, %c0_97] : memref<128x512xf32, #tpu.memory_space<vmem>>, vector<128x512xf32>
    %cst_98 = arith.constant dense<0.000000e+00> : vector<2x512xf32>
    %453 = tpu.matmul %450, %452, %cst_98 {dimension_numbers = #tpu.dot_dimension_numbers<[1], [0], [0], [1], [0, 0, 1, 1], [], []>} : vector<2x128xf32>, vector<128x512xf32>, vector<2x512xf32> -> vector<2x512xf32>
    %454 = arith.addf %451, %453 : vector<2x512xf32>
    %455 = vector.extract_strided_slice %454 {offsets = [0, 0], sizes = [2, 128], strides = [1, 1]} : vector<2x512xf32> to vector<2x128xf32>
    %456 = arith.negf %455 : vector<2x128xf32>
    %457 = math.exp %456 : vector<2x128xf32>
    %cst_99 = arith.constant 1.000000e+00 : f32
    %458 = vector.broadcast %cst_99 : f32 to vector<2x128xf32>
    %459 = arith.addf %458, %457 : vector<2x128xf32>
    %460 = arith.divf %458, %459 : vector<2x128xf32>
    %461 = vector.extract_strided_slice %454 {offsets = [0, 128], sizes = [2, 128], strides = [1, 1]} : vector<2x512xf32> to vector<2x128xf32>
    %462 = arith.negf %461 : vector<2x128xf32>
    %463 = math.exp %462 : vector<2x128xf32>
    %cst_100 = arith.constant 1.000000e+00 : f32
    %464 = vector.broadcast %cst_100 : f32 to vector<2x128xf32>
    %465 = arith.addf %464, %463 : vector<2x128xf32>
    %466 = arith.divf %464, %465 : vector<2x128xf32>
    %467 = vector.extract_strided_slice %454 {offsets = [0, 256], sizes = [2, 128], strides = [1, 1]} : vector<2x512xf32> to vector<2x128xf32>
    %468 = math.tanh %467 : vector<2x128xf32>
    %469 = vector.extract_strided_slice %454 {offsets = [0, 384], sizes = [2, 128], strides = [1, 1]} : vector<2x512xf32> to vector<2x128xf32>
    %470 = arith.negf %469 : vector<2x128xf32>
    %471 = math.exp %470 : vector<2x128xf32>
    %cst_101 = arith.constant 1.000000e+00 : f32
    %472 = vector.broadcast %cst_101 : f32 to vector<2x128xf32>
    %473 = arith.addf %472, %471 : vector<2x128xf32>
    %474 = arith.divf %472, %473 : vector<2x128xf32>
    %475 = arith.mulf %466, %448 : vector<2x128xf32>
    %476 = arith.mulf %460, %468 : vector<2x128xf32>
    %477 = arith.addf %475, %476 : vector<2x128xf32>
    %478 = math.tanh %477 : vector<2x128xf32>
    %479 = arith.mulf %474, %478 : vector<2x128xf32>
    %480 = tpu.iota {dimensions = array<i32: 1>} : vector<1x128xi32>
    %c32_i32 = arith.constant 32 : i32
    %481 = vector.broadcast %c32_i32 : i32 to vector<1x128xi32>
    %482 = arith.cmpi slt, %480, %481 : vector<1x128xi32>
    %c64_i32 = arith.constant 64 : i32
    %483 = vector.broadcast %c64_i32 : i32 to vector<1x128xi32>
    %484 = arith.cmpi sge, %480, %483 : vector<1x128xi32>
    %c96_i32 = arith.constant 96 : i32
    %485 = vector.broadcast %c96_i32 : i32 to vector<1x128xi32>
    %486 = arith.cmpi slt, %480, %485 : vector<1x128xi32>
    %487 = arith.andi %484, %486 : vector<1x128xi1>
    %488 = arith.ori %482, %487 : vector<1x128xi1>
    %489 = vector.shape_cast %488 : vector<1x128xi1> to vector<1x128xi1>
    %490 = vector.broadcast %489 : vector<1x128xi1> to vector<2x128xi1>
    %491 = arith.select %490, %276, %479 : vector<2x128xi1>, vector<2x128xf32>
    %492 = vector.extract_strided_slice %491 {offsets = [0, 0], sizes = [2, 64], strides = [1, 1]} : vector<2x128xf32> to vector<2x64xf32>
    %493 = vector.extract_strided_slice %491 {offsets = [0, 64], sizes = [2, 64], strides = [1, 1]} : vector<2x128xf32> to vector<2x64xf32>
    %494 = arith.subf %492, %493 : vector<2x64xf32>
    %495 = tpu.concatenate %494, %493 in 1 : vector<2x64xf32>, vector<2x64xf32> -> vector<2x128xf32>
    %c0_102 = arith.constant 0 : index
    %c0_103 = arith.constant 0 : index
    %c0_104 = arith.constant 0 : index
    %496 = vector.load %arg7[%c0_102, %c0_103, %c0_104] : memref<8x2x128xf32, #tpu.memory_space<vmem>>, vector<1x2x128xf32>
    %497 = vector.shape_cast %496 : vector<1x2x128xf32> to vector<2x128xf32>
    %498 = vector.shape_cast %495 : vector<2x128xf32> to vector<1x2x128xf32>
    tpu.vector_store %arg7[%c0_102, %c0_103, %c0_104], %498 {strides = array<i32>} : memref<8x2x128xf32, #tpu.memory_space<vmem>>, vector<1x2x128xf32>,
    %499 = vector.shape_cast %488 : vector<1x128xi1> to vector<1x128xi1>
    %500 = vector.broadcast %499 : vector<1x128xi1> to vector<2x128xi1>
    %501 = arith.select %500, %305, %450 : vector<2x128xi1>, vector<2x128xf32>
    %502 = vector.extract_strided_slice %501 {offsets = [0, 0], sizes = [2, 64], strides = [1, 1]} : vector<2x128xf32> to vector<2x64xf32>
    %503 = vector.extract_strided_slice %501 {offsets = [0, 64], sizes = [2, 64], strides = [1, 1]} : vector<2x128xf32> to vector<2x64xf32>
    %504 = arith.subf %502, %503 : vector<2x64xf32>
    %505 = tpu.concatenate %504, %503 in 1 : vector<2x64xf32>, vector<2x64xf32> -> vector<2x128xf32>
    %c1 = arith.constant 1 : index
    %c0_105 = arith.constant 0 : index
    %c0_106 = arith.constant 0 : index
    %506 = vector.load %arg7[%c1, %c0_105, %c0_106] : memref<8x2x128xf32, #tpu.memory_space<vmem>>, vector<1x2x128xf32>
    %507 = vector.shape_cast %506 : vector<1x2x128xf32> to vector<2x128xf32>
    %508 = vector.shape_cast %505 : vector<2x128xf32> to vector<1x2x128xf32>
    tpu.vector_store %arg7[%c1, %c0_105, %c0_106], %508 {strides = array<i32>} : memref<8x2x128xf32, #tpu.memory_space<vmem>>, vector<1x2x128xf32>,
    %509 = vector.shape_cast %488 : vector<1x128xi1> to vector<1x128xi1>
    %510 = vector.broadcast %509 : vector<1x128xi1> to vector<2x128xi1>
    %511 = arith.select %510, %334, %421 : vector<2x128xi1>, vector<2x128xf32>
    %512 = vector.extract_strided_slice %511 {offsets = [0, 0], sizes = [2, 64], strides = [1, 1]} : vector<2x128xf32> to vector<2x64xf32>
    %513 = vector.extract_strided_slice %511 {offsets = [0, 64], sizes = [2, 64], strides = [1, 1]} : vector<2x128xf32> to vector<2x64xf32>
    %514 = arith.subf %512, %513 : vector<2x64xf32>
    %515 = tpu.concatenate %514, %513 in 1 : vector<2x64xf32>, vector<2x64xf32> -> vector<2x128xf32>
    %c2 = arith.constant 2 : index
    %c0_107 = arith.constant 0 : index
    %c0_108 = arith.constant 0 : index
    %516 = vector.load %arg7[%c2, %c0_107, %c0_108] : memref<8x2x128xf32, #tpu.memory_space<vmem>>, vector<1x2x128xf32>
    %517 = vector.shape_cast %516 : vector<1x2x128xf32> to vector<2x128xf32>
    %518 = vector.shape_cast %515 : vector<2x128xf32> to vector<1x2x128xf32>
    tpu.vector_store %arg7[%c2, %c0_107, %c0_108], %518 {strides = array<i32>} : memref<8x2x128xf32, #tpu.memory_space<vmem>>, vector<1x2x128xf32>,
    %519 = vector.shape_cast %488 : vector<1x128xi1> to vector<1x128xi1>
    %520 = vector.broadcast %519 : vector<1x128xi1> to vector<2x128xi1>
    %521 = arith.select %520, %363, %392 : vector<2x128xi1>, vector<2x128xf32>
    %522 = vector.extract_strided_slice %521 {offsets = [0, 0], sizes = [2, 64], strides = [1, 1]} : vector<2x128xf32> to vector<2x64xf32>
    %523 = vector.extract_strided_slice %521 {offsets = [0, 64], sizes = [2, 64], strides = [1, 1]} : vector<2x128xf32> to vector<2x64xf32>
    %524 = arith.subf %522, %523 : vector<2x64xf32>
    %525 = tpu.concatenate %524, %523 in 1 : vector<2x64xf32>, vector<2x64xf32> -> vector<2x128xf32>
    %c3 = arith.constant 3 : index
    %c0_109 = arith.constant 0 : index
    %c0_110 = arith.constant 0 : index
    %526 = vector.load %arg7[%c3, %c0_109, %c0_110] : memref<8x2x128xf32, #tpu.memory_space<vmem>>, vector<1x2x128xf32>
    %527 = vector.shape_cast %526 : vector<1x2x128xf32> to vector<2x128xf32>
    %528 = vector.shape_cast %525 : vector<2x128xf32> to vector<1x2x128xf32>
    tpu.vector_store %arg7[%c3, %c0_109, %c0_110], %528 {strides = array<i32>} : memref<8x2x128xf32, #tpu.memory_space<vmem>>, vector<1x2x128xf32>,
    %529 = vector.shape_cast %488 : vector<1x128xi1> to vector<1x128xi1>
    %530 = vector.broadcast %529 : vector<1x128xi1> to vector<2x128xi1>
    %531 = arith.select %530, %392, %363 : vector<2x128xi1>, vector<2x128xf32>
    %532 = vector.extract_strided_slice %531 {offsets = [0, 0], sizes = [2, 64], strides = [1, 1]} : vector<2x128xf32> to vector<2x64xf32>
    %533 = vector.extract_strided_slice %531 {offsets = [0, 64], sizes = [2, 64], strides = [1, 1]} : vector<2x128xf32> to vector<2x64xf32>
    %534 = arith.subf %532, %533 : vector<2x64xf32>
    %535 = tpu.concatenate %534, %533 in 1 : vector<2x64xf32>, vector<2x64xf32> -> vector<2x128xf32>
    %c4 = arith.constant 4 : index
    %c0_111 = arith.constant 0 : index
    %c0_112 = arith.constant 0 : index
    %536 = vector.load %arg7[%c4, %c0_111, %c0_112] : memref<8x2x128xf32, #tpu.memory_space<vmem>>, vector<1x2x128xf32>
    %537 = vector.shape_cast %536 : vector<1x2x128xf32> to vector<2x128xf32>
    %538 = vector.shape_cast %535 : vector<2x128xf32> to vector<1x2x128xf32>
    tpu.vector_store %arg7[%c4, %c0_111, %c0_112], %538 {strides = array<i32>} : memref<8x2x128xf32, #tpu.memory_space<vmem>>, vector<1x2x128xf32>,
    %539 = vector.shape_cast %488 : vector<1x128xi1> to vector<1x128xi1>
    %540 = vector.broadcast %539 : vector<1x128xi1> to vector<2x128xi1>
    %541 = arith.select %540, %421, %334 : vector<2x128xi1>, vector<2x128xf32>
    %542 = vector.extract_strided_slice %541 {offsets = [0, 0], sizes = [2, 64], strides = [1, 1]} : vector<2x128xf32> to vector<2x64xf32>
    %543 = vector.extract_strided_slice %541 {offsets = [0, 64], sizes = [2, 64], strides = [1, 1]} : vector<2x128xf32> to vector<2x64xf32>
    %544 = arith.subf %542, %543 : vector<2x64xf32>
    %545 = tpu.concatenate %544, %543 in 1 : vector<2x64xf32>, vector<2x64xf32> -> vector<2x128xf32>
    %c5 = arith.constant 5 : index
    %c0_113 = arith.constant 0 : index
    %c0_114 = arith.constant 0 : index
    %546 = vector.load %arg7[%c5, %c0_113, %c0_114] : memref<8x2x128xf32, #tpu.memory_space<vmem>>, vector<1x2x128xf32>
    %547 = vector.shape_cast %546 : vector<1x2x128xf32> to vector<2x128xf32>
    %548 = vector.shape_cast %545 : vector<2x128xf32> to vector<1x2x128xf32>
    tpu.vector_store %arg7[%c5, %c0_113, %c0_114], %548 {strides = array<i32>} : memref<8x2x128xf32, #tpu.memory_space<vmem>>, vector<1x2x128xf32>,
    %549 = vector.shape_cast %488 : vector<1x128xi1> to vector<1x128xi1>
    %550 = vector.broadcast %549 : vector<1x128xi1> to vector<2x128xi1>
    %551 = arith.select %550, %450, %305 : vector<2x128xi1>, vector<2x128xf32>
    %552 = vector.extract_strided_slice %551 {offsets = [0, 0], sizes = [2, 64], strides = [1, 1]} : vector<2x128xf32> to vector<2x64xf32>
    %553 = vector.extract_strided_slice %551 {offsets = [0, 64], sizes = [2, 64], strides = [1, 1]} : vector<2x128xf32> to vector<2x64xf32>
    %554 = arith.subf %552, %553 : vector<2x64xf32>
    %555 = tpu.concatenate %554, %553 in 1 : vector<2x64xf32>, vector<2x64xf32> -> vector<2x128xf32>
    %c6 = arith.constant 6 : index
    %c0_115 = arith.constant 0 : index
    %c0_116 = arith.constant 0 : index
    %556 = vector.load %arg7[%c6, %c0_115, %c0_116] : memref<8x2x128xf32, #tpu.memory_space<vmem>>, vector<1x2x128xf32>
    %557 = vector.shape_cast %556 : vector<1x2x128xf32> to vector<2x128xf32>
    %558 = vector.shape_cast %555 : vector<2x128xf32> to vector<1x2x128xf32>
    tpu.vector_store %arg7[%c6, %c0_115, %c0_116], %558 {strides = array<i32>} : memref<8x2x128xf32, #tpu.memory_space<vmem>>, vector<1x2x128xf32>,
    %559 = vector.shape_cast %488 : vector<1x128xi1> to vector<1x128xi1>
    %560 = vector.broadcast %559 : vector<1x128xi1> to vector<2x128xi1>
    %561 = arith.select %560, %479, %276 : vector<2x128xi1>, vector<2x128xf32>
    %562 = vector.extract_strided_slice %561 {offsets = [0, 0], sizes = [2, 64], strides = [1, 1]} : vector<2x128xf32> to vector<2x64xf32>
    %563 = vector.extract_strided_slice %561 {offsets = [0, 64], sizes = [2, 64], strides = [1, 1]} : vector<2x128xf32> to vector<2x64xf32>
    %564 = arith.subf %562, %563 : vector<2x64xf32>
    %565 = tpu.concatenate %564, %563 in 1 : vector<2x64xf32>, vector<2x64xf32> -> vector<2x128xf32>
    %c7 = arith.constant 7 : index
    %c0_117 = arith.constant 0 : index
    %c0_118 = arith.constant 0 : index
    %566 = vector.load %arg7[%c7, %c0_117, %c0_118] : memref<8x2x128xf32, #tpu.memory_space<vmem>>, vector<1x2x128xf32>
    %567 = vector.shape_cast %566 : vector<1x2x128xf32> to vector<2x128xf32>
    %568 = vector.shape_cast %565 : vector<2x128xf32> to vector<1x2x128xf32>
    tpu.vector_store %arg7[%c7, %c0_117, %c0_118], %568 {strides = array<i32>} : memref<8x2x128xf32, #tpu.memory_space<vmem>>, vector<1x2x128xf32>,
    return
  }
}

</mosaic_0001>

<llo_original>
// kernel: mrs_forward.1
$region0: #{mrs_forward.1}
  #allocation0 [shape = 'u32[]', space=smem, size = 0x4, offset = 0x4, fixed_abs, tag = 'smem constant byte address 0x4 - core index']
  #allocation1 [shape = 'u32[144,128]{1,0:T(1,128)}', space=vmem, size = 0x12000, scoped, tag = 'internal scratch']
  %s0 = inlined_call_operand.vmem [shape: f32[16,128], index: 0, kind: input, shape index: {}]
  %s1 = inlined_call_operand.hbm [shape: f32[128,512], index: 1, kind: input, shape index: {}]
  %s2 = inlined_call_operand.hbm [shape: f32[128,512], index: 2, kind: input, shape index: {}]
  %s3 = inlined_call_operand.vmem [shape: f32[1,512], index: 3, kind: input, shape index: {}]
  %s4 = inlined_call_operand.hbm [shape: f32[256,512], index: 4, kind: input, shape index: {}]
  %s5 = inlined_call_operand.hbm [shape: f32[128,512], index: 5, kind: input, shape index: {}]
  %s6 = inlined_call_operand.vmem [shape: f32[1,512], index: 6, kind: input, shape index: {}]
  %s7 = inlined_call_operand.vmem [shape: f32[8,2,128], index: 7, kind: output, shape index: {}]
  %s8 = sld [smem:[#allocation0]]
  $region54: #{mrs_forward.1} parent=0
    _
  %s10 = ssub.s32 1, %s8
  %s11 = scalar_select 0, %s10, %s8
  $region1: #{mrs_forward.1} parent=0
    #allocation2 [shape = 'u8[262144]{0}', space=vmem, size = 0x40000, scoped, tag = 'input window, operand 1, single buffered']
    #allocation3 [shape = 's32[1]{0}', space=sflag, size = 0x4, scoped, tag = 'scoped memory for mrs_forward.1']
    #allocation4 [shape = 'u8[262144]{0}', space=vmem, size = 0x40000, scoped, tag = 'input window, operand 2, single buffered']
    #allocation5 [shape = 's32[1]{0}', space=sflag, size = 0x4, scoped, tag = 'scoped memory for mrs_forward.1']
    #allocation6 [shape = 'u8[524288]{0}', space=vmem, size = 0x80000, scoped, tag = 'input window, operand 4, single buffered']
    #allocation7 [shape = 'u8[262144]{0}', space=vmem, size = 0x40000, scoped, tag = 'input window, operand 5, single buffered']
    #allocation8 [shape = 's32[1]{0}', space=sflag, size = 0x4, scoped, tag = 'scoped memory for mrs_forward.1']
    %12 = vsyncpa [#allocation3], 0
    %13 = vsyncpa [#allocation5], 0
    %14 = vsyncpa [#allocation8], 0
    // Predicated region
    $region2: #{mrs_forward.1} parent=1 // pred_check
      _
    $region3: #{mrs_forward.1} parent=1 // pred_check_branch
      %16 = sbr.rel (0) target = $region5
    $region4: #{mrs_forward.1} parent=1 // pred_region
      _
    $region5: #{mrs_forward.1} parent=1 // pred_fallthru
      _
    // Predicated region
    $region6: #{mrs_forward.1} parent=1 // pred_check
      _
    $region7: #{mrs_forward.1} parent=1 // pred_check_branch
      %18 = sbr.rel (0) target = $region9
    $region8: #{mrs_forward.1} parent=1 // pred_region
      %s20 = ssub.s32 8192, 8192
      %21 = vsyncadd [#allocation3], %s20
      %s22 = sshll.u32 [#allocation2], 4
      %s23 = int_to_ptr.vmem [resolvable:$true] %s22
      %28 = dma.hbm_to_vmem [thread:$0]  %s1, 8192, %s23, [#allocation3], 512, 512, 32
    $region9: #{mrs_forward.1} parent=1 // pred_fallthru
      _
    // Predicated region
    $region10: #{mrs_forward.1} parent=1 // pred_check
      _
    $region11: #{mrs_forward.1} parent=1 // pred_check_branch
      %30 = sbr.rel (0) target = $region13
    $region12: #{mrs_forward.1} parent=1 // pred_region
      %s32 = ssub.s32 8192, 8192
      %33 = vsyncadd [#allocation5], %s32
      %s34 = sshll.u32 [#allocation4], 4
      %s35 = int_to_ptr.vmem [resolvable:$true] %s34
      %40 = dma.hbm_to_vmem [thread:$0]  %s2, 8192, %s35, [#allocation5], 512, 512, 32
    $region13: #{mrs_forward.1} parent=1 // pred_fallthru
      _
    // Predicated region
    $region14: #{mrs_forward.1} parent=1 // pred_check
      _
    $region15: #{mrs_forward.1} parent=1 // pred_check_branch
      %42 = sbr.rel (0) target = $region17
    $region16: #{mrs_forward.1} parent=1 // pred_region
      _
    $region17: #{mrs_forward.1} parent=1 // pred_fallthru
      _
    // Predicated region
    $region18: #{mrs_forward.1} parent=1 // pred_check
      _
    $region19: #{mrs_forward.1} parent=1 // pred_check_branch
      %44 = sbr.rel (0) target = $region21
    $region20: #{mrs_forward.1} parent=1 // pred_region
      %s46 = ssub.s32 16384, 16384
      %47 = vsyncadd [#allocation5], %s46
      %s48 = sshll.u32 [#allocation6], 4
      %s49 = int_to_ptr.vmem [resolvable:$true] %s48
      %54 = dma.hbm_to_vmem [thread:$0]  %s4, 16384, %s49, [#allocation5], 512, 512, 32
    $region21: #{mrs_forward.1} parent=1 // pred_fallthru
      _
    // Predicated region
    $region22: #{mrs_forward.1} parent=1 // pred_check
      _
    $region23: #{mrs_forward.1} parent=1 // pred_check_branch
      %56 = sbr.rel (0) target = $region25
    $region24: #{mrs_forward.1} parent=1 // pred_region
      %s58 = ssub.s32 8192, 8192
      %59 = vsyncadd [#allocation8], %s58
      %s60 = sshll.u32 [#allocation7], 4
      %s61 = int_to_ptr.vmem [resolvable:$true] %s60
      %66 = dma.hbm_to_vmem [thread:$0]  %s5, 8192, %s61, [#allocation8], 512, 512, 32
    $region25: #{mrs_forward.1} parent=1 // pred_fallthru
      _
    // Predicated region
    $region26: #{mrs_forward.1} parent=1 // pred_check
      _
    $region27: #{mrs_forward.1} parent=1 // pred_check_branch
      %68 = sbr.rel (0) target = $region29
    $region28: #{mrs_forward.1} parent=1 // pred_region
      _
    $region29: #{mrs_forward.1} parent=1 // pred_fallthru
      _
    // Predicated region
    $region30: #{mrs_forward.1} parent=1 // pred_check
      _
    $region31: #{mrs_forward.1} parent=1 // pred_check_branch
      %70 = sbr.rel (0) target = $region33
    $region32: #{mrs_forward.1} parent=1 // pred_region
      %71 = dma.done [#allocation3], 8192
    $region33: #{mrs_forward.1} parent=1 // pred_fallthru
      _
    // Predicated region
    $region34: #{mrs_forward.1} parent=1 // pred_check
      _
    $region35: #{mrs_forward.1} parent=1 // pred_check_branch
      %73 = sbr.rel (0) target = $region37
    $region36: #{mrs_forward.1} parent=1 // pred_region
      %74 = dma.done [#allocation5], 8192
    $region37: #{mrs_forward.1} parent=1 // pred_fallthru
      _
    // Predicated region
    $region38: #{mrs_forward.1} parent=1 // pred_check
      _
    $region39: #{mrs_forward.1} parent=1 // pred_check_branch
      %76 = sbr.rel (0) target = $region41
    $region40: #{mrs_forward.1} parent=1 // pred_region
      %77 = dma.done [#allocation5], 16384
    $region41: #{mrs_forward.1} parent=1 // pred_fallthru
      _
    // Predicated region
    $region42: #{mrs_forward.1} parent=1 // pred_check
      _
    $region43: #{mrs_forward.1} parent=1 // pred_check_branch
      %79 = sbr.rel (0) target = $region45
    $region44: #{mrs_forward.1} parent=1 // pred_region
      %80 = dma.done [#allocation8], 8192
    $region45: #{mrs_forward.1} parent=1 // pred_fallthru
      _
    %v81 = vld [vmem:[%s0] sm:$0xff]
    %v82 = vld [vmem:[%s0 + $0x8] sm:$0xff]
    %v83 = vld [vmem:[#allocation2] sm:$0xff]
    %v84 = vld [vmem:[#allocation2 + $0x8] sm:$0xff]
    %v85 = vld [vmem:[#allocation2 + $0x10] sm:$0xff]
    %v86 = vld [vmem:[#allocation2 + $0x18] sm:$0xff]
    %v87 = vld [vmem:[#allocation2 + $0x20] sm:$0xff]
    %v88 = vld [vmem:[#allocation2 + $0x28] sm:$0xff]
    %v89 = vld [vmem:[#allocation2 + $0x30] sm:$0xff]
    %v90 = vld [vmem:[#allocation2 + $0x38] sm:$0xff]
    %v91 = vld [vmem:[#allocation2 + $0x40] sm:$0xff]
    %v92 = vld [vmem:[#allocation2 + $0x48] sm:$0xff]
    %v93 = vld [vmem:[#allocation2 + $0x50] sm:$0xff]
    %v94 = vld [vmem:[#allocation2 + $0x58] sm:$0xff]
    %v95 = vld [vmem:[#allocation2 + $0x60] sm:$0xff]
    %v96 = vld [vmem:[#allocation2 + $0x68] sm:$0xff]
    %v97 = vld [vmem:[#allocation2 + $0x70] sm:$0xff]
    %v98 = vld [vmem:[#allocation2 + $0x78] sm:$0xff]
    %v99 = vld [vmem:[#allocation2 + $0x80] sm:$0xff]
    %v100 = vld [vmem:[#allocation2 + $0x88] sm:$0xff]
    %v101 = vld [vmem:[#allocation2 + $0x90] sm:$0xff]
    %v102 = vld [vmem:[#allocation2 + $0x98] sm:$0xff]
    %v103 = vld [vmem:[#allocation2 + $0xa0] sm:$0xff]
    %v104 = vld [vmem:[#allocation2 + $0xa8] sm:$0xff]
    %v105 = vld [vmem:[#allocation2 + $0xb0] sm:$0xff]
    %v106 = vld [vmem:[#allocation2 + $0xb8] sm:$0xff]
    %v107 = vld [vmem:[#allocation2 + $0xc0] sm:$0xff]
    %v108 = vld [vmem:[#allocation2 + $0xc8] sm:$0xff]
    %v109 = vld [vmem:[#allocation2 + $0xd0] sm:$0xff]
    %v110 = vld [vmem:[#allocation2 + $0xd8] sm:$0xff]
    %v111 = vld [vmem:[#allocation2 + $0xe0] sm:$0xff]
    %v112 = vld [vmem:[#allocation2 + $0xe8] sm:$0xff]
    %v113 = vld [vmem:[#allocation2 + $0xf0] sm:$0xff]
    %v114 = vld [vmem:[#allocation2 + $0xf8] sm:$0xff]
    %v115 = vld [vmem:[#allocation2 + $0x100] sm:$0xff]
    %v116 = vld [vmem:[#allocation2 + $0x108] sm:$0xff]
    %v117 = vld [vmem:[#allocation2 + $0x110] sm:$0xff]
    %v118 = vld [vmem:[#allocation2 + $0x118] sm:$0xff]
    %v119 = vld [vmem:[#allocation2 + $0x120] sm:$0xff]
    %v120 = vld [vmem:[#allocation2 + $0x128] sm:$0xff]
    %v121 = vld [vmem:[#allocation2 + $0x130] sm:$0xff]
    %v122 = vld [vmem:[#allocation2 + $0x138] sm:$0xff]
    %v123 = vld [vmem:[#allocation2 + $0x140] sm:$0xff]
    %v124 = vld [vmem:[#allocation2 + $0x148] sm:$0xff]
    %v125 = vld [vmem:[#allocation2 + $0x150] sm:$0xff]
    %v126 = vld [vmem:[#allocation2 + $0x158] sm:$0xff]
    %v127 = vld [vmem:[#allocation2 + $0x160] sm:$0xff]
    %v128 = vld [vmem:[#allocation2 + $0x168] sm:$0xff]
    %v129 = vld [vmem:[#allocation2 + $0x170] sm:$0xff]
    %v130 = vld [vmem:[#allocation2 + $0x178] sm:$0xff]
    %v131 = vld [vmem:[#allocation2 + $0x180] sm:$0xff]
    %v132 = vld [vmem:[#allocation2 + $0x188] sm:$0xff]
    %v133 = vld [vmem:[#allocation2 + $0x190] sm:$0xff]
    %v134 = vld [vmem:[#allocation2 + $0x198] sm:$0xff]
    %v135 = vld [vmem:[#allocation2 + $0x1a0] sm:$0xff]
    %v136 = vld [vmem:[#allocation2 + $0x1a8] sm:$0xff]
    %v137 = vld [vmem:[#allocation2 + $0x1b0] sm:$0xff]
    %v138 = vld [vmem:[#allocation2 + $0x1b8] sm:$0xff]
    %v139 = vld [vmem:[#allocation2 + $0x1c0] sm:$0xff]
    %v140 = vld [vmem:[#allocation2 + $0x1c8] sm:$0xff]
    %v141 = vld [vmem:[#allocation2 + $0x1d0] sm:$0xff]
    %v142 = vld [vmem:[#allocation2 + $0x1d8] sm:$0xff]
    %v143 = vld [vmem:[#allocation2 + $0x1e0] sm:$0xff]
    %v144 = vld [vmem:[#allocation2 + $0x1e8] sm:$0xff]
    %v145 = vld [vmem:[#allocation2 + $0x1f0] sm:$0xff]
    %v146 = vld [vmem:[#allocation2 + $0x1f8] sm:$0xff]
    %v147 = vld [vmem:[%s3] sm:$0xf]
    %v149 = vlaneseq
    %v150 = vshrl.u32 %v149, 7
    %v151 = vsub.s32 0, %v150
    %v152 = vrot.slane %v147, %v151
    %v153 = vlaneseq
    %v154 = vshrl.u32 %v153, 7
    %v155 = vsub.s32 1, %v154
    %v156 = vrot.slane %v147, %v155
    %v157 = vlaneseq
    %v158 = vshrl.u32 %v157, 7
    %v159 = vsub.s32 2, %v158
    %v160 = vrot.slane %v147, %v159
    %v161 = vlaneseq
    %v162 = vshrl.u32 %v161, 7
    %v163 = vsub.s32 3, %v162
    %v164 = vrot.slane %v147, %v163
    %169 = vmatprep.subr.mxu0 %v84
    %170 = vmatpush1.msra.mxu0 %v83
    %171 = vmatprep.subr.mxu0 %v88
    %172 = vmatpush1.msra.mxu0 %v87
    %173 = vmatprep.subr.mxu0 %v92
    %174 = vmatpush1.msra.mxu0 %v91
    %175 = vmatprep.subr.mxu0 %v96
    %176 = vmatpush1.msra.mxu0 %v95
    %177 = vmatprep.subr.mxu0 %v100
    %178 = vmatpush1.msra.mxu0 %v99
    %179 = vmatprep.subr.mxu0 %v104
    %180 = vmatpush1.msra.mxu0 %v103
    %181 = vmatprep.subr.mxu0 %v108
    %182 = vmatpush1.msra.mxu0 %v107
    %183 = vmatprep.subr.mxu0 %v112
    %184 = vmatpush1.msra.mxu0 %v111
    %185 = vmatprep.subr.mxu0 %v116
    %186 = vmatpush1.msra.mxu0 %v115
    %187 = vmatprep.subr.mxu0 %v120
    %188 = vmatpush1.msra.mxu0 %v119
    %189 = vmatprep.subr.mxu0 %v124
    %190 = vmatpush1.msra.mxu0 %v123
    %191 = vmatprep.subr.mxu0 %v128
    %192 = vmatpush1.msra.mxu0 %v127
    %193 = vmatprep.subr.mxu0 %v132
    %194 = vmatpush1.msra.mxu0 %v131
    %195 = vmatprep.subr.mxu0 %v136
    %196 = vmatpush1.msra.mxu0 %v135
    %197 = vmatprep.subr.mxu0 %v140
    %198 = vmatpush1.msra.mxu0 %v139
    %199 = vmatprep.subr.mxu0 %v144
    %200 = vmatpush1.msra.mxu0 %v143
    %201 = vmatprep.subr.mxu0 0.0
    %202 = vmatpush1.msra.mxu0 0.0
    %203 = vmatprep.subr.mxu0 0.0
    %204 = vmatpush1.msra.mxu0 0.0
    %205 = vmatprep.subr.mxu0 0.0
    %206 = vmatpush1.msra.mxu0 0.0
    %207 = vmatprep.subr.mxu0 0.0
    %208 = vmatpush1.msra.mxu0 0.0
    %209 = vmatprep.subr.mxu0 0.0
    %210 = vmatpush1.msra.mxu0 0.0
    %211 = vmatprep.subr.mxu0 0.0
    %212 = vmatpush1.msra.mxu0 0.0
    %213 = vmatprep.subr.mxu0 0.0
    %214 = vmatpush1.msra.mxu0 0.0
    %215 = vmatprep.subr.mxu0 0.0
    %216 = vmatpush1.msra.mxu0 0.0
    %217 = vmatprep.subr.mxu0 0.0
    %218 = vmatpush1.msra.mxu0 0.0
    %219 = vmatprep.subr.mxu0 0.0
    %220 = vmatpush1.msra.mxu0 0.0
    %221 = vmatprep.subr.mxu0 0.0
    %222 = vmatpush1.msra.mxu0 0.0
    %223 = vmatprep.subr.mxu0 0.0
    %224 = vmatpush1.msra.mxu0 0.0
    %225 = vmatprep.subr.mxu0 0.0
    %226 = vmatpush1.msra.mxu0 0.0
    %227 = vmatprep.subr.mxu0 0.0
    %228 = vmatpush1.msra.mxu0 0.0
    %229 = vmatprep.subr.mxu0 0.0
    %230 = vmatpush1.msra.mxu0 0.0
    %231 = vmatprep.subr.mxu0 0.0
    %232 = vmatpush1.msra.mxu0 0.0
    %233 = vmatprep.mubr.f32.mxu0 0.0
    %234 = vmatmul.mubr.f32.gmra.mrb[0].mxu0 %v81
    %v235 = vpop.f32.mrb[0].mxu0
    %v236 = vadd.f32 %v152, %v235
    %v237 = vpop.f32.mrb[0].mxu0
    %v238 = vadd.f32 %v156, %v237
    %239 = vmatprep.mubr.f32.mxu0 0.0
    %240 = vmatmul.mubr.f32.gmra.mrb[0].mxu0 %v82
    %v241 = vpop.f32.mrb[0].mxu0
    %v242 = vadd.f32 %v152, %v241
    %v243 = vpop.f32.mrb[0].mxu0
    %v244 = vadd.f32 %v156, %v243
    %245 = vdwg.mxu0
    %246 = vmatprep.subr.mxu0 %v86
    %247 = vmatpush1.msra.mxu0 %v85
    %248 = vmatprep.subr.mxu0 %v90
    %249 = vmatpush1.msra.mxu0 %v89
    %250 = vmatprep.subr.mxu0 %v94
    %251 = vmatpush1.msra.mxu0 %v93
    %252 = vmatprep.subr.mxu0 %v98
    %253 = vmatpush1.msra.mxu0 %v97
    %254 = vmatprep.subr.mxu0 %v102
    %255 = vmatpush1.msra.mxu0 %v101
    %256 = vmatprep.subr.mxu0 %v106
    %257 = vmatpush1.msra.mxu0 %v105
    %258 = vmatprep.subr.mxu0 %v110
    %259 = vmatpush1.msra.mxu0 %v109
    %260 = vmatprep.subr.mxu0 %v114
    %261 = vmatpush1.msra.mxu0 %v113
    %262 = vmatprep.subr.mxu0 %v118
    %263 = vmatpush1.msra.mxu0 %v117
    %264 = vmatprep.subr.mxu0 %v122
    %265 = vmatpush1.msra.mxu0 %v121
    %266 = vmatprep.subr.mxu0 %v126
    %267 = vmatpush1.msra.mxu0 %v125
    %268 = vmatprep.subr.mxu0 %v130
    %269 = vmatpush1.msra.mxu0 %v129
    %270 = vmatprep.subr.mxu0 %v134
    %271 = vmatpush1.msra.mxu0 %v133
    %272 = vmatprep.subr.mxu0 %v138
    %273 = vmatpush1.msra.mxu0 %v137
    %274 = vmatprep.subr.mxu0 %v142
    %275 = vmatpush1.msra.mxu0 %v141
    %276 = vmatprep.subr.mxu0 %v146
    %277 = vmatpush1.msra.mxu0 %v145
    %278 = vmatprep.subr.mxu0 0.0
    %279 = vmatpush1.msra.mxu0 0.0
    %280 = vmatprep.subr.mxu0 0.0
    %281 = vmatpush1.msra.mxu0 0.0
    %282 = vmatprep.subr.mxu0 0.0
    %283 = vmatpush1.msra.mxu0 0.0
    %284 = vmatprep.subr.mxu0 0.0
    %285 = vmatpush1.msra.mxu0 0.0
    %286 = vmatprep.subr.mxu0 0.0
    %287 = vmatpush1.msra.mxu0 0.0
    %288 = vmatprep.subr.mxu0 0.0
    %289 = vmatpush1.msra.mxu0 0.0
    %290 = vmatprep.subr.mxu0 0.0
    %291 = vmatpush1.msra.mxu0 0.0
    %292 = vmatprep.subr.mxu0 0.0
    %293 = vmatpush1.msra.mxu0 0.0
    %294 = vmatprep.subr.mxu0 0.0
    %295 = vmatpush1.msra.mxu0 0.0
    %296 = vmatprep.subr.mxu0 0.0
    %297 = vmatpush1.msra.mxu0 0.0
    %298 = vmatprep.subr.mxu0 0.0
    %299 = vmatpush1.msra.mxu0 0.0
    %300 = vmatprep.subr.mxu0 0.0
    %301 = vmatpush1.msra.mxu0 0.0
    %302 = vmatprep.subr.mxu0 0.0
    %303 = vmatpush1.msra.mxu0 0.0
    %304 = vmatprep.subr.mxu0 0.0
    %305 = vmatpush1.msra.mxu0 0.0
    %306 = vmatprep.subr.mxu0 0.0
    %307 = vmatpush1.msra.mxu0 0.0
    %308 = vmatprep.subr.mxu0 0.0
    %309 = vmatpush1.msra.mxu0 0.0
    %310 = vmatprep.mubr.f32.mxu0 0.0
    %311 = vmatmul.mubr.f32.gmra.mrb[0].mxu0 %v81
    %v312 = vpop.f32.mrb[0].mxu0
    %v313 = vadd.f32 %v160, %v312
    %v314 = vpop.f32.mrb[0].mxu0
    %v315 = vadd.f32 %v164, %v314
    %316 = vmatprep.mubr.f32.mxu0 0.0
    %317 = vmatmul.mubr.f32.gmra.mrb[0].mxu0 %v82
    %v318 = vpop.f32.mrb[0].mxu0
    %v319 = vadd.f32 %v160, %v318
    %v320 = vpop.f32.mrb[0].mxu0
    %v321 = vadd.f32 %v164, %v320
    %322 = vdwg.mxu0
    %v323 = vxor.u32 %v236, 2147483648
    %v324 = vmul.f32 %v323, 1.442695
    %v325 = vpow.pop %v324
    %v326 = vadd.f32 %v325, 1.0
    %v327 = vrcp.pop %v326
    %v328 = vmul.f32 1.0, %v327
    %v329 = vxor.u32 %v238, 2147483648
    %v330 = vmul.f32 %v329, 1.442695
    %v331 = vpow.pop %v330
    %v332 = vadd.f32 %v331, 1.0
    %v333 = vrcp.pop %v332
    %v334 = vmul.f32 1.0, %v333
    %v335 = vtanh.pop %v313
    %v336 = vxor.u32 %v315, 2147483648
    %v337 = vmul.f32 %v336, 1.442695
    %v338 = vpow.pop %v337
    %v339 = vadd.f32 %v338, 1.0
    %v340 = vrcp.pop %v339
    %v341 = vmul.f32 1.0, %v340
    %v342 = vmul.f32 %v334, 0.0
    %v343 = vmul.f32 %v328, %v335
    %v344 = vadd.f32 %v342, %v343
    %v345 = vtanh.pop %v344
    %v346 = vmul.f32 %v341, %v345
    %v347 = vld [vmem:[#allocation4] sm:$0xff]
    %v348 = vld [vmem:[#allocation4 + $0x8] sm:$0xff]
    %v349 = vld [vmem:[#allocation4 + $0x10] sm:$0xff]
    %v350 = vld [vmem:[#allocation4 + $0x18] sm:$0xff]
    %v351 = vld [vmem:[#allocation4 + $0x20] sm:$0xff]
    %v352 = vld [vmem:[#allocation4 + $0x28] sm:$0xff]
    %v353 = vld [vmem:[#allocation4 + $0x30] sm:$0xff]
    %v354 = vld [vmem:[#allocation4 + $0x38] sm:$0xff]
    %v355 = vld [vmem:[#allocation4 + $0x40] sm:$0xff]
    %v356 = vld [vmem:[#allocation4 + $0x48] sm:$0xff]
    %v357 = vld [vmem:[#allocation4 + $0x50] sm:$0xff]
    %v358 = vld [vmem:[#allocation4 + $0x58] sm:$0xff]
    %v359 = vld [vmem:[#allocation4 + $0x60] sm:$0xff]
    %v360 = vld [vmem:[#allocation4 + $0x68] sm:$0xff]
    %v361 = vld [vmem:[#allocation4 + $0x70] sm:$0xff]
    %v362 = vld [vmem:[#allocation4 + $0x78] sm:$0xff]
    %v363 = vld [vmem:[#allocation4 + $0x80] sm:$0xff]
    %v364 = vld [vmem:[#allocation4 + $0x88] sm:$0xff]
    %v365 = vld [vmem:[#allocation4 + $0x90] sm:$0xff]
    %v366 = vld [vmem:[#allocation4 + $0x98] sm:$0xff]
    %v367 = vld [vmem:[#allocation4 + $0xa0] sm:$0xff]
    %v368 = vld [vmem:[#allocation4 + $0xa8] sm:$0xff]
    %v369 = vld [vmem:[#allocation4 + $0xb0] sm:$0xff]
    %v370 = vld [vmem:[#allocation4 + $0xb8] sm:$0xff]
    %v371 = vld [vmem:[#allocation4 + $0xc0] sm:$0xff]
    %v372 = vld [vmem:[#allocation4 + $0xc8] sm:$0xff]
    %v373 = vld [vmem:[#allocation4 + $0xd0] sm:$0xff]
    %v374 = vld [vmem:[#allocation4 + $0xd8] sm:$0xff]
    %v375 = vld [vmem:[#allocation4 + $0xe0] sm:$0xff]
    %v376 = vld [vmem:[#allocation4 + $0xe8] sm:$0xff]
    %v377 = vld [vmem:[#allocation4 + $0xf0] sm:$0xff]
    %v378 = vld [vmem:[#allocation4 + $0xf8] sm:$0xff]
    %v379 = vld [vmem:[#allocation4 + $0x100] sm:$0xff]
    %v380 = vld [vmem:[#allocation4 + $0x108] sm:$0xff]
    %v381 = vld [vmem:[#allocation4 + $0x110] sm:$0xff]
    %v382 = vld [vmem:[#allocation4 + $0x118] sm:$0xff]
    %v383 = vld [vmem:[#allocation4 + $0x120] sm:$0xff]
    %v384 = vld [vmem:[#allocation4 + $0x128] sm:$0xff]
    %v385 = vld [vmem:[#allocation4 + $0x130] sm:$0xff]
    %v386 = vld [vmem:[#allocation4 + $0x138] sm:$0xff]
    %v387 = vld [vmem:[#allocation4 + $0x140] sm:$0xff]
    %v388 = vld [vmem:[#allocation4 + $0x148] sm:$0xff]
    %v389 = vld [vmem:[#allocation4 + $0x150] sm:$0xff]
    %v390 = vld [vmem:[#allocation4 + $0x158] sm:$0xff]
    %v391 = vld [vmem:[#allocation4 + $0x160] sm:$0xff]
    %v392 = vld [vmem:[#allocation4 + $0x168] sm:$0xff]
    %v393 = vld [vmem:[#allocation4 + $0x170] sm:$0xff]
    %v394 = vld [vmem:[#allocation4 + $0x178] sm:$0xff]
    %v395 = vld [vmem:[#allocation4 + $0x180] sm:$0xff]
    %v396 = vld [vmem:[#allocation4 + $0x188] sm:$0xff]
    %v397 = vld [vmem:[#allocation4 + $0x190] sm:$0xff]
    %v398 = vld [vmem:[#allocation4 + $0x198] sm:$0xff]
    %v399 = vld [vmem:[#allocation4 + $0x1a0] sm:$0xff]
    %v400 = vld [vmem:[#allocation4 + $0x1a8] sm:$0xff]
    %v401 = vld [vmem:[#allocation4 + $0x1b0] sm:$0xff]
    %v402 = vld [vmem:[#allocation4 + $0x1b8] sm:$0xff]
    %v403 = vld [vmem:[#allocation4 + $0x1c0] sm:$0xff]
    %v404 = vld [vmem:[#allocation4 + $0x1c8] sm:$0xff]
    %v405 = vld [vmem:[#allocation4 + $0x1d0] sm:$0xff]
    %v406 = vld [vmem:[#allocation4 + $0x1d8] sm:$0xff]
    %v407 = vld [vmem:[#allocation4 + $0x1e0] sm:$0xff]
    %v408 = vld [vmem:[#allocation4 + $0x1e8] sm:$0xff]
    %v409 = vld [vmem:[#allocation4 + $0x1f0] sm:$0xff]
    %v410 = vld [vmem:[#allocation4 + $0x1f8] sm:$0xff]
    %411 = vmatprep.subr.mxu0 %v348
    %412 = vmatpush1.msra.mxu0 %v347
    %413 = vmatprep.subr.mxu0 %v352
    %414 = vmatpush1.msra.mxu0 %v351
    %415 = vmatprep.subr.mxu0 %v356
    %416 = vmatpush1.msra.mxu0 %v355
    %417 = vmatprep.subr.mxu0 %v360
    %418 = vmatpush1.msra.mxu0 %v359
    %419 = vmatprep.subr.mxu0 %v364
    %420 = vmatpush1.msra.mxu0 %v363
    %421 = vmatprep.subr.mxu0 %v368
    %422 = vmatpush1.msra.mxu0 %v367
    %423 = vmatprep.subr.mxu0 %v372
    %424 = vmatpush1.msra.mxu0 %v371
    %425 = vmatprep.subr.mxu0 %v376
    %426 = vmatpush1.msra.mxu0 %v375
    %427 = vmatprep.subr.mxu0 %v380
    %428 = vmatpush1.msra.mxu0 %v379
    %429 = vmatprep.subr.mxu0 %v384
    %430 = vmatpush1.msra.mxu0 %v383
    %431 = vmatprep.subr.mxu0 %v388
    %432 = vmatpush1.msra.mxu0 %v387
    %433 = vmatprep.subr.mxu0 %v392
    %434 = vmatpush1.msra.mxu0 %v391
    %435 = vmatprep.subr.mxu0 %v396
    %436 = vmatpush1.msra.mxu0 %v395
    %437 = vmatprep.subr.mxu0 %v400
    %438 = vmatpush1.msra.mxu0 %v399
    %439 = vmatprep.subr.mxu0 %v404
    %440 = vmatpush1.msra.mxu0 %v403
    %441 = vmatprep.subr.mxu0 %v408
    %442 = vmatpush1.msra.mxu0 %v407
    %443 = vmatprep.subr.mxu0 0.0
    %444 = vmatpush1.msra.mxu0 0.0
    %445 = vmatprep.subr.mxu0 0.0
    %446 = vmatpush1.msra.mxu0 0.0
    %447 = vmatprep.subr.mxu0 0.0
    %448 = vmatpush1.msra.mxu0 0.0
    %449 = vmatprep.subr.mxu0 0.0
    %450 = vmatpush1.msra.mxu0 0.0
    %451 = vmatprep.subr.mxu0 0.0
    %452 = vmatpush1.msra.mxu0 0.0
    %453 = vmatprep.subr.mxu0 0.0
    %454 = vmatpush1.msra.mxu0 0.0
    %455 = vmatprep.subr.mxu0 0.0
    %456 = vmatpush1.msra.mxu0 0.0
    %457 = vmatprep.subr.mxu0 0.0
    %458 = vmatpush1.msra.mxu0 0.0
    %459 = vmatprep.subr.mxu0 0.0
    %460 = vmatpush1.msra.mxu0 0.0
    %461 = vmatprep.subr.mxu0 0.0
    %462 = vmatpush1.msra.mxu0 0.0
    %463 = vmatprep.subr.mxu0 0.0
    %464 = vmatpush1.msra.mxu0 0.0
    %465 = vmatprep.subr.mxu0 0.0
    %466 = vmatpush1.msra.mxu0 0.0
    %467 = vmatprep.subr.mxu0 0.0
    %468 = vmatpush1.msra.mxu0 0.0
    %469 = vmatprep.subr.mxu0 0.0
    %470 = vmatpush1.msra.mxu0 0.0
    %471 = vmatprep.subr.mxu0 0.0
    %472 = vmatpush1.msra.mxu0 0.0
    %473 = vmatprep.subr.mxu0 0.0
    %474 = vmatpush1.msra.mxu0 0.0
    %475 = vmatprep.mubr.f32.mxu0 0.0
    %476 = vmatmul.mubr.f32.gmra.mrb[0].mxu0 %v346
    %v477 = vpop.f32.mrb[0].mxu0
    %v478 = vadd.f32 0.0, %v477
    %v479 = vpop.f32.mrb[0].mxu0
    %v480 = vadd.f32 0.0, %v479
    %481 = vdwg.mxu0
    %482 = vmatprep.subr.mxu0 %v350
    %483 = vmatpush1.msra.mxu0 %v349
    %484 = vmatprep.subr.mxu0 %v354
    %485 = vmatpush1.msra.mxu0 %v353
    %486 = vmatprep.subr.mxu0 %v358
    %487 = vmatpush1.msra.mxu0 %v357
    %488 = vmatprep.subr.mxu0 %v362
    %489 = vmatpush1.msra.mxu0 %v361
    %490 = vmatprep.subr.mxu0 %v366
    %491 = vmatpush1.msra.mxu0 %v365
    %492 = vmatprep.subr.mxu0 %v370
    %493 = vmatpush1.msra.mxu0 %v369
    %494 = vmatprep.subr.mxu0 %v374
    %495 = vmatpush1.msra.mxu0 %v373
    %496 = vmatprep.subr.mxu0 %v378
    %497 = vmatpush1.msra.mxu0 %v377
    %498 = vmatprep.subr.mxu0 %v382
    %499 = vmatpush1.msra.mxu0 %v381
    %500 = vmatprep.subr.mxu0 %v386
    %501 = vmatpush1.msra.mxu0 %v385
    %502 = vmatprep.subr.mxu0 %v390
    %503 = vmatpush1.msra.mxu0 %v389
    %504 = vmatprep.subr.mxu0 %v394
    %505 = vmatpush1.msra.mxu0 %v393
    %506 = vmatprep.subr.mxu0 %v398
    %507 = vmatpush1.msra.mxu0 %v397
    %508 = vmatprep.subr.mxu0 %v402
    %509 = vmatpush1.msra.mxu0 %v401
    %510 = vmatprep.subr.mxu0 %v406
    %511 = vmatpush1.msra.mxu0 %v405
    %512 = vmatprep.subr.mxu0 %v410
    %513 = vmatpush1.msra.mxu0 %v409
    %514 = vmatprep.subr.mxu0 0.0
    %515 = vmatpush1.msra.mxu0 0.0
    %516 = vmatprep.subr.mxu0 0.0
    %517 = vmatpush1.msra.mxu0 0.0
    %518 = vmatprep.subr.mxu0 0.0
    %519 = vmatpush1.msra.mxu0 0.0
    %520 = vmatprep.subr.mxu0 0.0
    %521 = vmatpush1.msra.mxu0 0.0
    %522 = vmatprep.subr.mxu0 0.0
    %523 = vmatpush1.msra.mxu0 0.0
    %524 = vmatprep.subr.mxu0 0.0
    %525 = vmatpush1.msra.mxu0 0.0
    %526 = vmatprep.subr.mxu0 0.0
    %527 = vmatpush1.msra.mxu0 0.0
    %528 = vmatprep.subr.mxu0 0.0
    %529 = vmatpush1.msra.mxu0 0.0
    %530 = vmatprep.subr.mxu0 0.0
    %531 = vmatpush1.msra.mxu0 0.0
    %532 = vmatprep.subr.mxu0 0.0
    %533 = vmatpush1.msra.mxu0 0.0
    %534 = vmatprep.subr.mxu0 0.0
    %535 = vmatpush1.msra.mxu0 0.0
    %536 = vmatprep.subr.mxu0 0.0
    %537 = vmatpush1.msra.mxu0 0.0
    %538 = vmatprep.subr.mxu0 0.0
    %539 = vmatpush1.msra.mxu0 0.0
    %540 = vmatprep.subr.mxu0 0.0
    %541 = vmatpush1.msra.mxu0 0.0
    %542 = vmatprep.subr.mxu0 0.0
    %543 = vmatpush1.msra.mxu0 0.0
    %544 = vmatprep.subr.mxu0 0.0
    %545 = vmatpush1.msra.mxu0 0.0
    %546 = vmatprep.mubr.f32.mxu0 0.0
    %547 = vmatmul.mubr.f32.gmra.mrb[0].mxu0 %v346
    %v548 = vpop.f32.mrb[0].mxu0
    %v549 = vadd.f32 0.0, %v548
    %v550 = vpop.f32.mrb[0].mxu0
    %v551 = vadd.f32 0.0, %v550
    %552 = vdwg.mxu0
    %v557 = vrot.slane %v478, 6
    %v558 = vrot.slane %v480, 6
    %v559 = vrot.slane %v549, 6
    %v560 = vrot.slane %v551, 6
    %v565 = vadd.f32 %v236, %v557
    %v566 = vadd.f32 %v238, %v558
    %v567 = vadd.f32 %v313, %v559
    %v568 = vadd.f32 %v315, %v560
    %v569 = vxor.u32 %v565, 2147483648
    %v570 = vmul.f32 %v569, 1.442695
    %v571 = vpow.pop %v570
    %v572 = vadd.f32 %v571, 1.0
    %v573 = vrcp.pop %v572
    %v574 = vmul.f32 1.0, %v573
    %v575 = vxor.u32 %v566, 2147483648
    %v576 = vmul.f32 %v575, 1.442695
    %v577 = vpow.pop %v576
    %v578 = vadd.f32 %v577, 1.0
    %v579 = vrcp.pop %v578
    %v580 = vmul.f32 1.0, %v579
    %v581 = vtanh.pop %v567
    %v582 = vxor.u32 %v568, 2147483648
    %v583 = vmul.f32 %v582, 1.442695
    %v584 = vpow.pop %v583
    %v585 = vadd.f32 %v584, 1.0
    %v586 = vrcp.pop %v585
    %v587 = vmul.f32 1.0, %v586
    %v589 = vrot.slane %v344, 6
    %v591 = vmul.f32 %v580, %v589
    %v592 = vmul.f32 %v574, %v581
    %v593 = vadd.f32 %v591, %v592
    %v594 = vtanh.pop %v593
    %v595 = vmul.f32 %v587, %v594
    %v597 = vrot.slane %v595, 2
    %599 = vmatprep.subr.mxu0 %v348
    %600 = vmatpush1.msra.mxu0 %v347
    %601 = vmatprep.subr.mxu0 %v352
    %602 = vmatpush1.msra.mxu0 %v351
    %603 = vmatprep.subr.mxu0 %v356
    %604 = vmatpush1.msra.mxu0 %v355
    %605 = vmatprep.subr.mxu0 %v360
    %606 = vmatpush1.msra.mxu0 %v359
    %607 = vmatprep.subr.mxu0 %v364
    %608 = vmatpush1.msra.mxu0 %v363
    %609 = vmatprep.subr.mxu0 %v368
    %610 = vmatpush1.msra.mxu0 %v367
    %611 = vmatprep.subr.mxu0 %v372
    %612 = vmatpush1.msra.mxu0 %v371
    %613 = vmatprep.subr.mxu0 %v376
    %614 = vmatpush1.msra.mxu0 %v375
    %615 = vmatprep.subr.mxu0 %v380
    %616 = vmatpush1.msra.mxu0 %v379
    %617 = vmatprep.subr.mxu0 %v384
    %618 = vmatpush1.msra.mxu0 %v383
    %619 = vmatprep.subr.mxu0 %v388
    %620 = vmatpush1.msra.mxu0 %v387
    %621 = vmatprep.subr.mxu0 %v392
    %622 = vmatpush1.msra.mxu0 %v391
    %623 = vmatprep.subr.mxu0 %v396
    %624 = vmatpush1.msra.mxu0 %v395
    %625 = vmatprep.subr.mxu0 %v400
    %626 = vmatpush1.msra.mxu0 %v399
    %627 = vmatprep.subr.mxu0 %v404
    %628 = vmatpush1.msra.mxu0 %v403
    %629 = vmatprep.subr.mxu0 %v408
    %630 = vmatpush1.msra.mxu0 %v407
    %631 = vmatprep.subr.mxu0 0.0
    %632 = vmatpush1.msra.mxu0 0.0
    %633 = vmatprep.subr.mxu0 0.0
    %634 = vmatpush1.msra.mxu0 0.0
    %635 = vmatprep.subr.mxu0 0.0
    %636 = vmatpush1.msra.mxu0 0.0
    %637 = vmatprep.subr.mxu0 0.0
    %638 = vmatpush1.msra.mxu0 0.0
    %639 = vmatprep.subr.mxu0 0.0
    %640 = vmatpush1.msra.mxu0 0.0
    %641 = vmatprep.subr.mxu0 0.0
    %642 = vmatpush1.msra.mxu0 0.0
    %643 = vmatprep.subr.mxu0 0.0
    %644 = vmatpush1.msra.mxu0 0.0
    %645 = vmatprep.subr.mxu0 0.0
    %646 = vmatpush1.msra.mxu0 0.0
    %647 = vmatprep.subr.mxu0 0.0
    %648 = vmatpush1.msra.mxu0 0.0
    %649 = vmatprep.subr.mxu0 0.0
    %650 = vmatpush1.msra.mxu0 0.0
    %651 = vmatprep.subr.mxu0 0.0
    %652 = vmatpush1.msra.mxu0 0.0
    %653 = vmatprep.subr.mxu0 0.0
    %654 = vmatpush1.msra.mxu0 0.0
    %655 = vmatprep.subr.mxu0 0.0
    %656 = vmatpush1.msra.mxu0 0.0
    %657 = vmatprep.subr.mxu0 0.0
    %658 = vmatpush1.msra.mxu0 0.0
    %659 = vmatprep.subr.mxu0 0.0
    %660 = vmatpush1.msra.mxu0 0.0
    %661 = vmatprep.subr.mxu0 0.0
    %662 = vmatpush1.msra.mxu0 0.0
    %663 = vmatprep.mubr.f32.mxu0 0.0
    %664 = vmatmul.mubr.f32.gmra.mrb[0].mxu0 %v597
    %v665 = vpop.f32.mrb[0].mxu0
    %v666 = vadd.f32 0.0, %v665
    %v667 = vpop.f32.mrb[0].mxu0
    %v668 = vadd.f32 0.0, %v667
    %669 = vdwg.mxu0
    %670 = vmatprep.subr.mxu0 %v350
    %671 = vmatpush1.msra.mxu0 %v349
    %672 = vmatprep.subr.mxu0 %v354
    %673 = vmatpush1.msra.mxu0 %v353
    %674 = vmatprep.subr.mxu0 %v358
    %675 = vmatpush1.msra.mxu0 %v357
    %676 = vmatprep.subr.mxu0 %v362
    %677 = vmatpush1.msra.mxu0 %v361
    %678 = vmatprep.subr.mxu0 %v366
    %679 = vmatpush1.msra.mxu0 %v365
    %680 = vmatprep.subr.mxu0 %v370
    %681 = vmatpush1.msra.mxu0 %v369
    %682 = vmatprep.subr.mxu0 %v374
    %683 = vmatpush1.msra.mxu0 %v373
    %684 = vmatprep.subr.mxu0 %v378
    %685 = vmatpush1.msra.mxu0 %v377
    %686 = vmatprep.subr.mxu0 %v382
    %687 = vmatpush1.msra.mxu0 %v381
    %688 = vmatprep.subr.mxu0 %v386
    %689 = vmatpush1.msra.mxu0 %v385
    %690 = vmatprep.subr.mxu0 %v390
    %691 = vmatpush1.msra.mxu0 %v389
    %692 = vmatprep.subr.mxu0 %v394
    %693 = vmatpush1.msra.mxu0 %v393
    %694 = vmatprep.subr.mxu0 %v398
    %695 = vmatpush1.msra.mxu0 %v397
    %696 = vmatprep.subr.mxu0 %v402
    %697 = vmatpush1.msra.mxu0 %v401
    %698 = vmatprep.subr.mxu0 %v406
    %699 = vmatpush1.msra.mxu0 %v405
    %700 = vmatprep.subr.mxu0 %v410
    %701 = vmatpush1.msra.mxu0 %v409
    %702 = vmatprep.subr.mxu0 0.0
    %703 = vmatpush1.msra.mxu0 0.0
    %704 = vmatprep.subr.mxu0 0.0
    %705 = vmatpush1.msra.mxu0 0.0
    %706 = vmatprep.subr.mxu0 0.0
    %707 = vmatpush1.msra.mxu0 0.0
    %708 = vmatprep.subr.mxu0 0.0
    %709 = vmatpush1.msra.mxu0 0.0
    %710 = vmatprep.subr.mxu0 0.0
    %711 = vmatpush1.msra.mxu0 0.0
    %712 = vmatprep.subr.mxu0 0.0
    %713 = vmatpush1.msra.mxu0 0.0
    %714 = vmatprep.subr.mxu0 0.0
    %715 = vmatpush1.msra.mxu0 0.0
    %716 = vmatprep.subr.mxu0 0.0
    %717 = vmatpush1.msra.mxu0 0.0
    %718 = vmatprep.subr.mxu0 0.0
    %719 = vmatpush1.msra.mxu0 0.0
    %720 = vmatprep.subr.mxu0 0.0
    %721 = vmatpush1.msra.mxu0 0.0
    %722 = vmatprep.subr.mxu0 0.0
    %723 = vmatpush1.msra.mxu0 0.0
    %724 = vmatprep.subr.mxu0 0.0
    %725 = vmatpush1.msra.mxu0 0.0
    %726 = vmatprep.subr.mxu0 0.0
    %727 = vmatpush1.msra.mxu0 0.0
    %728 = vmatprep.subr.mxu0 0.0
    %729 = vmatpush1.msra.mxu0 0.0
    %730 = vmatprep.subr.mxu0 0.0
    %731 = vmatpush1.msra.mxu0 0.0
    %732 = vmatprep.subr.mxu0 0.0
    %733 = vmatpush1.msra.mxu0 0.0
    %734 = vmatprep.mubr.f32.mxu0 0.0
    %735 = vmatmul.mubr.f32.gmra.mrb[0].mxu0 %v597
    %v736 = vpop.f32.mrb[0].mxu0
    %v737 = vadd.f32 0.0, %v736
    %v738 = vpop.f32.mrb[0].mxu0
    %v739 = vadd.f32 0.0, %v738
    %740 = vdwg.mxu0
    %v745 = vrot.slane %v666, 4
    %v746 = vrot.slane %v668, 4
    %v747 = vrot.slane %v737, 4
    %v748 = vrot.slane %v739, 4
    %v753 = vadd.f32 %v236, %v745
    %v754 = vadd.f32 %v238, %v746
    %v755 = vadd.f32 %v313, %v747
    %v756 = vadd.f32 %v315, %v748
    %v757 = vxor.u32 %v753, 2147483648
    %v758 = vmul.f32 %v757, 1.442695
    %v759 = vpow.pop %v758
    %v760 = vadd.f32 %v759, 1.0
    %v761 = vrcp.pop %v760
    %v762 = vmul.f32 1.0, %v761
    %v763 = vxor.u32 %v754, 2147483648
    %v764 = vmul.f32 %v763, 1.442695
    %v765 = vpow.pop %v764
    %v766 = vadd.f32 %v765, 1.0
    %v767 = vrcp.pop %v766
    %v768 = vmul.f32 1.0, %v767
    %v769 = vtanh.pop %v755
    %v770 = vxor.u32 %v756, 2147483648
    %v771 = vmul.f32 %v770, 1.442695
    %v772 = vpow.pop %v771
    %v773 = vadd.f32 %v772, 1.0
    %v774 = vrcp.pop %v773
    %v775 = vmul.f32 1.0, %v774
    %v777 = vrot.slane %v593, 6
    %v779 = vmul.f32 %v768, %v777
    %v780 = vmul.f32 %v762, %v769
    %v781 = vadd.f32 %v779, %v780
    %v782 = vtanh.pop %v781
    %v783 = vmul.f32 %v775, %v782
    %v785 = vrot.slane %v783, 4
    %787 = vmatprep.subr.mxu0 %v348
    %788 = vmatpush1.msra.mxu0 %v347
    %789 = vmatprep.subr.mxu0 %v352
    %790 = vmatpush1.msra.mxu0 %v351
    %791 = vmatprep.subr.mxu0 %v356
    %792 = vmatpush1.msra.mxu0 %v355
    %793 = vmatprep.subr.mxu0 %v360
    %794 = vmatpush1.msra.mxu0 %v359
    %795 = vmatprep.subr.mxu0 %v364
    %796 = vmatpush1.msra.mxu0 %v363
    %797 = vmatprep.subr.mxu0 %v368
    %798 = vmatpush1.msra.mxu0 %v367
    %799 = vmatprep.subr.mxu0 %v372
    %800 = vmatpush1.msra.mxu0 %v371
    %801 = vmatprep.subr.mxu0 %v376
    %802 = vmatpush1.msra.mxu0 %v375
    %803 = vmatprep.subr.mxu0 %v380
    %804 = vmatpush1.msra.mxu0 %v379
    %805 = vmatprep.subr.mxu0 %v384
    %806 = vmatpush1.msra.mxu0 %v383
    %807 = vmatprep.subr.mxu0 %v388
    %808 = vmatpush1.msra.mxu0 %v387
    %809 = vmatprep.subr.mxu0 %v392
    %810 = vmatpush1.msra.mxu0 %v391
    %811 = vmatprep.subr.mxu0 %v396
    %812 = vmatpush1.msra.mxu0 %v395
    %813 = vmatprep.subr.mxu0 %v400
    %814 = vmatpush1.msra.mxu0 %v399
    %815 = vmatprep.subr.mxu0 %v404
    %816 = vmatpush1.msra.mxu0 %v403
    %817 = vmatprep.subr.mxu0 %v408
    %818 = vmatpush1.msra.mxu0 %v407
    %819 = vmatprep.subr.mxu0 0.0
    %820 = vmatpush1.msra.mxu0 0.0
    %821 = vmatprep.subr.mxu0 0.0
    %822 = vmatpush1.msra.mxu0 0.0
    %823 = vmatprep.subr.mxu0 0.0
    %824 = vmatpush1.msra.mxu0 0.0
    %825 = vmatprep.subr.mxu0 0.0
    %826 = vmatpush1.msra.mxu0 0.0
    %827 = vmatprep.subr.mxu0 0.0
    %828 = vmatpush1.msra.mxu0 0.0
    %829 = vmatprep.subr.mxu0 0.0
    %830 = vmatpush1.msra.mxu0 0.0
    %831 = vmatprep.subr.mxu0 0.0
    %832 = vmatpush1.msra.mxu0 0.0
    %833 = vmatprep.subr.mxu0 0.0
    %834 = vmatpush1.msra.mxu0 0.0
    %835 = vmatprep.subr.mxu0 0.0
    %836 = vmatpush1.msra.mxu0 0.0
    %837 = vmatprep.subr.mxu0 0.0
    %838 = vmatpush1.msra.mxu0 0.0
    %839 = vmatprep.subr.mxu0 0.0
    %840 = vmatpush1.msra.mxu0 0.0
    %841 = vmatprep.subr.mxu0 0.0
    %842 = vmatpush1.msra.mxu0 0.0
    %843 = vmatprep.subr.mxu0 0.0
    %844 = vmatpush1.msra.mxu0 0.0
    %845 = vmatprep.subr.mxu0 0.0
    %846 = vmatpush1.msra.mxu0 0.0
    %847 = vmatprep.subr.mxu0 0.0
    %848 = vmatpush1.msra.mxu0 0.0
    %849 = vmatprep.subr.mxu0 0.0
    %850 = vmatpush1.msra.mxu0 0.0
    %851 = vmatprep.mubr.f32.mxu0 0.0
    %852 = vmatmul.mubr.f32.gmra.mrb[0].mxu0 %v785
    %v853 = vpop.f32.mrb[0].mxu0
    %v854 = vadd.f32 0.0, %v853
    %v855 = vpop.f32.mrb[0].mxu0
    %v856 = vadd.f32 0.0, %v855
    %857 = vdwg.mxu0
    %858 = vmatprep.subr.mxu0 %v350
    %859 = vmatpush1.msra.mxu0 %v349
    %860 = vmatprep.subr.mxu0 %v354
    %861 = vmatpush1.msra.mxu0 %v353
    %862 = vmatprep.subr.mxu0 %v358
    %863 = vmatpush1.msra.mxu0 %v357
    %864 = vmatprep.subr.mxu0 %v362
    %865 = vmatpush1.msra.mxu0 %v361
    %866 = vmatprep.subr.mxu0 %v366
    %867 = vmatpush1.msra.mxu0 %v365
    %868 = vmatprep.subr.mxu0 %v370
    %869 = vmatpush1.msra.mxu0 %v369
    %870 = vmatprep.subr.mxu0 %v374
    %871 = vmatpush1.msra.mxu0 %v373
    %872 = vmatprep.subr.mxu0 %v378
    %873 = vmatpush1.msra.mxu0 %v377
    %874 = vmatprep.subr.mxu0 %v382
    %875 = vmatpush1.msra.mxu0 %v381
    %876 = vmatprep.subr.mxu0 %v386
    %877 = vmatpush1.msra.mxu0 %v385
    %878 = vmatprep.subr.mxu0 %v390
    %879 = vmatpush1.msra.mxu0 %v389
    %880 = vmatprep.subr.mxu0 %v394
    %881 = vmatpush1.msra.mxu0 %v393
    %882 = vmatprep.subr.mxu0 %v398
    %883 = vmatpush1.msra.mxu0 %v397
    %884 = vmatprep.subr.mxu0 %v402
    %885 = vmatpush1.msra.mxu0 %v401
    %886 = vmatprep.subr.mxu0 %v406
    %887 = vmatpush1.msra.mxu0 %v405
    %888 = vmatprep.subr.mxu0 %v410
    %889 = vmatpush1.msra.mxu0 %v409
    %890 = vmatprep.subr.mxu0 0.0
    %891 = vmatpush1.msra.mxu0 0.0
    %892 = vmatprep.subr.mxu0 0.0
    %893 = vmatpush1.msra.mxu0 0.0
    %894 = vmatprep.subr.mxu0 0.0
    %895 = vmatpush1.msra.mxu0 0.0
    %896 = vmatprep.subr.mxu0 0.0
    %897 = vmatpush1.msra.mxu0 0.0
    %898 = vmatprep.subr.mxu0 0.0
    %899 = vmatpush1.msra.mxu0 0.0
    %900 = vmatprep.subr.mxu0 0.0
    %901 = vmatpush1.msra.mxu0 0.0
    %902 = vmatprep.subr.mxu0 0.0
    %903 = vmatpush1.msra.mxu0 0.0
    %904 = vmatprep.subr.mxu0 0.0
    %905 = vmatpush1.msra.mxu0 0.0
    %906 = vmatprep.subr.mxu0 0.0
    %907 = vmatpush1.msra.mxu0 0.0
    %908 = vmatprep.subr.mxu0 0.0
    %909 = vmatpush1.msra.mxu0 0.0
    %910 = vmatprep.subr.mxu0 0.0
    %911 = vmatpush1.msra.mxu0 0.0
    %912 = vmatprep.subr.mxu0 0.0
    %913 = vmatpush1.msra.mxu0 0.0
    %914 = vmatprep.subr.mxu0 0.0
    %915 = vmatpush1.msra.mxu0 0.0
    %916 = vmatprep.subr.mxu0 0.0
    %917 = vmatpush1.msra.mxu0 0.0
    %918 = vmatprep.subr.mxu0 0.0
    %919 = vmatpush1.msra.mxu0 0.0
    %920 = vmatprep.subr.mxu0 0.0
    %921 = vmatpush1.msra.mxu0 0.0
    %922 = vmatprep.mubr.f32.mxu0 0.0
    %923 = vmatmul.mubr.f32.gmra.mrb[0].mxu0 %v785
    %v924 = vpop.f32.mrb[0].mxu0
    %v925 = vadd.f32 0.0, %v924
    %v926 = vpop.f32.mrb[0].mxu0
    %v927 = vadd.f32 0.0, %v926
    %928 = vdwg.mxu0
    %v933 = vrot.slane %v854, 2
    %v934 = vrot.slane %v856, 2
    %v935 = vrot.slane %v925, 2
    %v936 = vrot.slane %v927, 2
    %v941 = vadd.f32 %v236, %v933
    %v942 = vadd.f32 %v238, %v934
    %v943 = vadd.f32 %v313, %v935
    %v944 = vadd.f32 %v315, %v936
    %v945 = vxor.u32 %v941, 2147483648
    %v946 = vmul.f32 %v945, 1.442695
    %v947 = vpow.pop %v946
    %v948 = vadd.f32 %v947, 1.0
    %v949 = vrcp.pop %v948
    %v950 = vmul.f32 1.0, %v949
    %v951 = vxor.u32 %v942, 2147483648
    %v952 = vmul.f32 %v951, 1.442695
    %v953 = vpow.pop %v952
    %v954 = vadd.f32 %v953, 1.0
    %v955 = vrcp.pop %v954
    %v956 = vmul.f32 1.0, %v955
    %v957 = vtanh.pop %v943
    %v958 = vxor.u32 %v944, 2147483648
    %v959 = vmul.f32 %v958, 1.442695
    %v960 = vpow.pop %v959
    %v961 = vadd.f32 %v960, 1.0
    %v962 = vrcp.pop %v961
    %v963 = vmul.f32 1.0, %v962
    %v965 = vrot.slane %v781, 6
    %v967 = vmul.f32 %v956, %v965
    %v968 = vmul.f32 %v950, %v957
    %v969 = vadd.f32 %v967, %v968
    %v970 = vtanh.pop %v969
    %v971 = vmul.f32 %v963, %v970
    %v973 = vrot.slane %v971, 6
    %975 = vmatprep.subr.mxu0 %v348
    %976 = vmatpush1.msra.mxu0 %v347
    %977 = vmatprep.subr.mxu0 %v352
    %978 = vmatpush1.msra.mxu0 %v351
    %979 = vmatprep.subr.mxu0 %v356
    %980 = vmatpush1.msra.mxu0 %v355
    %981 = vmatprep.subr.mxu0 %v360
    %982 = vmatpush1.msra.mxu0 %v359
    %983 = vmatprep.subr.mxu0 %v364
    %984 = vmatpush1.msra.mxu0 %v363
    %985 = vmatprep.subr.mxu0 %v368
    %986 = vmatpush1.msra.mxu0 %v367
    %987 = vmatprep.subr.mxu0 %v372
    %988 = vmatpush1.msra.mxu0 %v371
    %989 = vmatprep.subr.mxu0 %v376
    %990 = vmatpush1.msra.mxu0 %v375
    %991 = vmatprep.subr.mxu0 %v380
    %992 = vmatpush1.msra.mxu0 %v379
    %993 = vmatprep.subr.mxu0 %v384
    %994 = vmatpush1.msra.mxu0 %v383
    %995 = vmatprep.subr.mxu0 %v388
    %996 = vmatpush1.msra.mxu0 %v387
    %997 = vmatprep.subr.mxu0 %v392
    %998 = vmatpush1.msra.mxu0 %v391
    %999 = vmatprep.subr.mxu0 %v396
    %1000 = vmatpush1.msra.mxu0 %v395
    %1001 = vmatprep.subr.mxu0 %v400
    %1002 = vmatpush1.msra.mxu0 %v399
    %1003 = vmatprep.subr.mxu0 %v404
    %1004 = vmatpush1.msra.mxu0 %v403
    %1005 = vmatprep.subr.mxu0 %v408
    %1006 = vmatpush1.msra.mxu0 %v407
    %1007 = vmatprep.subr.mxu0 0.0
    %1008 = vmatpush1.msra.mxu0 0.0
    %1009 = vmatprep.subr.mxu0 0.0
    %1010 = vmatpush1.msra.mxu0 0.0
    %1011 = vmatprep.subr.mxu0 0.0
    %1012 = vmatpush1.msra.mxu0 0.0
    %1013 = vmatprep.subr.mxu0 0.0
    %1014 = vmatpush1.msra.mxu0 0.0
    %1015 = vmatprep.subr.mxu0 0.0
    %1016 = vmatpush1.msra.mxu0 0.0
    %1017 = vmatprep.subr.mxu0 0.0
    %1018 = vmatpush1.msra.mxu0 0.0
    %1019 = vmatprep.subr.mxu0 0.0
    %1020 = vmatpush1.msra.mxu0 0.0
    %1021 = vmatprep.subr.mxu0 0.0
    %1022 = vmatpush1.msra.mxu0 0.0
    %1023 = vmatprep.subr.mxu0 0.0
    %1024 = vmatpush1.msra.mxu0 0.0
    %1025 = vmatprep.subr.mxu0 0.0
    %1026 = vmatpush1.msra.mxu0 0.0
    %1027 = vmatprep.subr.mxu0 0.0
    %1028 = vmatpush1.msra.mxu0 0.0
    %1029 = vmatprep.subr.mxu0 0.0
    %1030 = vmatpush1.msra.mxu0 0.0
    %1031 = vmatprep.subr.mxu0 0.0
    %1032 = vmatpush1.msra.mxu0 0.0
    %1033 = vmatprep.subr.mxu0 0.0
    %1034 = vmatpush1.msra.mxu0 0.0
    %1035 = vmatprep.subr.mxu0 0.0
    %1036 = vmatpush1.msra.mxu0 0.0
    %1037 = vmatprep.subr.mxu0 0.0
    %1038 = vmatpush1.msra.mxu0 0.0
    %1039 = vmatprep.mubr.f32.mxu0 0.0
    %1040 = vmatmul.mubr.f32.gmra.mrb[0].mxu0 %v973
    %v1041 = vpop.f32.mrb[0].mxu0
    %v1042 = vadd.f32 0.0, %v1041
    %v1043 = vpop.f32.mrb[0].mxu0
    %v1044 = vadd.f32 0.0, %v1043
    %1045 = vdwg.mxu0
    %1046 = vmatprep.subr.mxu0 %v350
    %1047 = vmatpush1.msra.mxu0 %v349
    %1048 = vmatprep.subr.mxu0 %v354
    %1049 = vmatpush1.msra.mxu0 %v353
    %1050 = vmatprep.subr.mxu0 %v358
    %1051 = vmatpush1.msra.mxu0 %v357
    %1052 = vmatprep.subr.mxu0 %v362
    %1053 = vmatpush1.msra.mxu0 %v361
    %1054 = vmatprep.subr.mxu0 %v366
    %1055 = vmatpush1.msra.mxu0 %v365
    %1056 = vmatprep.subr.mxu0 %v370
    %1057 = vmatpush1.msra.mxu0 %v369
    %1058 = vmatprep.subr.mxu0 %v374
    %1059 = vmatpush1.msra.mxu0 %v373
    %1060 = vmatprep.subr.mxu0 %v378
    %1061 = vmatpush1.msra.mxu0 %v377
    %1062 = vmatprep.subr.mxu0 %v382
    %1063 = vmatpush1.msra.mxu0 %v381
    %1064 = vmatprep.subr.mxu0 %v386
    %1065 = vmatpush1.msra.mxu0 %v385
    %1066 = vmatprep.subr.mxu0 %v390
    %1067 = vmatpush1.msra.mxu0 %v389
    %1068 = vmatprep.subr.mxu0 %v394
    %1069 = vmatpush1.msra.mxu0 %v393
    %1070 = vmatprep.subr.mxu0 %v398
    %1071 = vmatpush1.msra.mxu0 %v397
    %1072 = vmatprep.subr.mxu0 %v402
    %1073 = vmatpush1.msra.mxu0 %v401
    %1074 = vmatprep.subr.mxu0 %v406
    %1075 = vmatpush1.msra.mxu0 %v405
    %1076 = vmatprep.subr.mxu0 %v410
    %1077 = vmatpush1.msra.mxu0 %v409
    %1078 = vmatprep.subr.mxu0 0.0
    %1079 = vmatpush1.msra.mxu0 0.0
    %1080 = vmatprep.subr.mxu0 0.0
    %1081 = vmatpush1.msra.mxu0 0.0
    %1082 = vmatprep.subr.mxu0 0.0
    %1083 = vmatpush1.msra.mxu0 0.0
    %1084 = vmatprep.subr.mxu0 0.0
    %1085 = vmatpush1.msra.mxu0 0.0
    %1086 = vmatprep.subr.mxu0 0.0
    %1087 = vmatpush1.msra.mxu0 0.0
    %1088 = vmatprep.subr.mxu0 0.0
    %1089 = vmatpush1.msra.mxu0 0.0
    %1090 = vmatprep.subr.mxu0 0.0
    %1091 = vmatpush1.msra.mxu0 0.0
    %1092 = vmatprep.subr.mxu0 0.0
    %1093 = vmatpush1.msra.mxu0 0.0
    %1094 = vmatprep.subr.mxu0 0.0
    %1095 = vmatpush1.msra.mxu0 0.0
    %1096 = vmatprep.subr.mxu0 0.0
    %1097 = vmatpush1.msra.mxu0 0.0
    %1098 = vmatprep.subr.mxu0 0.0
    %1099 = vmatpush1.msra.mxu0 0.0
    %1100 = vmatprep.subr.mxu0 0.0
    %1101 = vmatpush1.msra.mxu0 0.0
    %1102 = vmatprep.subr.mxu0 0.0
    %1103 = vmatpush1.msra.mxu0 0.0
    %1104 = vmatprep.subr.mxu0 0.0
    %1105 = vmatpush1.msra.mxu0 0.0
    %1106 = vmatprep.subr.mxu0 0.0
    %1107 = vmatpush1.msra.mxu0 0.0
    %1108 = vmatprep.subr.mxu0 0.0
    %1109 = vmatpush1.msra.mxu0 0.0
    %1110 = vmatprep.mubr.f32.mxu0 0.0
    %1111 = vmatmul.mubr.f32.gmra.mrb[0].mxu0 %v973
    %v1112 = vpop.f32.mrb[0].mxu0
    %v1113 = vadd.f32 0.0, %v1112
    %v1114 = vpop.f32.mrb[0].mxu0
    %v1115 = vadd.f32 0.0, %v1114
    %1116 = vdwg.mxu0
    %v1117 = vadd.f32 %v242, %v1042
    %v1118 = vadd.f32 %v244, %v1044
    %v1119 = vadd.f32 %v319, %v1113
    %v1120 = vadd.f32 %v321, %v1115
    %v1121 = vxor.u32 %v1117, 2147483648
    %v1122 = vmul.f32 %v1121, 1.442695
    %v1123 = vpow.pop %v1122
    %v1124 = vadd.f32 %v1123, 1.0
    %v1125 = vrcp.pop %v1124
    %v1126 = vmul.f32 1.0, %v1125
    %v1127 = vxor.u32 %v1118, 2147483648
    %v1128 = vmul.f32 %v1127, 1.442695
    %v1129 = vpow.pop %v1128
    %v1130 = vadd.f32 %v1129, 1.0
    %v1131 = vrcp.pop %v1130
    %v1132 = vmul.f32 1.0, %v1131
    %v1133 = vtanh.pop %v1119
    %v1134 = vxor.u32 %v1120, 2147483648
    %v1135 = vmul.f32 %v1134, 1.442695
    %v1136 = vpow.pop %v1135
    %v1137 = vadd.f32 %v1136, 1.0
    %v1138 = vrcp.pop %v1137
    %v1139 = vmul.f32 1.0, %v1138
    %v1141 = vrot.slane %v969, 6
    %v1143 = vmul.f32 %v1132, %v1141
    %v1144 = vmul.f32 %v1126, %v1133
    %v1145 = vadd.f32 %v1143, %v1144
    %v1146 = vtanh.pop %v1145
    %v1147 = vmul.f32 %v1139, %v1146
    %1148 = vmatprep.subr.mxu0 %v348
    %1149 = vmatpush1.msra.mxu0 %v347
    %1150 = vmatprep.subr.mxu0 %v352
    %1151 = vmatpush1.msra.mxu0 %v351
    %1152 = vmatprep.subr.mxu0 %v356
    %1153 = vmatpush1.msra.mxu0 %v355
    %1154 = vmatprep.subr.mxu0 %v360
    %1155 = vmatpush1.msra.mxu0 %v359
    %1156 = vmatprep.subr.mxu0 %v364
    %1157 = vmatpush1.msra.mxu0 %v363
    %1158 = vmatprep.subr.mxu0 %v368
    %1159 = vmatpush1.msra.mxu0 %v367
    %1160 = vmatprep.subr.mxu0 %v372
    %1161 = vmatpush1.msra.mxu0 %v371
    %1162 = vmatprep.subr.mxu0 %v376
    %1163 = vmatpush1.msra.mxu0 %v375
    %1164 = vmatprep.subr.mxu0 %v380
    %1165 = vmatpush1.msra.mxu0 %v379
    %1166 = vmatprep.subr.mxu0 %v384
    %1167 = vmatpush1.msra.mxu0 %v383
    %1168 = vmatprep.subr.mxu0 %v388
    %1169 = vmatpush1.msra.mxu0 %v387
    %1170 = vmatprep.subr.mxu0 %v392
    %1171 = vmatpush1.msra.mxu0 %v391
    %1172 = vmatprep.subr.mxu0 %v396
    %1173 = vmatpush1.msra.mxu0 %v395
    %1174 = vmatprep.subr.mxu0 %v400
    %1175 = vmatpush1.msra.mxu0 %v399
    %1176 = vmatprep.subr.mxu0 %v404
    %1177 = vmatpush1.msra.mxu0 %v403
    %1178 = vmatprep.subr.mxu0 %v408
    %1179 = vmatpush1.msra.mxu0 %v407
    %1180 = vmatprep.subr.mxu0 0.0
    %1181 = vmatpush1.msra.mxu0 0.0
    %1182 = vmatprep.subr.mxu0 0.0
    %1183 = vmatpush1.msra.mxu0 0.0
    %1184 = vmatprep.subr.mxu0 0.0
    %1185 = vmatpush1.msra.mxu0 0.0
    %1186 = vmatprep.subr.mxu0 0.0
    %1187 = vmatpush1.msra.mxu0 0.0
    %1188 = vmatprep.subr.mxu0 0.0
    %1189 = vmatpush1.msra.mxu0 0.0
    %1190 = vmatprep.subr.mxu0 0.0
    %1191 = vmatpush1.msra.mxu0 0.0
    %1192 = vmatprep.subr.mxu0 0.0
    %1193 = vmatpush1.msra.mxu0 0.0
    %1194 = vmatprep.subr.mxu0 0.0
    %1195 = vmatpush1.msra.mxu0 0.0
    %1196 = vmatprep.subr.mxu0 0.0
    %1197 = vmatpush1.msra.mxu0 0.0
    %1198 = vmatprep.subr.mxu0 0.0
    %1199 = vmatpush1.msra.mxu0 0.0
    %1200 = vmatprep.subr.mxu0 0.0
    %1201 = vmatpush1.msra.mxu0 0.0
    %1202 = vmatprep.subr.mxu0 0.0
    %1203 = vmatpush1.msra.mxu0 0.0
    %1204 = vmatprep.subr.mxu0 0.0
    %1205 = vmatpush1.msra.mxu0 0.0
    %1206 = vmatprep.subr.mxu0 0.0
    %1207 = vmatpush1.msra.mxu0 0.0
    %1208 = vmatprep.subr.mxu0 0.0
    %1209 = vmatpush1.msra.mxu0 0.0
    %1210 = vmatprep.subr.mxu0 0.0
    %1211 = vmatpush1.msra.mxu0 0.0
    %1212 = vmatprep.mubr.f32.mxu0 0.0
    %1213 = vmatmul.mubr.f32.gmra.mrb[0].mxu0 %v1147
    %v1214 = vpop.f32.mrb[0].mxu0
    %v1215 = vadd.f32 0.0, %v1214
    %v1216 = vpop.f32.mrb[0].mxu0
    %v1217 = vadd.f32 0.0, %v1216
    %1218 = vdwg.mxu0
    %1219 = vmatprep.subr.mxu0 %v350
    %1220 = vmatpush1.msra.mxu0 %v349
    %1221 = vmatprep.subr.mxu0 %v354
    %1222 = vmatpush1.msra.mxu0 %v353
    %1223 = vmatprep.subr.mxu0 %v358
    %1224 = vmatpush1.msra.mxu0 %v357
    %1225 = vmatprep.subr.mxu0 %v362
    %1226 = vmatpush1.msra.mxu0 %v361
    %1227 = vmatprep.subr.mxu0 %v366
    %1228 = vmatpush1.msra.mxu0 %v365
    %1229 = vmatprep.subr.mxu0 %v370
    %1230 = vmatpush1.msra.mxu0 %v369
    %1231 = vmatprep.subr.mxu0 %v374
    %1232 = vmatpush1.msra.mxu0 %v373
    %1233 = vmatprep.subr.mxu0 %v378
    %1234 = vmatpush1.msra.mxu0 %v377
    %1235 = vmatprep.subr.mxu0 %v382
    %1236 = vmatpush1.msra.mxu0 %v381
    %1237 = vmatprep.subr.mxu0 %v386
    %1238 = vmatpush1.msra.mxu0 %v385
    %1239 = vmatprep.subr.mxu0 %v390
    %1240 = vmatpush1.msra.mxu0 %v389
    %1241 = vmatprep.subr.mxu0 %v394
    %1242 = vmatpush1.msra.mxu0 %v393
    %1243 = vmatprep.subr.mxu0 %v398
    %1244 = vmatpush1.msra.mxu0 %v397
    %1245 = vmatprep.subr.mxu0 %v402
    %1246 = vmatpush1.msra.mxu0 %v401
    %1247 = vmatprep.subr.mxu0 %v406
    %1248 = vmatpush1.msra.mxu0 %v405
    %1249 = vmatprep.subr.mxu0 %v410
    %1250 = vmatpush1.msra.mxu0 %v409
    %1251 = vmatprep.subr.mxu0 0.0
    %1252 = vmatpush1.msra.mxu0 0.0
    %1253 = vmatprep.subr.mxu0 0.0
    %1254 = vmatpush1.msra.mxu0 0.0
    %1255 = vmatprep.subr.mxu0 0.0
    %1256 = vmatpush1.msra.mxu0 0.0
    %1257 = vmatprep.subr.mxu0 0.0
    %1258 = vmatpush1.msra.mxu0 0.0
    %1259 = vmatprep.subr.mxu0 0.0
    %1260 = vmatpush1.msra.mxu0 0.0
    %1261 = vmatprep.subr.mxu0 0.0
    %1262 = vmatpush1.msra.mxu0 0.0
    %1263 = vmatprep.subr.mxu0 0.0
    %1264 = vmatpush1.msra.mxu0 0.0
    %1265 = vmatprep.subr.mxu0 0.0
    %1266 = vmatpush1.msra.mxu0 0.0
    %1267 = vmatprep.subr.mxu0 0.0
    %1268 = vmatpush1.msra.mxu0 0.0
    %1269 = vmatprep.subr.mxu0 0.0
    %1270 = vmatpush1.msra.mxu0 0.0
    %1271 = vmatprep.subr.mxu0 0.0
    %1272 = vmatpush1.msra.mxu0 0.0
    %1273 = vmatprep.subr.mxu0 0.0
    %1274 = vmatpush1.msra.mxu0 0.0
    %1275 = vmatprep.subr.mxu0 0.0
    %1276 = vmatpush1.msra.mxu0 0.0
    %1277 = vmatprep.subr.mxu0 0.0
    %1278 = vmatpush1.msra.mxu0 0.0
    %1279 = vmatprep.subr.mxu0 0.0
    %1280 = vmatpush1.msra.mxu0 0.0
    %1281 = vmatprep.subr.mxu0 0.0
    %1282 = vmatpush1.msra.mxu0 0.0
    %1283 = vmatprep.mubr.f32.mxu0 0.0
    %1284 = vmatmul.mubr.f32.gmra.mrb[0].mxu0 %v1147
    %v1285 = vpop.f32.mrb[0].mxu0
    %v1286 = vadd.f32 0.0, %v1285
    %v1287 = vpop.f32.mrb[0].mxu0
    %v1288 = vadd.f32 0.0, %v1287
    %1289 = vdwg.mxu0
    %v1294 = vrot.slane %v1215, 6
    %v1295 = vrot.slane %v1217, 6
    %v1296 = vrot.slane %v1286, 6
    %v1297 = vrot.slane %v1288, 6
    %v1302 = vadd.f32 %v242, %v1294
    %v1303 = vadd.f32 %v244, %v1295
    %v1304 = vadd.f32 %v319, %v1296
    %v1305 = vadd.f32 %v321, %v1297
    %v1306 = vxor.u32 %v1302, 2147483648
    %v1307 = vmul.f32 %v1306, 1.442695
    %v1308 = vpow.pop %v1307
    %v1309 = vadd.f32 %v1308, 1.0
    %v1310 = vrcp.pop %v1309
    %v1311 = vmul.f32 1.0, %v1310
    %v1312 = vxor.u32 %v1303, 2147483648
    %v1313 = vmul.f32 %v1312, 1.442695
    %v1314 = vpow.pop %v1313
    %v1315 = vadd.f32 %v1314, 1.0
    %v1316 = vrcp.pop %v1315
    %v1317 = vmul.f32 1.0, %v1316
    %v1318 = vtanh.pop %v1304
    %v1319 = vxor.u32 %v1305, 2147483648
    %v1320 = vmul.f32 %v1319, 1.442695
    %v1321 = vpow.pop %v1320
    %v1322 = vadd.f32 %v1321, 1.0
    %v1323 = vrcp.pop %v1322
    %v1324 = vmul.f32 1.0, %v1323
    %v1326 = vrot.slane %v1145, 6
    %v1328 = vmul.f32 %v1317, %v1326
    %v1329 = vmul.f32 %v1311, %v1318
    %v1330 = vadd.f32 %v1328, %v1329
    %v1331 = vtanh.pop %v1330
    %v1332 = vmul.f32 %v1324, %v1331
    %v1334 = vrot.slane %v1332, 2
    %1336 = vmatprep.subr.mxu0 %v348
    %1337 = vmatpush1.msra.mxu0 %v347
    %1338 = vmatprep.subr.mxu0 %v352
    %1339 = vmatpush1.msra.mxu0 %v351
    %1340 = vmatprep.subr.mxu0 %v356
    %1341 = vmatpush1.msra.mxu0 %v355
    %1342 = vmatprep.subr.mxu0 %v360
    %1343 = vmatpush1.msra.mxu0 %v359
    %1344 = vmatprep.subr.mxu0 %v364
    %1345 = vmatpush1.msra.mxu0 %v363
    %1346 = vmatprep.subr.mxu0 %v368
    %1347 = vmatpush1.msra.mxu0 %v367
    %1348 = vmatprep.subr.mxu0 %v372
    %1349 = vmatpush1.msra.mxu0 %v371
    %1350 = vmatprep.subr.mxu0 %v376
    %1351 = vmatpush1.msra.mxu0 %v375
    %1352 = vmatprep.subr.mxu0 %v380
    %1353 = vmatpush1.msra.mxu0 %v379
    %1354 = vmatprep.subr.mxu0 %v384
    %1355 = vmatpush1.msra.mxu0 %v383
    %1356 = vmatprep.subr.mxu0 %v388
    %1357 = vmatpush1.msra.mxu0 %v387
    %1358 = vmatprep.subr.mxu0 %v392
    %1359 = vmatpush1.msra.mxu0 %v391
    %1360 = vmatprep.subr.mxu0 %v396
    %1361 = vmatpush1.msra.mxu0 %v395
    %1362 = vmatprep.subr.mxu0 %v400
    %1363 = vmatpush1.msra.mxu0 %v399
    %1364 = vmatprep.subr.mxu0 %v404
    %1365 = vmatpush1.msra.mxu0 %v403
    %1366 = vmatprep.subr.mxu0 %v408
    %1367 = vmatpush1.msra.mxu0 %v407
    %1368 = vmatprep.subr.mxu0 0.0
    %1369 = vmatpush1.msra.mxu0 0.0
    %1370 = vmatprep.subr.mxu0 0.0
    %1371 = vmatpush1.msra.mxu0 0.0
    %1372 = vmatprep.subr.mxu0 0.0
    %1373 = vmatpush1.msra.mxu0 0.0
    %1374 = vmatprep.subr.mxu0 0.0
    %1375 = vmatpush1.msra.mxu0 0.0
    %1376 = vmatprep.subr.mxu0 0.0
    %1377 = vmatpush1.msra.mxu0 0.0
    %1378 = vmatprep.subr.mxu0 0.0
    %1379 = vmatpush1.msra.mxu0 0.0
    %1380 = vmatprep.subr.mxu0 0.0
    %1381 = vmatpush1.msra.mxu0 0.0
    %1382 = vmatprep.subr.mxu0 0.0
    %1383 = vmatpush1.msra.mxu0 0.0
    %1384 = vmatprep.subr.mxu0 0.0
    %1385 = vmatpush1.msra.mxu0 0.0
    %1386 = vmatprep.subr.mxu0 0.0
    %1387 = vmatpush1.msra.mxu0 0.0
    %1388 = vmatprep.subr.mxu0 0.0
    %1389 = vmatpush1.msra.mxu0 0.0
    %1390 = vmatprep.subr.mxu0 0.0
    %1391 = vmatpush1.msra.mxu0 0.0
    %1392 = vmatprep.subr.mxu0 0.0
    %1393 = vmatpush1.msra.mxu0 0.0
    %1394 = vmatprep.subr.mxu0 0.0
    %1395 = vmatpush1.msra.mxu0 0.0
    %1396 = vmatprep.subr.mxu0 0.0
    %1397 = vmatpush1.msra.mxu0 0.0
    %1398 = vmatprep.subr.mxu0 0.0
    %1399 = vmatpush1.msra.mxu0 0.0
    %1400 = vmatprep.mubr.f32.mxu0 0.0
    %1401 = vmatmul.mubr.f32.gmra.mrb[0].mxu0 %v1334
    %v1402 = vpop.f32.mrb[0].mxu0
    %v1403 = vadd.f32 0.0, %v1402
    %v1404 = vpop.f32.mrb[0].mxu0
    %v1405 = vadd.f32 0.0, %v1404
    %1406 = vdwg.mxu0
    %1407 = vmatprep.subr.mxu0 %v350
    %1408 = vmatpush1.msra.mxu0 %v349
    %1409 = vmatprep.subr.mxu0 %v354
    %1410 = vmatpush1.msra.mxu0 %v353
    %1411 = vmatprep.subr.mxu0 %v358
    %1412 = vmatpush1.msra.mxu0 %v357
    %1413 = vmatprep.subr.mxu0 %v362
    %1414 = vmatpush1.msra.mxu0 %v361
    %1415 = vmatprep.subr.mxu0 %v366
    %1416 = vmatpush1.msra.mxu0 %v365
    %1417 = vmatprep.subr.mxu0 %v370
    %1418 = vmatpush1.msra.mxu0 %v369
    %1419 = vmatprep.subr.mxu0 %v374
    %1420 = vmatpush1.msra.mxu0 %v373
    %1421 = vmatprep.subr.mxu0 %v378
    %1422 = vmatpush1.msra.mxu0 %v377
    %1423 = vmatprep.subr.mxu0 %v382
    %1424 = vmatpush1.msra.mxu0 %v381
    %1425 = vmatprep.subr.mxu0 %v386
    %1426 = vmatpush1.msra.mxu0 %v385
    %1427 = vmatprep.subr.mxu0 %v390
    %1428 = vmatpush1.msra.mxu0 %v389
    %1429 = vmatprep.subr.mxu0 %v394
    %1430 = vmatpush1.msra.mxu0 %v393
    %1431 = vmatprep.subr.mxu0 %v398
    %1432 = vmatpush1.msra.mxu0 %v397
    %1433 = vmatprep.subr.mxu0 %v402
    %1434 = vmatpush1.msra.mxu0 %v401
    %1435 = vmatprep.subr.mxu0 %v406
    %1436 = vmatpush1.msra.mxu0 %v405
    %1437 = vmatprep.subr.mxu0 %v410
    %1438 = vmatpush1.msra.mxu0 %v409
    %1439 = vmatprep.subr.mxu0 0.0
    %1440 = vmatpush1.msra.mxu0 0.0
    %1441 = vmatprep.subr.mxu0 0.0
    %1442 = vmatpush1.msra.mxu0 0.0
    %1443 = vmatprep.subr.mxu0 0.0
    %1444 = vmatpush1.msra.mxu0 0.0
    %1445 = vmatprep.subr.mxu0 0.0
    %1446 = vmatpush1.msra.mxu0 0.0
    %1447 = vmatprep.subr.mxu0 0.0
    %1448 = vmatpush1.msra.mxu0 0.0
    %1449 = vmatprep.subr.mxu0 0.0
    %1450 = vmatpush1.msra.mxu0 0.0
    %1451 = vmatprep.subr.mxu0 0.0
    %1452 = vmatpush1.msra.mxu0 0.0
    %1453 = vmatprep.subr.mxu0 0.0
    %1454 = vmatpush1.msra.mxu0 0.0
    %1455 = vmatprep.subr.mxu0 0.0
    %1456 = vmatpush1.msra.mxu0 0.0
    %1457 = vmatprep.subr.mxu0 0.0
    %1458 = vmatpush1.msra.mxu0 0.0
    %1459 = vmatprep.subr.mxu0 0.0
    %1460 = vmatpush1.msra.mxu0 0.0
    %1461 = vmatprep.subr.mxu0 0.0
    %1462 = vmatpush1.msra.mxu0 0.0
    %1463 = vmatprep.subr.mxu0 0.0
    %1464 = vmatpush1.msra.mxu0 0.0
    %1465 = vmatprep.subr.mxu0 0.0
    %1466 = vmatpush1.msra.mxu0 0.0
    %1467 = vmatprep.subr.mxu0 0.0
    %1468 = vmatpush1.msra.mxu0 0.0
    %1469 = vmatprep.subr.mxu0 0.0
    %1470 = vmatpush1.msra.mxu0 0.0
    %1471 = vmatprep.mubr.f32.mxu0 0.0
    %1472 = vmatmul.mubr.f32.gmra.mrb[0].mxu0 %v1334
    %v1473 = vpop.f32.mrb[0].mxu0
    %v1474 = vadd.f32 0.0, %v1473
    %v1475 = vpop.f32.mrb[0].mxu0
    %v1476 = vadd.f32 0.0, %v1475
    %1477 = vdwg.mxu0
    %v1482 = vrot.slane %v1403, 4
    %v1483 = vrot.slane %v1405, 4
    %v1484 = vrot.slane %v1474, 4
    %v1485 = vrot.slane %v1476, 4
    %v1490 = vadd.f32 %v242, %v1482
    %v1491 = vadd.f32 %v244, %v1483
    %v1492 = vadd.f32 %v319, %v1484
    %v1493 = vadd.f32 %v321, %v1485
    %v1494 = vxor.u32 %v1490, 2147483648
    %v1495 = vmul.f32 %v1494, 1.442695
    %v1496 = vpow.pop %v1495
    %v1497 = vadd.f32 %v1496, 1.0
    %v1498 = vrcp.pop %v1497
    %v1499 = vmul.f32 1.0, %v1498
    %v1500 = vxor.u32 %v1491, 2147483648
    %v1501 = vmul.f32 %v1500, 1.442695
    %v1502 = vpow.pop %v1501
    %v1503 = vadd.f32 %v1502, 1.0
    %v1504 = vrcp.pop %v1503
    %v1505 = vmul.f32 1.0, %v1504
    %v1506 = vtanh.pop %v1492
    %v1507 = vxor.u32 %v1493, 2147483648
    %v1508 = vmul.f32 %v1507, 1.442695
    %v1509 = vpow.pop %v1508
    %v1510 = vadd.f32 %v1509, 1.0
    %v1511 = vrcp.pop %v1510
    %v1512 = vmul.f32 1.0, %v1511
    %v1514 = vrot.slane %v1330, 6
    %v1516 = vmul.f32 %v1505, %v1514
    %v1517 = vmul.f32 %v1499, %v1506
    %v1518 = vadd.f32 %v1516, %v1517
    %v1519 = vtanh.pop %v1518
    %v1520 = vmul.f32 %v1512, %v1519
    %v1522 = vrot.slane %v1520, 4
    %1524 = vmatprep.subr.mxu0 %v348
    %1525 = vmatpush1.msra.mxu0 %v347
    %1526 = vmatprep.subr.mxu0 %v352
    %1527 = vmatpush1.msra.mxu0 %v351
    %1528 = vmatprep.subr.mxu0 %v356
    %1529 = vmatpush1.msra.mxu0 %v355
    %1530 = vmatprep.subr.mxu0 %v360
    %1531 = vmatpush1.msra.mxu0 %v359
    %1532 = vmatprep.subr.mxu0 %v364
    %1533 = vmatpush1.msra.mxu0 %v363
    %1534 = vmatprep.subr.mxu0 %v368
    %1535 = vmatpush1.msra.mxu0 %v367
    %1536 = vmatprep.subr.mxu0 %v372
    %1537 = vmatpush1.msra.mxu0 %v371
    %1538 = vmatprep.subr.mxu0 %v376
    %1539 = vmatpush1.msra.mxu0 %v375
    %1540 = vmatprep.subr.mxu0 %v380
    %1541 = vmatpush1.msra.mxu0 %v379
    %1542 = vmatprep.subr.mxu0 %v384
    %1543 = vmatpush1.msra.mxu0 %v383
    %1544 = vmatprep.subr.mxu0 %v388
    %1545 = vmatpush1.msra.mxu0 %v387
    %1546 = vmatprep.subr.mxu0 %v392
    %1547 = vmatpush1.msra.mxu0 %v391
    %1548 = vmatprep.subr.mxu0 %v396
    %1549 = vmatpush1.msra.mxu0 %v395
    %1550 = vmatprep.subr.mxu0 %v400
    %1551 = vmatpush1.msra.mxu0 %v399
    %1552 = vmatprep.subr.mxu0 %v404
    %1553 = vmatpush1.msra.mxu0 %v403
    %1554 = vmatprep.subr.mxu0 %v408
    %1555 = vmatpush1.msra.mxu0 %v407
    %1556 = vmatprep.subr.mxu0 0.0
    %1557 = vmatpush1.msra.mxu0 0.0
    %1558 = vmatprep.subr.mxu0 0.0
    %1559 = vmatpush1.msra.mxu0 0.0
    %1560 = vmatprep.subr.mxu0 0.0
    %1561 = vmatpush1.msra.mxu0 0.0
    %1562 = vmatprep.subr.mxu0 0.0
    %1563 = vmatpush1.msra.mxu0 0.0
    %1564 = vmatprep.subr.mxu0 0.0
    %1565 = vmatpush1.msra.mxu0 0.0
    %1566 = vmatprep.subr.mxu0 0.0
    %1567 = vmatpush1.msra.mxu0 0.0
    %1568 = vmatprep.subr.mxu0 0.0
    %1569 = vmatpush1.msra.mxu0 0.0
    %1570 = vmatprep.subr.mxu0 0.0
    %1571 = vmatpush1.msra.mxu0 0.0
    %1572 = vmatprep.subr.mxu0 0.0
    %1573 = vmatpush1.msra.mxu0 0.0
    %1574 = vmatprep.subr.mxu0 0.0
    %1575 = vmatpush1.msra.mxu0 0.0
    %1576 = vmatprep.subr.mxu0 0.0
    %1577 = vmatpush1.msra.mxu0 0.0
    %1578 = vmatprep.subr.mxu0 0.0
    %1579 = vmatpush1.msra.mxu0 0.0
    %1580 = vmatprep.subr.mxu0 0.0
    %1581 = vmatpush1.msra.mxu0 0.0
    %1582 = vmatprep.subr.mxu0 0.0
    %1583 = vmatpush1.msra.mxu0 0.0
    %1584 = vmatprep.subr.mxu0 0.0
    %1585 = vmatpush1.msra.mxu0 0.0
    %1586 = vmatprep.subr.mxu0 0.0
    %1587 = vmatpush1.msra.mxu0 0.0
    %1588 = vmatprep.mubr.f32.mxu0 0.0
    %1589 = vmatmul.mubr.f32.gmra.mrb[0].mxu0 %v1522
    %v1590 = vpop.f32.mrb[0].mxu0
    %v1591 = vadd.f32 0.0, %v1590
    %v1592 = vpop.f32.mrb[0].mxu0
    %v1593 = vadd.f32 0.0, %v1592
    %1594 = vdwg.mxu0
    %1595 = vmatprep.subr.mxu0 %v350
    %1596 = vmatpush1.msra.mxu0 %v349
    %1597 = vmatprep.subr.mxu0 %v354
    %1598 = vmatpush1.msra.mxu0 %v353
    %1599 = vmatprep.subr.mxu0 %v358
    %1600 = vmatpush1.msra.mxu0 %v357
    %1601 = vmatprep.subr.mxu0 %v362
    %1602 = vmatpush1.msra.mxu0 %v361
    %1603 = vmatprep.subr.mxu0 %v366
    %1604 = vmatpush1.msra.mxu0 %v365
    %1605 = vmatprep.subr.mxu0 %v370
    %1606 = vmatpush1.msra.mxu0 %v369
    %1607 = vmatprep.subr.mxu0 %v374
    %1608 = vmatpush1.msra.mxu0 %v373
    %1609 = vmatprep.subr.mxu0 %v378
    %1610 = vmatpush1.msra.mxu0 %v377
    %1611 = vmatprep.subr.mxu0 %v382
    %1612 = vmatpush1.msra.mxu0 %v381
    %1613 = vmatprep.subr.mxu0 %v386
    %1614 = vmatpush1.msra.mxu0 %v385
    %1615 = vmatprep.subr.mxu0 %v390
    %1616 = vmatpush1.msra.mxu0 %v389
    %1617 = vmatprep.subr.mxu0 %v394
    %1618 = vmatpush1.msra.mxu0 %v393
    %1619 = vmatprep.subr.mxu0 %v398
    %1620 = vmatpush1.msra.mxu0 %v397
    %1621 = vmatprep.subr.mxu0 %v402
    %1622 = vmatpush1.msra.mxu0 %v401
    %1623 = vmatprep.subr.mxu0 %v406
    %1624 = vmatpush1.msra.mxu0 %v405
    %1625 = vmatprep.subr.mxu0 %v410
    %1626 = vmatpush1.msra.mxu0 %v409
    %1627 = vmatprep.subr.mxu0 0.0
    %1628 = vmatpush1.msra.mxu0 0.0
    %1629 = vmatprep.subr.mxu0 0.0
    %1630 = vmatpush1.msra.mxu0 0.0
    %1631 = vmatprep.subr.mxu0 0.0
    %1632 = vmatpush1.msra.mxu0 0.0
    %1633 = vmatprep.subr.mxu0 0.0
    %1634 = vmatpush1.msra.mxu0 0.0
    %1635 = vmatprep.subr.mxu0 0.0
    %1636 = vmatpush1.msra.mxu0 0.0
    %1637 = vmatprep.subr.mxu0 0.0
    %1638 = vmatpush1.msra.mxu0 0.0
    %1639 = vmatprep.subr.mxu0 0.0
    %1640 = vmatpush1.msra.mxu0 0.0
    %1641 = vmatprep.subr.mxu0 0.0
    %1642 = vmatpush1.msra.mxu0 0.0
    %1643 = vmatprep.subr.mxu0 0.0
    %1644 = vmatpush1.msra.mxu0 0.0
    %1645 = vmatprep.subr.mxu0 0.0
    %1646 = vmatpush1.msra.mxu0 0.0
    %1647 = vmatprep.subr.mxu0 0.0
    %1648 = vmatpush1.msra.mxu0 0.0
    %1649 = vmatprep.subr.mxu0 0.0
    %1650 = vmatpush1.msra.mxu0 0.0
    %1651 = vmatprep.subr.mxu0 0.0
    %1652 = vmatpush1.msra.mxu0 0.0
    %1653 = vmatprep.subr.mxu0 0.0
    %1654 = vmatpush1.msra.mxu0 0.0
    %1655 = vmatprep.subr.mxu0 0.0
    %1656 = vmatpush1.msra.mxu0 0.0
    %1657 = vmatprep.subr.mxu0 0.0
    %1658 = vmatpush1.msra.mxu0 0.0
    %1659 = vmatprep.mubr.f32.mxu0 0.0
    %1660 = vmatmul.mubr.f32.gmra.mrb[0].mxu0 %v1522
    %v1661 = vpop.f32.mrb[0].mxu0
    %v1662 = vadd.f32 0.0, %v1661
    %v1663 = vpop.f32.mrb[0].mxu0
    %v1664 = vadd.f32 0.0, %v1663
    %1665 = vdwg.mxu0
    %v1670 = vrot.slane %v1591, 2
    %v1671 = vrot.slane %v1593, 2
    %v1672 = vrot.slane %v1662, 2
    %v1673 = vrot.slane %v1664, 2
    %v1678 = vadd.f32 %v242, %v1670
    %v1679 = vadd.f32 %v244, %v1671
    %v1680 = vadd.f32 %v319, %v1672
    %v1681 = vadd.f32 %v321, %v1673
    %v1682 = vxor.u32 %v1678, 2147483648
    %v1683 = vmul.f32 %v1682, 1.442695
    %v1684 = vpow.pop %v1683
    %v1685 = vadd.f32 %v1684, 1.0
    %v1686 = vrcp.pop %v1685
    %v1687 = vmul.f32 1.0, %v1686
    %v1688 = vxor.u32 %v1679, 2147483648
    %v1689 = vmul.f32 %v1688, 1.442695
    %v1690 = vpow.pop %v1689
    %v1691 = vadd.f32 %v1690, 1.0
    %v1692 = vrcp.pop %v1691
    %v1693 = vmul.f32 1.0, %v1692
    %v1694 = vtanh.pop %v1680
    %v1695 = vxor.u32 %v1681, 2147483648
    %v1696 = vmul.f32 %v1695, 1.442695
    %v1697 = vpow.pop %v1696
    %v1698 = vadd.f32 %v1697, 1.0
    %v1699 = vrcp.pop %v1698
    %v1700 = vmul.f32 1.0, %v1699
    %v1702 = vrot.slane %v1518, 6
    %v1704 = vmul.f32 %v1693, %v1702
    %v1705 = vmul.f32 %v1687, %v1694
    %v1706 = vadd.f32 %v1704, %v1705
    %v1707 = vtanh.pop %v1706
    %v1708 = vmul.f32 %v1700, %v1707
    %v1710 = vrot.slane %v1708, 6
    %v1712 = vrot.slane %v1520, 2
    %v1714 = vrot.slane %v1332, 6
    %v1717 = vrot.slane %v1147, 2
    %v1719 = vrot.slane %v783, 2
    %v1721 = vrot.slane %v595, 6
    %v1724 = vrot.slane %v346, 2
    %vm1726 = vcmask 1041408
    %v1727 = vsel %vm1726, %v346, %v595
    %v1728 = vsel %vm1726, %v1710, %v1712
    %vm1729 = vcmask 1043456
    %v1730 = vsel %vm1729, %v1727, %v783
    %v1731 = vsel %vm1729, %v1728, %v1714
    %vm1732 = vcmask 1045504
    %v1733 = vsel %vm1732, %v1730, %v971
    %v1734 = vsel %vm1732, %v1731, %v1717
    %v1735 = vsel %vm1726, %v1147, %v1332
    %v1736 = vsel %vm1726, %v973, %v1719
    %v1737 = vsel %vm1729, %v1735, %v1520
    %v1738 = vsel %vm1729, %v1736, %v1721
    %v1739 = vsel %vm1732, %v1737, %v1708
    %v1740 = vsel %vm1732, %v1738, %v1724
    %v1741 = vld [vmem:[#allocation6] sm:$0xff]
    %v1742 = vld [vmem:[#allocation6 + $0x8] sm:$0xff]
    %v1743 = vld [vmem:[#allocation6 + $0x10] sm:$0xff]
    %v1744 = vld [vmem:[#allocation6 + $0x18] sm:$0xff]
    %v1745 = vld [vmem:[#allocation6 + $0x20] sm:$0xff]
    %v1746 = vld [vmem:[#allocation6 + $0x28] sm:$0xff]
    %v1747 = vld [vmem:[#allocation6 + $0x30] sm:$0xff]
    %v1748 = vld [vmem:[#allocation6 + $0x38] sm:$0xff]
    %v1749 = vld [vmem:[#allocation6 + $0x40] sm:$0xff]
    %v1750 = vld [vmem:[#allocation6 + $0x48] sm:$0xff]
    %v1751 = vld [vmem:[#allocation6 + $0x50] sm:$0xff]
    %v1752 = vld [vmem:[#allocation6 + $0x58] sm:$0xff]
    %v1753 = vld [vmem:[#allocation6 + $0x60] sm:$0xff]
    %v1754 = vld [vmem:[#allocation6 + $0x68] sm:$0xff]
    %v1755 = vld [vmem:[#allocation6 + $0x70] sm:$0xff]
    %v1756 = vld [vmem:[#allocation6 + $0x78] sm:$0xff]
    %v1757 = vld [vmem:[#allocation6 + $0x80] sm:$0xff]
    %v1758 = vld [vmem:[#allocation6 + $0x88] sm:$0xff]
    %v1759 = vld [vmem:[#allocation6 + $0x90] sm:$0xff]
    %v1760 = vld [vmem:[#allocation6 + $0x98] sm:$0xff]
    %v1761 = vld [vmem:[#allocation6 + $0xa0] sm:$0xff]
    %v1762 = vld [vmem:[#allocation6 + $0xa8] sm:$0xff]
    %v1763 = vld [vmem:[#allocation6 + $0xb0] sm:$0xff]
    %v1764 = vld [vmem:[#allocation6 + $0xb8] sm:$0xff]
    %v1765 = vld [vmem:[#allocation6 + $0xc0] sm:$0xff]
    %v1766 = vld [vmem:[#allocation6 + $0xc8] sm:$0xff]
    %v1767 = vld [vmem:[#allocation6 + $0xd0] sm:$0xff]
    %v1768 = vld [vmem:[#allocation6 + $0xd8] sm:$0xff]
    %v1769 = vld [vmem:[#allocation6 + $0xe0] sm:$0xff]
    %v1770 = vld [vmem:[#allocation6 + $0xe8] sm:$0xff]
    %v1771 = vld [vmem:[#allocation6 + $0xf0] sm:$0xff]
    %v1772 = vld [vmem:[#allocation6 + $0xf8] sm:$0xff]
    %v1773 = vld [vmem:[#allocation6 + $0x100] sm:$0xff]
    %v1774 = vld [vmem:[#allocation6 + $0x108] sm:$0xff]
    %v1775 = vld [vmem:[#allocation6 + $0x110] sm:$0xff]
    %v1776 = vld [vmem:[#allocation6 + $0x118] sm:$0xff]
    %v1777 = vld [vmem:[#allocation6 + $0x120] sm:$0xff]
    %v1778 = vld [vmem:[#allocation6 + $0x128] sm:$0xff]
    %v1779 = vld [vmem:[#allocation6 + $0x130] sm:$0xff]
    %v1780 = vld [vmem:[#allocation6 + $0x138] sm:$0xff]
    %v1781 = vld [vmem:[#allocation6 + $0x140] sm:$0xff]
    %v1782 = vld [vmem:[#allocation6 + $0x148] sm:$0xff]
    %v1783 = vld [vmem:[#allocation6 + $0x150] sm:$0xff]
    %v1784 = vld [vmem:[#allocation6 + $0x158] sm:$0xff]
    %v1785 = vld [vmem:[#allocation6 + $0x160] sm:$0xff]
    %v1786 = vld [vmem:[#allocation6 + $0x168] sm:$0xff]
    %v1787 = vld [vmem:[#allocation6 + $0x170] sm:$0xff]
    %v1788 = vld [vmem:[#allocation6 + $0x178] sm:$0xff]
    %v1789 = vld [vmem:[#allocation6 + $0x180] sm:$0xff]
    %v1790 = vld [vmem:[#allocation6 + $0x188] sm:$0xff]
    %v1791 = vld [vmem:[#allocation6 + $0x190] sm:$0xff]
    %v1792 = vld [vmem:[#allocation6 + $0x198] sm:$0xff]
    %v1793 = vld [vmem:[#allocation6 + $0x1a0] sm:$0xff]
    %v1794 = vld [vmem:[#allocation6 + $0x1a8] sm:$0xff]
    %v1795 = vld [vmem:[#allocation6 + $0x1b0] sm:$0xff]
    %v1796 = vld [vmem:[#allocation6 + $0x1b8] sm:$0xff]
    %v1797 = vld [vmem:[#allocation6 + $0x1c0] sm:$0xff]
    %v1798 = vld [vmem:[#allocation6 + $0x1c8] sm:$0xff]
    %v1799 = vld [vmem:[#allocation6 + $0x1d0] sm:$0xff]
    %v1800 = vld [vmem:[#allocation6 + $0x1d8] sm:$0xff]
    %v1801 = vld [vmem:[#allocation6 + $0x1e0] sm:$0xff]
    %v1802 = vld [vmem:[#allocation6 + $0x1e8] sm:$0xff]
    %v1803 = vld [vmem:[#allocation6 + $0x1f0] sm:$0xff]
    %v1804 = vld [vmem:[#allocation6 + $0x1f8] sm:$0xff]
    %v1805 = vld [vmem:[#allocation6 + $0x200] sm:$0xff]
    %v1806 = vld [vmem:[#allocation6 + $0x208] sm:$0xff]
    %v1807 = vld [vmem:[#allocation6 + $0x210] sm:$0xff]
    %v1808 = vld [vmem:[#allocation6 + $0x218] sm:$0xff]
    %v1809 = vld [vmem:[#allocation6 + $0x220] sm:$0xff]
    %v1810 = vld [vmem:[#allocation6 + $0x228] sm:$0xff]
    %v1811 = vld [vmem:[#allocation6 + $0x230] sm:$0xff]
    %v1812 = vld [vmem:[#allocation6 + $0x238] sm:$0xff]
    %v1813 = vld [vmem:[#allocation6 + $0x240] sm:$0xff]
    %v1814 = vld [vmem:[#allocation6 + $0x248] sm:$0xff]
    %v1815 = vld [vmem:[#allocation6 + $0x250] sm:$0xff]
    %v1816 = vld [vmem:[#allocation6 + $0x258] sm:$0xff]
    %v1817 = vld [vmem:[#allocation6 + $0x260] sm:$0xff]
    %v1818 = vld [vmem:[#allocation6 + $0x268] sm:$0xff]
    %v1819 = vld [vmem:[#allocation6 + $0x270] sm:$0xff]
    %v1820 = vld [vmem:[#allocation6 + $0x278] sm:$0xff]
    %v1821 = vld [vmem:[#allocation6 + $0x280] sm:$0xff]
    %v1822 = vld [vmem:[#allocation6 + $0x288] sm:$0xff]
    %v1823 = vld [vmem:[#allocation6 + $0x290] sm:$0xff]
    %v1824 = vld [vmem:[#allocation6 + $0x298] sm:$0xff]
    %v1825 = vld [vmem:[#allocation6 + $0x2a0] sm:$0xff]
    %v1826 = vld [vmem:[#allocation6 + $0x2a8] sm:$0xff]
    %v1827 = vld [vmem:[#allocation6 + $0x2b0] sm:$0xff]
    %v1828 = vld [vmem:[#allocation6 + $0x2b8] sm:$0xff]
    %v1829 = vld [vmem:[#allocation6 + $0x2c0] sm:$0xff]
    %v1830 = vld [vmem:[#allocation6 + $0x2c8] sm:$0xff]
    %v1831 = vld [vmem:[#allocation6 + $0x2d0] sm:$0xff]
    %v1832 = vld [vmem:[#allocation6 + $0x2d8] sm:$0xff]
    %v1833 = vld [vmem:[#allocation6 + $0x2e0] sm:$0xff]
    %v1834 = vld [vmem:[#allocation6 + $0x2e8] sm:$0xff]
    %v1835 = vld [vmem:[#allocation6 + $0x2f0] sm:$0xff]
    %v1836 = vld [vmem:[#allocation6 + $0x2f8] sm:$0xff]
    %v1837 = vld [vmem:[#allocation6 + $0x300] sm:$0xff]
    %v1838 = vld [vmem:[#allocation6 + $0x308] sm:$0xff]
    %v1839 = vld [vmem:[#allocation6 + $0x310] sm:$0xff]
    %v1840 = vld [vmem:[#allocation6 + $0x318] sm:$0xff]
    %v1841 = vld [vmem:[#allocation6 + $0x320] sm:$0xff]
    %v1842 = vld [vmem:[#allocation6 + $0x328] sm:$0xff]
    %v1843 = vld [vmem:[#allocation6 + $0x330] sm:$0xff]
    %v1844 = vld [vmem:[#allocation6 + $0x338] sm:$0xff]
    %v1845 = vld [vmem:[#allocation6 + $0x340] sm:$0xff]
    %v1846 = vld [vmem:[#allocation6 + $0x348] sm:$0xff]
    %v1847 = vld [vmem:[#allocation6 + $0x350] sm:$0xff]
    %v1848 = vld [vmem:[#allocation6 + $0x358] sm:$0xff]
    %v1849 = vld [vmem:[#allocation6 + $0x360] sm:$0xff]
    %v1850 = vld [vmem:[#allocation6 + $0x368] sm:$0xff]
    %v1851 = vld [vmem:[#allocation6 + $0x370] sm:$0xff]
    %v1852 = vld [vmem:[#allocation6 + $0x378] sm:$0xff]
    %v1853 = vld [vmem:[#allocation6 + $0x380] sm:$0xff]
    %v1854 = vld [vmem:[#allocation6 + $0x388] sm:$0xff]
    %v1855 = vld [vmem:[#allocation6 + $0x390] sm:$0xff]
    %v1856 = vld [vmem:[#allocation6 + $0x398] sm:$0xff]
    %v1857 = vld [vmem:[#allocation6 + $0x3a0] sm:$0xff]
    %v1858 = vld [vmem:[#allocation6 + $0x3a8] sm:$0xff]
    %v1859 = vld [vmem:[#allocation6 + $0x3b0] sm:$0xff]
    %v1860 = vld [vmem:[#allocation6 + $0x3b8] sm:$0xff]
    %v1861 = vld [vmem:[#allocation6 + $0x3c0] sm:$0xff]
    %v1862 = vld [vmem:[#allocation6 + $0x3c8] sm:$0xff]
    %v1863 = vld [vmem:[#allocation6 + $0x3d0] sm:$0xff]
    %v1864 = vld [vmem:[#allocation6 + $0x3d8] sm:$0xff]
    %v1865 = vld [vmem:[#allocation6 + $0x3e0] sm:$0xff]
    %v1866 = vld [vmem:[#allocation6 + $0x3e8] sm:$0xff]
    %v1867 = vld [vmem:[#allocation6 + $0x3f0] sm:$0xff]
    %v1868 = vld [vmem:[#allocation6 + $0x3f8] sm:$0xff]
    %v1869 = vld [vmem:[%s6] sm:$0xf]
    %v1871 = vlaneseq
    %v1872 = vshrl.u32 %v1871, 7
    %v1873 = vsub.s32 0, %v1872
    %v1874 = vrot.slane %v1869, %v1873
    %v1875 = vlaneseq
    %v1876 = vshrl.u32 %v1875, 7
    %v1877 = vsub.s32 1, %v1876
    %v1878 = vrot.slane %v1869, %v1877
    %v1879 = vlaneseq
    %v1880 = vshrl.u32 %v1879, 7
    %v1881 = vsub.s32 2, %v1880
    %v1882 = vrot.slane %v1869, %v1881
    %v1883 = vlaneseq
    %v1884 = vshrl.u32 %v1883, 7
    %v1885 = vsub.s32 3, %v1884
    %v1886 = vrot.slane %v1869, %v1885
    %1891 = vmatprep.subr.mxu0 %v1742
    %1892 = vmatpush1.msra.mxu0 %v1741
    %1893 = vmatprep.subr.mxu0 %v1746
    %1894 = vmatpush1.msra.mxu0 %v1745
    %1895 = vmatprep.subr.mxu0 %v1750
    %1896 = vmatpush1.msra.mxu0 %v1749
    %1897 = vmatprep.subr.mxu0 %v1754
    %1898 = vmatpush1.msra.mxu0 %v1753
    %1899 = vmatprep.subr.mxu0 %v1758
    %1900 = vmatpush1.msra.mxu0 %v1757
    %1901 = vmatprep.subr.mxu0 %v1762
    %1902 = vmatpush1.msra.mxu0 %v1761
    %1903 = vmatprep.subr.mxu0 %v1766
    %1904 = vmatpush1.msra.mxu0 %v1765
    %1905 = vmatprep.subr.mxu0 %v1770
    %1906 = vmatpush1.msra.mxu0 %v1769
    %1907 = vmatprep.subr.mxu0 %v1774
    %1908 = vmatpush1.msra.mxu0 %v1773
    %1909 = vmatprep.subr.mxu0 %v1778
    %1910 = vmatpush1.msra.mxu0 %v1777
    %1911 = vmatprep.subr.mxu0 %v1782
    %1912 = vmatpush1.msra.mxu0 %v1781
    %1913 = vmatprep.subr.mxu0 %v1786
    %1914 = vmatpush1.msra.mxu0 %v1785
    %1915 = vmatprep.subr.mxu0 %v1790
    %1916 = vmatpush1.msra.mxu0 %v1789
    %1917 = vmatprep.subr.mxu0 %v1794
    %1918 = vmatpush1.msra.mxu0 %v1793
    %1919 = vmatprep.subr.mxu0 %v1798
    %1920 = vmatpush1.msra.mxu0 %v1797
    %1921 = vmatprep.subr.mxu0 %v1802
    %1922 = vmatpush1.msra.mxu0 %v1801
    %1923 = vmatprep.subr.mxu0 %v1806
    %1924 = vmatpush1.msra.mxu0 %v1805
    %1925 = vmatprep.subr.mxu0 %v1810
    %1926 = vmatpush1.msra.mxu0 %v1809
    %1927 = vmatprep.subr.mxu0 %v1814
    %1928 = vmatpush1.msra.mxu0 %v1813
    %1929 = vmatprep.subr.mxu0 %v1818
    %1930 = vmatpush1.msra.mxu0 %v1817
    %1931 = vmatprep.subr.mxu0 %v1822
    %1932 = vmatpush1.msra.mxu0 %v1821
    %1933 = vmatprep.subr.mxu0 %v1826
    %1934 = vmatpush1.msra.mxu0 %v1825
    %1935 = vmatprep.subr.mxu0 %v1830
    %1936 = vmatpush1.msra.mxu0 %v1829
    %1937 = vmatprep.subr.mxu0 %v1834
    %1938 = vmatpush1.msra.mxu0 %v1833
    %1939 = vmatprep.subr.mxu0 %v1838
    %1940 = vmatpush1.msra.mxu0 %v1837
    %1941 = vmatprep.subr.mxu0 %v1842
    %1942 = vmatpush1.msra.mxu0 %v1841
    %1943 = vmatprep.subr.mxu0 %v1846
    %1944 = vmatpush1.msra.mxu0 %v1845
    %1945 = vmatprep.subr.mxu0 %v1850
    %1946 = vmatpush1.msra.mxu0 %v1849
    %1947 = vmatprep.subr.mxu0 %v1854
    %1948 = vmatpush1.msra.mxu0 %v1853
    %1949 = vmatprep.subr.mxu0 %v1858
    %1950 = vmatpush1.msra.mxu0 %v1857
    %1951 = vmatprep.subr.mxu0 %v1862
    %1952 = vmatpush1.msra.mxu0 %v1861
    %1953 = vmatprep.subr.mxu0 %v1866
    %1954 = vmatpush1.msra.mxu0 %v1865
    %1955 = vmatprep.mubr.f32.mxu0 %v1734
    %1956 = vmatmul.mubr.f32.gmra.mrb[0].mxu0 %v1733
    %v1957 = vpop.f32.mrb[0].mxu0
    %v1958 = vadd.f32 %v1874, %v1957
    %v1959 = vpop.f32.mrb[0].mxu0
    %v1960 = vadd.f32 %v1878, %v1959
    %1961 = vmatprep.mubr.f32.mxu0 %v1740
    %1962 = vmatmul.mubr.f32.gmra.mrb[0].mxu0 %v1739
    %v1963 = vpop.f32.mrb[0].mxu0
    %v1964 = vadd.f32 %v1874, %v1963
    %v1965 = vpop.f32.mrb[0].mxu0
    %v1966 = vadd.f32 %v1878, %v1965
    %1967 = vdwg.mxu0
    %1968 = vmatprep.subr.mxu0 %v1744
    %1969 = vmatpush1.msra.mxu0 %v1743
    %1970 = vmatprep.subr.mxu0 %v1748
    %1971 = vmatpush1.msra.mxu0 %v1747
    %1972 = vmatprep.subr.mxu0 %v1752
    %1973 = vmatpush1.msra.mxu0 %v1751
    %1974 = vmatprep.subr.mxu0 %v1756
    %1975 = vmatpush1.msra.mxu0 %v1755
    %1976 = vmatprep.subr.mxu0 %v1760
    %1977 = vmatpush1.msra.mxu0 %v1759
    %1978 = vmatprep.subr.mxu0 %v1764
    %1979 = vmatpush1.msra.mxu0 %v1763
    %1980 = vmatprep.subr.mxu0 %v1768
    %1981 = vmatpush1.msra.mxu0 %v1767
    %1982 = vmatprep.subr.mxu0 %v1772
    %1983 = vmatpush1.msra.mxu0 %v1771
    %1984 = vmatprep.subr.mxu0 %v1776
    %1985 = vmatpush1.msra.mxu0 %v1775
    %1986 = vmatprep.subr.mxu0 %v1780
    %1987 = vmatpush1.msra.mxu0 %v1779
    %1988 = vmatprep.subr.mxu0 %v1784
    %1989 = vmatpush1.msra.mxu0 %v1783
    %1990 = vmatprep.subr.mxu0 %v1788
    %1991 = vmatpush1.msra.mxu0 %v1787
    %1992 = vmatprep.subr.mxu0 %v1792
    %1993 = vmatpush1.msra.mxu0 %v1791
    %1994 = vmatprep.subr.mxu0 %v1796
    %1995 = vmatpush1.msra.mxu0 %v1795
    %1996 = vmatprep.subr.mxu0 %v1800
    %1997 = vmatpush1.msra.mxu0 %v1799
    %1998 = vmatprep.subr.mxu0 %v1804
    %1999 = vmatpush1.msra.mxu0 %v1803
    %2000 = vmatprep.subr.mxu0 %v1808
    %2001 = vmatpush1.msra.mxu0 %v1807
    %2002 = vmatprep.subr.mxu0 %v1812
    %2003 = vmatpush1.msra.mxu0 %v1811
    %2004 = vmatprep.subr.mxu0 %v1816
    %2005 = vmatpush1.msra.mxu0 %v1815
    %2006 = vmatprep.subr.mxu0 %v1820
    %2007 = vmatpush1.msra.mxu0 %v1819
    %2008 = vmatprep.subr.mxu0 %v1824
    %2009 = vmatpush1.msra.mxu0 %v1823
    %2010 = vmatprep.subr.mxu0 %v1828
    %2011 = vmatpush1.msra.mxu0 %v1827
    %2012 = vmatprep.subr.mxu0 %v1832
    %2013 = vmatpush1.msra.mxu0 %v1831
    %2014 = vmatprep.subr.mxu0 %v1836
    %2015 = vmatpush1.msra.mxu0 %v1835
    %2016 = vmatprep.subr.mxu0 %v1840
    %2017 = vmatpush1.msra.mxu0 %v1839
    %2018 = vmatprep.subr.mxu0 %v1844
    %2019 = vmatpush1.msra.mxu0 %v1843
    %2020 = vmatprep.subr.mxu0 %v1848
    %2021 = vmatpush1.msra.mxu0 %v1847
    %2022 = vmatprep.subr.mxu0 %v1852
    %2023 = vmatpush1.msra.mxu0 %v1851
    %2024 = vmatprep.subr.mxu0 %v1856
    %2025 = vmatpush1.msra.mxu0 %v1855
    %2026 = vmatprep.subr.mxu0 %v1860
    %2027 = vmatpush1.msra.mxu0 %v1859
    %2028 = vmatprep.subr.mxu0 %v1864
    %2029 = vmatpush1.msra.mxu0 %v1863
    %2030 = vmatprep.subr.mxu0 %v1868
    %2031 = vmatpush1.msra.mxu0 %v1867
    %2032 = vmatprep.mubr.f32.mxu0 %v1734
    %2033 = vmatmul.mubr.f32.gmra.mrb[0].mxu0 %v1733
    %v2034 = vpop.f32.mrb[0].mxu0
    %v2035 = vadd.f32 %v1882, %v2034
    %v2036 = vpop.f32.mrb[0].mxu0
    %v2037 = vadd.f32 %v1886, %v2036
    %2038 = vmatprep.mubr.f32.mxu0 %v1740
    %2039 = vmatmul.mubr.f32.gmra.mrb[0].mxu0 %v1739
    %v2040 = vpop.f32.mrb[0].mxu0
    %v2041 = vadd.f32 %v1882, %v2040
    %v2042 = vpop.f32.mrb[0].mxu0
    %v2043 = vadd.f32 %v1886, %v2042
    %2044 = vdwg.mxu0
    %v2045 = vxor.u32 %v1958, 2147483648
    %v2046 = vmul.f32 %v2045, 1.442695
    %v2047 = vpow.pop %v2046
    %v2048 = vadd.f32 %v2047, 1.0
    %v2049 = vrcp.pop %v2048
    %v2050 = vmul.f32 1.0, %v2049
    %v2051 = vxor.u32 %v1960, 2147483648
    %v2052 = vmul.f32 %v2051, 1.442695
    %v2053 = vpow.pop %v2052
    %v2054 = vadd.f32 %v2053, 1.0
    %v2055 = vrcp.pop %v2054
    %v2056 = vmul.f32 1.0, %v2055
    %v2057 = vtanh.pop %v2035
    %v2058 = vxor.u32 %v2037, 2147483648
    %v2059 = vmul.f32 %v2058, 1.442695
    %v2060 = vpow.pop %v2059
    %v2061 = vadd.f32 %v2060, 1.0
    %v2062 = vrcp.pop %v2061
    %v2063 = vmul.f32 1.0, %v2062
    %v2064 = vmul.f32 %v2056, 0.0
    %v2065 = vmul.f32 %v2050, %v2057
    %v2066 = vadd.f32 %v2064, %v2065
    %v2067 = vtanh.pop %v2066
    %v2068 = vmul.f32 %v2063, %v2067
    %v2069 = vld [vmem:[#allocation7] sm:$0xff]
    %v2070 = vld [vmem:[#allocation7 + $0x8] sm:$0xff]
    %v2071 = vld [vmem:[#allocation7 + $0x10] sm:$0xff]
    %v2072 = vld [vmem:[#allocation7 + $0x18] sm:$0xff]
    %v2073 = vld [vmem:[#allocation7 + $0x20] sm:$0xff]
    %v2074 = vld [vmem:[#allocation7 + $0x28] sm:$0xff]
    %v2075 = vld [vmem:[#allocation7 + $0x30] sm:$0xff]
    %v2076 = vld [vmem:[#allocation7 + $0x38] sm:$0xff]
    %v2077 = vld [vmem:[#allocation7 + $0x40] sm:$0xff]
    %v2078 = vld [vmem:[#allocation7 + $0x48] sm:$0xff]
    %v2079 = vld [vmem:[#allocation7 + $0x50] sm:$0xff]
    %v2080 = vld [vmem:[#allocation7 + $0x58] sm:$0xff]
    %v2081 = vld [vmem:[#allocation7 + $0x60] sm:$0xff]
    %v2082 = vld [vmem:[#allocation7 + $0x68] sm:$0xff]
    %v2083 = vld [vmem:[#allocation7 + $0x70] sm:$0xff]
    %v2084 = vld [vmem:[#allocation7 + $0x78] sm:$0xff]
    %v2085 = vld [vmem:[#allocation7 + $0x80] sm:$0xff]
    %v2086 = vld [vmem:[#allocation7 + $0x88] sm:$0xff]
    %v2087 = vld [vmem:[#allocation7 + $0x90] sm:$0xff]
    %v2088 = vld [vmem:[#allocation7 + $0x98] sm:$0xff]
    %v2089 = vld [vmem:[#allocation7 + $0xa0] sm:$0xff]
    %v2090 = vld [vmem:[#allocation7 + $0xa8] sm:$0xff]
    %v2091 = vld [vmem:[#allocation7 + $0xb0] sm:$0xff]
    %v2092 = vld [vmem:[#allocation7 + $0xb8] sm:$0xff]
    %v2093 = vld [vmem:[#allocation7 + $0xc0] sm:$0xff]
    %v2094 = vld [vmem:[#allocation7 + $0xc8] sm:$0xff]
    %v2095 = vld [vmem:[#allocation7 + $0xd0] sm:$0xff]
    %v2096 = vld [vmem:[#allocation7 + $0xd8] sm:$0xff]
    %v2097 = vld [vmem:[#allocation7 + $0xe0] sm:$0xff]
    %v2098 = vld [vmem:[#allocation7 + $0xe8] sm:$0xff]
    %v2099 = vld [vmem:[#allocation7 + $0xf0] sm:$0xff]
    %v2100 = vld [vmem:[#allocation7 + $0xf8] sm:$0xff]
    %v2101 = vld [vmem:[#allocation7 + $0x100] sm:$0xff]
    %v2102 = vld [vmem:[#allocation7 + $0x108] sm:$0xff]
    %v2103 = vld [vmem:[#allocation7 + $0x110] sm:$0xff]
    %v2104 = vld [vmem:[#allocation7 + $0x118] sm:$0xff]
    %v2105 = vld [vmem:[#allocation7 + $0x120] sm:$0xff]
    %v2106 = vld [vmem:[#allocation7 + $0x128] sm:$0xff]
    %v2107 = vld [vmem:[#allocation7 + $0x130] sm:$0xff]
    %v2108 = vld [vmem:[#allocation7 + $0x138] sm:$0xff]
    %v2109 = vld [vmem:[#allocation7 + $0x140] sm:$0xff]
    %v2110 = vld [vmem:[#allocation7 + $0x148] sm:$0xff]
    %v2111 = vld [vmem:[#allocation7 + $0x150] sm:$0xff]
    %v2112 = vld [vmem:[#allocation7 + $0x158] sm:$0xff]
    %v2113 = vld [vmem:[#allocation7 + $0x160] sm:$0xff]
    %v2114 = vld [vmem:[#allocation7 + $0x168] sm:$0xff]
    %v2115 = vld [vmem:[#allocation7 + $0x170] sm:$0xff]
    %v2116 = vld [vmem:[#allocation7 + $0x178] sm:$0xff]
    %v2117 = vld [vmem:[#allocation7 + $0x180] sm:$0xff]
    %v2118 = vld [vmem:[#allocation7 + $0x188] sm:$0xff]
    %v2119 = vld [vmem:[#allocation7 + $0x190] sm:$0xff]
    %v2120 = vld [vmem:[#allocation7 + $0x198] sm:$0xff]
    %v2121 = vld [vmem:[#allocation7 + $0x1a0] sm:$0xff]
    %v2122 = vld [vmem:[#allocation7 + $0x1a8] sm:$0xff]
    %v2123 = vld [vmem:[#allocation7 + $0x1b0] sm:$0xff]
    %v2124 = vld [vmem:[#allocation7 + $0x1b8] sm:$0xff]
    %v2125 = vld [vmem:[#allocation7 + $0x1c0] sm:$0xff]
    %v2126 = vld [vmem:[#allocation7 + $0x1c8] sm:$0xff]
    %v2127 = vld [vmem:[#allocation7 + $0x1d0] sm:$0xff]
    %v2128 = vld [vmem:[#allocation7 + $0x1d8] sm:$0xff]
    %v2129 = vld [vmem:[#allocation7 + $0x1e0] sm:$0xff]
    %v2130 = vld [vmem:[#allocation7 + $0x1e8] sm:$0xff]
    %v2131 = vld [vmem:[#allocation7 + $0x1f0] sm:$0xff]
    %v2132 = vld [vmem:[#allocation7 + $0x1f8] sm:$0xff]
    %2133 = vmatprep.subr.mxu0 %v2070
    %2134 = vmatpush1.msra.mxu0 %v2069
    %2135 = vmatprep.subr.mxu0 %v2074
    %2136 = vmatpush1.msra.mxu0 %v2073
    %2137 = vmatprep.subr.mxu0 %v2078
    %2138 = vmatpush1.msra.mxu0 %v2077
    %2139 = vmatprep.subr.mxu0 %v2082
    %2140 = vmatpush1.msra.mxu0 %v2081
    %2141 = vmatprep.subr.mxu0 %v2086
    %2142 = vmatpush1.msra.mxu0 %v2085
    %2143 = vmatprep.subr.mxu0 %v2090
    %2144 = vmatpush1.msra.mxu0 %v2089
    %2145 = vmatprep.subr.mxu0 %v2094
    %2146 = vmatpush1.msra.mxu0 %v2093
    %2147 = vmatprep.subr.mxu0 %v2098
    %2148 = vmatpush1.msra.mxu0 %v2097
    %2149 = vmatprep.subr.mxu0 %v2102
    %2150 = vmatpush1.msra.mxu0 %v2101
    %2151 = vmatprep.subr.mxu0 %v2106
    %2152 = vmatpush1.msra.mxu0 %v2105
    %2153 = vmatprep.subr.mxu0 %v2110
    %2154 = vmatpush1.msra.mxu0 %v2109
    %2155 = vmatprep.subr.mxu0 %v2114
    %2156 = vmatpush1.msra.mxu0 %v2113
    %2157 = vmatprep.subr.mxu0 %v2118
    %2158 = vmatpush1.msra.mxu0 %v2117
    %2159 = vmatprep.subr.mxu0 %v2122
    %2160 = vmatpush1.msra.mxu0 %v2121
    %2161 = vmatprep.subr.mxu0 %v2126
    %2162 = vmatpush1.msra.mxu0 %v2125
    %2163 = vmatprep.subr.mxu0 %v2130
    %2164 = vmatpush1.msra.mxu0 %v2129
    %2165 = vmatprep.subr.mxu0 0.0
    %2166 = vmatpush1.msra.mxu0 0.0
    %2167 = vmatprep.subr.mxu0 0.0
    %2168 = vmatpush1.msra.mxu0 0.0
    %2169 = vmatprep.subr.mxu0 0.0
    %2170 = vmatpush1.msra.mxu0 0.0
    %2171 = vmatprep.subr.mxu0 0.0
    %2172 = vmatpush1.msra.mxu0 0.0
    %2173 = vmatprep.subr.mxu0 0.0
    %2174 = vmatpush1.msra.mxu0 0.0
    %2175 = vmatprep.subr.mxu0 0.0
    %2176 = vmatpush1.msra.mxu0 0.0
    %2177 = vmatprep.subr.mxu0 0.0
    %2178 = vmatpush1.msra.mxu0 0.0
    %2179 = vmatprep.subr.mxu0 0.0
    %2180 = vmatpush1.msra.mxu0 0.0
    %2181 = vmatprep.subr.mxu0 0.0
    %2182 = vmatpush1.msra.mxu0 0.0
    %2183 = vmatprep.subr.mxu0 0.0
    %2184 = vmatpush1.msra.mxu0 0.0
    %2185 = vmatprep.subr.mxu0 0.0
    %2186 = vmatpush1.msra.mxu0 0.0
    %2187 = vmatprep.subr.mxu0 0.0
    %2188 = vmatpush1.msra.mxu0 0.0
    %2189 = vmatprep.subr.mxu0 0.0
    %2190 = vmatpush1.msra.mxu0 0.0
    %2191 = vmatprep.subr.mxu0 0.0
    %2192 = vmatpush1.msra.mxu0 0.0
    %2193 = vmatprep.subr.mxu0 0.0
    %2194 = vmatpush1.msra.mxu0 0.0
    %2195 = vmatprep.subr.mxu0 0.0
    %2196 = vmatpush1.msra.mxu0 0.0
    %2197 = vmatprep.mubr.f32.mxu0 0.0
    %2198 = vmatmul.mubr.f32.gmra.mrb[0].mxu0 %v2068
    %v2199 = vpop.f32.mrb[0].mxu0
    %v2200 = vadd.f32 0.0, %v2199
    %v2201 = vpop.f32.mrb[0].mxu0
    %v2202 = vadd.f32 0.0, %v2201
    %2203 = vdwg.mxu0
    %2204 = vmatprep.subr.mxu0 %v2072
    %2205 = vmatpush1.msra.mxu0 %v2071
    %2206 = vmatprep.subr.mxu0 %v2076
    %2207 = vmatpush1.msra.mxu0 %v2075
    %2208 = vmatprep.subr.mxu0 %v2080
    %2209 = vmatpush1.msra.mxu0 %v2079
    %2210 = vmatprep.subr.mxu0 %v2084
    %2211 = vmatpush1.msra.mxu0 %v2083
    %2212 = vmatprep.subr.mxu0 %v2088
    %2213 = vmatpush1.msra.mxu0 %v2087
    %2214 = vmatprep.subr.mxu0 %v2092
    %2215 = vmatpush1.msra.mxu0 %v2091
    %2216 = vmatprep.subr.mxu0 %v2096
    %2217 = vmatpush1.msra.mxu0 %v2095
    %2218 = vmatprep.subr.mxu0 %v2100
    %2219 = vmatpush1.msra.mxu0 %v2099
    %2220 = vmatprep.subr.mxu0 %v2104
    %2221 = vmatpush1.msra.mxu0 %v2103
    %2222 = vmatprep.subr.mxu0 %v2108
    %2223 = vmatpush1.msra.mxu0 %v2107
    %2224 = vmatprep.subr.mxu0 %v2112
    %2225 = vmatpush1.msra.mxu0 %v2111
    %2226 = vmatprep.subr.mxu0 %v2116
    %2227 = vmatpush1.msra.mxu0 %v2115
    %2228 = vmatprep.subr.mxu0 %v2120
    %2229 = vmatpush1.msra.mxu0 %v2119
    %2230 = vmatprep.subr.mxu0 %v2124
    %2231 = vmatpush1.msra.mxu0 %v2123
    %2232 = vmatprep.subr.mxu0 %v2128
    %2233 = vmatpush1.msra.mxu0 %v2127
    %2234 = vmatprep.subr.mxu0 %v2132
    %2235 = vmatpush1.msra.mxu0 %v2131
    %2236 = vmatprep.subr.mxu0 0.0
    %2237 = vmatpush1.msra.mxu0 0.0
    %2238 = vmatprep.subr.mxu0 0.0
    %2239 = vmatpush1.msra.mxu0 0.0
    %2240 = vmatprep.subr.mxu0 0.0
    %2241 = vmatpush1.msra.mxu0 0.0
    %2242 = vmatprep.subr.mxu0 0.0
    %2243 = vmatpush1.msra.mxu0 0.0
    %2244 = vmatprep.subr.mxu0 0.0
    %2245 = vmatpush1.msra.mxu0 0.0
    %2246 = vmatprep.subr.mxu0 0.0
    %2247 = vmatpush1.msra.mxu0 0.0
    %2248 = vmatprep.subr.mxu0 0.0
    %2249 = vmatpush1.msra.mxu0 0.0
    %2250 = vmatprep.subr.mxu0 0.0
    %2251 = vmatpush1.msra.mxu0 0.0
    %2252 = vmatprep.subr.mxu0 0.0
    %2253 = vmatpush1.msra.mxu0 0.0
    %2254 = vmatprep.subr.mxu0 0.0
    %2255 = vmatpush1.msra.mxu0 0.0
    %2256 = vmatprep.subr.mxu0 0.0
    %2257 = vmatpush1.msra.mxu0 0.0
    %2258 = vmatprep.subr.mxu0 0.0
    %2259 = vmatpush1.msra.mxu0 0.0
    %2260 = vmatprep.subr.mxu0 0.0
    %2261 = vmatpush1.msra.mxu0 0.0
    %2262 = vmatprep.subr.mxu0 0.0
    %2263 = vmatpush1.msra.mxu0 0.0
    %2264 = vmatprep.subr.mxu0 0.0
    %2265 = vmatpush1.msra.mxu0 0.0
    %2266 = vmatprep.subr.mxu0 0.0
    %2267 = vmatpush1.msra.mxu0 0.0
    %2268 = vmatprep.mubr.f32.mxu0 0.0
    %2269 = vmatmul.mubr.f32.gmra.mrb[0].mxu0 %v2068
    %v2270 = vpop.f32.mrb[0].mxu0
    %v2271 = vadd.f32 0.0, %v2270
    %v2272 = vpop.f32.mrb[0].mxu0
    %v2273 = vadd.f32 0.0, %v2272
    %2274 = vdwg.mxu0
    %v2279 = vrot.slane %v2200, 6
    %v2280 = vrot.slane %v2202, 6
    %v2281 = vrot.slane %v2271, 6
    %v2282 = vrot.slane %v2273, 6
    %v2287 = vadd.f32 %v1958, %v2279
    %v2288 = vadd.f32 %v1960, %v2280
    %v2289 = vadd.f32 %v2035, %v2281
    %v2290 = vadd.f32 %v2037, %v2282
    %v2291 = vxor.u32 %v2287, 2147483648
    %v2292 = vmul.f32 %v2291, 1.442695
    %v2293 = vpow.pop %v2292
    %v2294 = vadd.f32 %v2293, 1.0
    %v2295 = vrcp.pop %v2294
    %v2296 = vmul.f32 1.0, %v2295
    %v2297 = vxor.u32 %v2288, 2147483648
    %v2298 = vmul.f32 %v2297, 1.442695
    %v2299 = vpow.pop %v2298
    %v2300 = vadd.f32 %v2299, 1.0
    %v2301 = vrcp.pop %v2300
    %v2302 = vmul.f32 1.0, %v2301
    %v2303 = vtanh.pop %v2289
    %v2304 = vxor.u32 %v2290, 2147483648
    %v2305 = vmul.f32 %v2304, 1.442695
    %v2306 = vpow.pop %v2305
    %v2307 = vadd.f32 %v2306, 1.0
    %v2308 = vrcp.pop %v2307
    %v2309 = vmul.f32 1.0, %v2308
    %v2311 = vrot.slane %v2066, 6
    %v2313 = vmul.f32 %v2302, %v2311
    %v2314 = vmul.f32 %v2296, %v2303
    %v2315 = vadd.f32 %v2313, %v2314
    %v2316 = vtanh.pop %v2315
    %v2317 = vmul.f32 %v2309, %v2316
    %v2319 = vrot.slane %v2317, 2
    %2321 = vmatprep.subr.mxu0 %v2070
    %2322 = vmatpush1.msra.mxu0 %v2069
    %2323 = vmatprep.subr.mxu0 %v2074
    %2324 = vmatpush1.msra.mxu0 %v2073
    %2325 = vmatprep.subr.mxu0 %v2078
    %2326 = vmatpush1.msra.mxu0 %v2077
    %2327 = vmatprep.subr.mxu0 %v2082
    %2328 = vmatpush1.msra.mxu0 %v2081
    %2329 = vmatprep.subr.mxu0 %v2086
    %2330 = vmatpush1.msra.mxu0 %v2085
    %2331 = vmatprep.subr.mxu0 %v2090
    %2332 = vmatpush1.msra.mxu0 %v2089
    %2333 = vmatprep.subr.mxu0 %v2094
    %2334 = vmatpush1.msra.mxu0 %v2093
    %2335 = vmatprep.subr.mxu0 %v2098
    %2336 = vmatpush1.msra.mxu0 %v2097
    %2337 = vmatprep.subr.mxu0 %v2102
    %2338 = vmatpush1.msra.mxu0 %v2101
    %2339 = vmatprep.subr.mxu0 %v2106
    %2340 = vmatpush1.msra.mxu0 %v2105
    %2341 = vmatprep.subr.mxu0 %v2110
    %2342 = vmatpush1.msra.mxu0 %v2109
    %2343 = vmatprep.subr.mxu0 %v2114
    %2344 = vmatpush1.msra.mxu0 %v2113
    %2345 = vmatprep.subr.mxu0 %v2118
    %2346 = vmatpush1.msra.mxu0 %v2117
    %2347 = vmatprep.subr.mxu0 %v2122
    %2348 = vmatpush1.msra.mxu0 %v2121
    %2349 = vmatprep.subr.mxu0 %v2126
    %2350 = vmatpush1.msra.mxu0 %v2125
    %2351 = vmatprep.subr.mxu0 %v2130
    %2352 = vmatpush1.msra.mxu0 %v2129
    %2353 = vmatprep.subr.mxu0 0.0
    %2354 = vmatpush1.msra.mxu0 0.0
    %2355 = vmatprep.subr.mxu0 0.0
    %2356 = vmatpush1.msra.mxu0 0.0
    %2357 = vmatprep.subr.mxu0 0.0
    %2358 = vmatpush1.msra.mxu0 0.0
    %2359 = vmatprep.subr.mxu0 0.0
    %2360 = vmatpush1.msra.mxu0 0.0
    %2361 = vmatprep.subr.mxu0 0.0
    %2362 = vmatpush1.msra.mxu0 0.0
    %2363 = vmatprep.subr.mxu0 0.0
    %2364 = vmatpush1.msra.mxu0 0.0
    %2365 = vmatprep.subr.mxu0 0.0
    %2366 = vmatpush1.msra.mxu0 0.0
    %2367 = vmatprep.subr.mxu0 0.0
    %2368 = vmatpush1.msra.mxu0 0.0
    %2369 = vmatprep.subr.mxu0 0.0
    %2370 = vmatpush1.msra.mxu0 0.0
    %2371 = vmatprep.subr.mxu0 0.0
    %2372 = vmatpush1.msra.mxu0 0.0
    %2373 = vmatprep.subr.mxu0 0.0
    %2374 = vmatpush1.msra.mxu0 0.0
    %2375 = vmatprep.subr.mxu0 0.0
    %2376 = vmatpush1.msra.mxu0 0.0
    %2377 = vmatprep.subr.mxu0 0.0
    %2378 = vmatpush1.msra.mxu0 0.0
    %2379 = vmatprep.subr.mxu0 0.0
    %2380 = vmatpush1.msra.mxu0 0.0
    %2381 = vmatprep.subr.mxu0 0.0
    %2382 = vmatpush1.msra.mxu0 0.0
    %2383 = vmatprep.subr.mxu0 0.0
    %2384 = vmatpush1.msra.mxu0 0.0
    %2385 = vmatprep.mubr.f32.mxu0 0.0
    %2386 = vmatmul.mubr.f32.gmra.mrb[0].mxu0 %v2319
    %v2387 = vpop.f32.mrb[0].mxu0
    %v2388 = vadd.f32 0.0, %v2387
    %v2389 = vpop.f32.mrb[0].mxu0
    %v2390 = vadd.f32 0.0, %v2389
    %2391 = vdwg.mxu0
    %2392 = vmatprep.subr.mxu0 %v2072
    %2393 = vmatpush1.msra.mxu0 %v2071
    %2394 = vmatprep.subr.mxu0 %v2076
    %2395 = vmatpush1.msra.mxu0 %v2075
    %2396 = vmatprep.subr.mxu0 %v2080
    %2397 = vmatpush1.msra.mxu0 %v2079
    %2398 = vmatprep.subr.mxu0 %v2084
    %2399 = vmatpush1.msra.mxu0 %v2083
    %2400 = vmatprep.subr.mxu0 %v2088
    %2401 = vmatpush1.msra.mxu0 %v2087
    %2402 = vmatprep.subr.mxu0 %v2092
    %2403 = vmatpush1.msra.mxu0 %v2091
    %2404 = vmatprep.subr.mxu0 %v2096
    %2405 = vmatpush1.msra.mxu0 %v2095
    %2406 = vmatprep.subr.mxu0 %v2100
    %2407 = vmatpush1.msra.mxu0 %v2099
    %2408 = vmatprep.subr.mxu0 %v2104
    %2409 = vmatpush1.msra.mxu0 %v2103
    %2410 = vmatprep.subr.mxu0 %v2108
    %2411 = vmatpush1.msra.mxu0 %v2107
    %2412 = vmatprep.subr.mxu0 %v2112
    %2413 = vmatpush1.msra.mxu0 %v2111
    %2414 = vmatprep.subr.mxu0 %v2116
    %2415 = vmatpush1.msra.mxu0 %v2115
    %2416 = vmatprep.subr.mxu0 %v2120
    %2417 = vmatpush1.msra.mxu0 %v2119
    %2418 = vmatprep.subr.mxu0 %v2124
    %2419 = vmatpush1.msra.mxu0 %v2123
    %2420 = vmatprep.subr.mxu0 %v2128
    %2421 = vmatpush1.msra.mxu0 %v2127
    %2422 = vmatprep.subr.mxu0 %v2132
    %2423 = vmatpush1.msra.mxu0 %v2131
    %2424 = vmatprep.subr.mxu0 0.0
    %2425 = vmatpush1.msra.mxu0 0.0
    %2426 = vmatprep.subr.mxu0 0.0
    %2427 = vmatpush1.msra.mxu0 0.0
    %2428 = vmatprep.subr.mxu0 0.0
    %2429 = vmatpush1.msra.mxu0 0.0
    %2430 = vmatprep.subr.mxu0 0.0
    %2431 = vmatpush1.msra.mxu0 0.0
    %2432 = vmatprep.subr.mxu0 0.0
    %2433 = vmatpush1.msra.mxu0 0.0
    %2434 = vmatprep.subr.mxu0 0.0
    %2435 = vmatpush1.msra.mxu0 0.0
    %2436 = vmatprep.subr.mxu0 0.0
    %2437 = vmatpush1.msra.mxu0 0.0
    %2438 = vmatprep.subr.mxu0 0.0
    %2439 = vmatpush1.msra.mxu0 0.0
    %2440 = vmatprep.subr.mxu0 0.0
    %2441 = vmatpush1.msra.mxu0 0.0
    %2442 = vmatprep.subr.mxu0 0.0
    %2443 = vmatpush1.msra.mxu0 0.0
    %2444 = vmatprep.subr.mxu0 0.0
    %2445 = vmatpush1.msra.mxu0 0.0
    %2446 = vmatprep.subr.mxu0 0.0
    %2447 = vmatpush1.msra.mxu0 0.0
    %2448 = vmatprep.subr.mxu0 0.0
    %2449 = vmatpush1.msra.mxu0 0.0
    %2450 = vmatprep.subr.mxu0 0.0
    %2451 = vmatpush1.msra.mxu0 0.0
    %2452 = vmatprep.subr.mxu0 0.0
    %2453 = vmatpush1.msra.mxu0 0.0
    %2454 = vmatprep.subr.mxu0 0.0
    %2455 = vmatpush1.msra.mxu0 0.0
    %2456 = vmatprep.mubr.f32.mxu0 0.0
    %2457 = vmatmul.mubr.f32.gmra.mrb[0].mxu0 %v2319
    %v2458 = vpop.f32.mrb[0].mxu0
    %v2459 = vadd.f32 0.0, %v2458
    %v2460 = vpop.f32.mrb[0].mxu0
    %v2461 = vadd.f32 0.0, %v2460
    %2462 = vdwg.mxu0
    %v2467 = vrot.slane %v2388, 4
    %v2468 = vrot.slane %v2390, 4
    %v2469 = vrot.slane %v2459, 4
    %v2470 = vrot.slane %v2461, 4
    %v2475 = vadd.f32 %v1958, %v2467
    %v2476 = vadd.f32 %v1960, %v2468
    %v2477 = vadd.f32 %v2035, %v2469
    %v2478 = vadd.f32 %v2037, %v2470
    %v2479 = vxor.u32 %v2475, 2147483648
    %v2480 = vmul.f32 %v2479, 1.442695
    %v2481 = vpow.pop %v2480
    %v2482 = vadd.f32 %v2481, 1.0
    %v2483 = vrcp.pop %v2482
    %v2484 = vmul.f32 1.0, %v2483
    %v2485 = vxor.u32 %v2476, 2147483648
    %v2486 = vmul.f32 %v2485, 1.442695
    %v2487 = vpow.pop %v2486
    %v2488 = vadd.f32 %v2487, 1.0
    %v2489 = vrcp.pop %v2488
    %v2490 = vmul.f32 1.0, %v2489
    %v2491 = vtanh.pop %v2477
    %v2492 = vxor.u32 %v2478, 2147483648
    %v2493 = vmul.f32 %v2492, 1.442695
    %v2494 = vpow.pop %v2493
    %v2495 = vadd.f32 %v2494, 1.0
    %v2496 = vrcp.pop %v2495
    %v2497 = vmul.f32 1.0, %v2496
    %v2499 = vrot.slane %v2315, 6
    %v2501 = vmul.f32 %v2490, %v2499
    %v2502 = vmul.f32 %v2484, %v2491
    %v2503 = vadd.f32 %v2501, %v2502
    %v2504 = vtanh.pop %v2503
    %v2505 = vmul.f32 %v2497, %v2504
    %v2507 = vrot.slane %v2505, 4
    %2509 = vmatprep.subr.mxu0 %v2070
    %2510 = vmatpush1.msra.mxu0 %v2069
    %2511 = vmatprep.subr.mxu0 %v2074
    %2512 = vmatpush1.msra.mxu0 %v2073
    %2513 = vmatprep.subr.mxu0 %v2078
    %2514 = vmatpush1.msra.mxu0 %v2077
    %2515 = vmatprep.subr.mxu0 %v2082
    %2516 = vmatpush1.msra.mxu0 %v2081
    %2517 = vmatprep.subr.mxu0 %v2086
    %2518 = vmatpush1.msra.mxu0 %v2085
    %2519 = vmatprep.subr.mxu0 %v2090
    %2520 = vmatpush1.msra.mxu0 %v2089
    %2521 = vmatprep.subr.mxu0 %v2094
    %2522 = vmatpush1.msra.mxu0 %v2093
    %2523 = vmatprep.subr.mxu0 %v2098
    %2524 = vmatpush1.msra.mxu0 %v2097
    %2525 = vmatprep.subr.mxu0 %v2102
    %2526 = vmatpush1.msra.mxu0 %v2101
    %2527 = vmatprep.subr.mxu0 %v2106
    %2528 = vmatpush1.msra.mxu0 %v2105
    %2529 = vmatprep.subr.mxu0 %v2110
    %2530 = vmatpush1.msra.mxu0 %v2109
    %2531 = vmatprep.subr.mxu0 %v2114
    %2532 = vmatpush1.msra.mxu0 %v2113
    %2533 = vmatprep.subr.mxu0 %v2118
    %2534 = vmatpush1.msra.mxu0 %v2117
    %2535 = vmatprep.subr.mxu0 %v2122
    %2536 = vmatpush1.msra.mxu0 %v2121
    %2537 = vmatprep.subr.mxu0 %v2126
    %2538 = vmatpush1.msra.mxu0 %v2125
    %2539 = vmatprep.subr.mxu0 %v2130
    %2540 = vmatpush1.msra.mxu0 %v2129
    %2541 = vmatprep.subr.mxu0 0.0
    %2542 = vmatpush1.msra.mxu0 0.0
    %2543 = vmatprep.subr.mxu0 0.0
    %2544 = vmatpush1.msra.mxu0 0.0
    %2545 = vmatprep.subr.mxu0 0.0
    %2546 = vmatpush1.msra.mxu0 0.0
    %2547 = vmatprep.subr.mxu0 0.0
    %2548 = vmatpush1.msra.mxu0 0.0
    %2549 = vmatprep.subr.mxu0 0.0
    %2550 = vmatpush1.msra.mxu0 0.0
    %2551 = vmatprep.subr.mxu0 0.0
    %2552 = vmatpush1.msra.mxu0 0.0
    %2553 = vmatprep.subr.mxu0 0.0
    %2554 = vmatpush1.msra.mxu0 0.0
    %2555 = vmatprep.subr.mxu0 0.0
    %2556 = vmatpush1.msra.mxu0 0.0
    %2557 = vmatprep.subr.mxu0 0.0
    %2558 = vmatpush1.msra.mxu0 0.0
    %2559 = vmatprep.subr.mxu0 0.0
    %2560 = vmatpush1.msra.mxu0 0.0
    %2561 = vmatprep.subr.mxu0 0.0
    %2562 = vmatpush1.msra.mxu0 0.0
    %2563 = vmatprep.subr.mxu0 0.0
    %2564 = vmatpush1.msra.mxu0 0.0
    %2565 = vmatprep.subr.mxu0 0.0
    %2566 = vmatpush1.msra.mxu0 0.0
    %2567 = vmatprep.subr.mxu0 0.0
    %2568 = vmatpush1.msra.mxu0 0.0
    %2569 = vmatprep.subr.mxu0 0.0
    %2570 = vmatpush1.msra.mxu0 0.0
    %2571 = vmatprep.subr.mxu0 0.0
    %2572 = vmatpush1.msra.mxu0 0.0
    %2573 = vmatprep.mubr.f32.mxu0 0.0
    %2574 = vmatmul.mubr.f32.gmra.mrb[0].mxu0 %v2507
    %v2575 = vpop.f32.mrb[0].mxu0
    %v2576 = vadd.f32 0.0, %v2575
    %v2577 = vpop.f32.mrb[0].mxu0
    %v2578 = vadd.f32 0.0, %v2577
    %2579 = vdwg.mxu0
    %2580 = vmatprep.subr.mxu0 %v2072
    %2581 = vmatpush1.msra.mxu0 %v2071
    %2582 = vmatprep.subr.mxu0 %v2076
    %2583 = vmatpush1.msra.mxu0 %v2075
    %2584 = vmatprep.subr.mxu0 %v2080
    %2585 = vmatpush1.msra.mxu0 %v2079
    %2586 = vmatprep.subr.mxu0 %v2084
    %2587 = vmatpush1.msra.mxu0 %v2083
    %2588 = vmatprep.subr.mxu0 %v2088
    %2589 = vmatpush1.msra.mxu0 %v2087
    %2590 = vmatprep.subr.mxu0 %v2092
    %2591 = vmatpush1.msra.mxu0 %v2091
    %2592 = vmatprep.subr.mxu0 %v2096
    %2593 = vmatpush1.msra.mxu0 %v2095
    %2594 = vmatprep.subr.mxu0 %v2100
    %2595 = vmatpush1.msra.mxu0 %v2099
    %2596 = vmatprep.subr.mxu0 %v2104
    %2597 = vmatpush1.msra.mxu0 %v2103
    %2598 = vmatprep.subr.mxu0 %v2108
    %2599 = vmatpush1.msra.mxu0 %v2107
    %2600 = vmatprep.subr.mxu0 %v2112
    %2601 = vmatpush1.msra.mxu0 %v2111
    %2602 = vmatprep.subr.mxu0 %v2116
    %2603 = vmatpush1.msra.mxu0 %v2115
    %2604 = vmatprep.subr.mxu0 %v2120
    %2605 = vmatpush1.msra.mxu0 %v2119
    %2606 = vmatprep.subr.mxu0 %v2124
    %2607 = vmatpush1.msra.mxu0 %v2123
    %2608 = vmatprep.subr.mxu0 %v2128
    %2609 = vmatpush1.msra.mxu0 %v2127
    %2610 = vmatprep.subr.mxu0 %v2132
    %2611 = vmatpush1.msra.mxu0 %v2131
    %2612 = vmatprep.subr.mxu0 0.0
    %2613 = vmatpush1.msra.mxu0 0.0
    %2614 = vmatprep.subr.mxu0 0.0
    %2615 = vmatpush1.msra.mxu0 0.0
    %2616 = vmatprep.subr.mxu0 0.0
    %2617 = vmatpush1.msra.mxu0 0.0
    %2618 = vmatprep.subr.mxu0 0.0
    %2619 = vmatpush1.msra.mxu0 0.0
    %2620 = vmatprep.subr.mxu0 0.0
    %2621 = vmatpush1.msra.mxu0 0.0
    %2622 = vmatprep.subr.mxu0 0.0
    %2623 = vmatpush1.msra.mxu0 0.0
    %2624 = vmatprep.subr.mxu0 0.0
    %2625 = vmatpush1.msra.mxu0 0.0
    %2626 = vmatprep.subr.mxu0 0.0
    %2627 = vmatpush1.msra.mxu0 0.0
    %2628 = vmatprep.subr.mxu0 0.0
    %2629 = vmatpush1.msra.mxu0 0.0
    %2630 = vmatprep.subr.mxu0 0.0
    %2631 = vmatpush1.msra.mxu0 0.0
    %2632 = vmatprep.subr.mxu0 0.0
    %2633 = vmatpush1.msra.mxu0 0.0
    %2634 = vmatprep.subr.mxu0 0.0
    %2635 = vmatpush1.msra.mxu0 0.0
    %2636 = vmatprep.subr.mxu0 0.0
    %2637 = vmatpush1.msra.mxu0 0.0
    %2638 = vmatprep.subr.mxu0 0.0
    %2639 = vmatpush1.msra.mxu0 0.0
    %2640 = vmatprep.subr.mxu0 0.0
    %2641 = vmatpush1.msra.mxu0 0.0
    %2642 = vmatprep.subr.mxu0 0.0
    %2643 = vmatpush1.msra.mxu0 0.0
    %2644 = vmatprep.mubr.f32.mxu0 0.0
    %2645 = vmatmul.mubr.f32.gmra.mrb[0].mxu0 %v2507
    %v2646 = vpop.f32.mrb[0].mxu0
    %v2647 = vadd.f32 0.0, %v2646
    %v2648 = vpop.f32.mrb[0].mxu0
    %v2649 = vadd.f32 0.0, %v2648
    %2650 = vdwg.mxu0
    %v2655 = vrot.slane %v2576, 2
    %v2656 = vrot.slane %v2578, 2
    %v2657 = vrot.slane %v2647, 2
    %v2658 = vrot.slane %v2649, 2
    %v2663 = vadd.f32 %v1958, %v2655
    %v2664 = vadd.f32 %v1960, %v2656
    %v2665 = vadd.f32 %v2035, %v2657
    %v2666 = vadd.f32 %v2037, %v2658
    %v2667 = vxor.u32 %v2663, 2147483648
    %v2668 = vmul.f32 %v2667, 1.442695
    %v2669 = vpow.pop %v2668
    %v2670 = vadd.f32 %v2669, 1.0
    %v2671 = vrcp.pop %v2670
    %v2672 = vmul.f32 1.0, %v2671
    %v2673 = vxor.u32 %v2664, 2147483648
    %v2674 = vmul.f32 %v2673, 1.442695
    %v2675 = vpow.pop %v2674
    %v2676 = vadd.f32 %v2675, 1.0
    %v2677 = vrcp.pop %v2676
    %v2678 = vmul.f32 1.0, %v2677
    %v2679 = vtanh.pop %v2665
    %v2680 = vxor.u32 %v2666, 2147483648
    %v2681 = vmul.f32 %v2680, 1.442695
    %v2682 = vpow.pop %v2681
    %v2683 = vadd.f32 %v2682, 1.0
    %v2684 = vrcp.pop %v2683
    %v2685 = vmul.f32 1.0, %v2684
    %v2687 = vrot.slane %v2503, 6
    %v2689 = vmul.f32 %v2678, %v2687
    %v2690 = vmul.f32 %v2672, %v2679
    %v2691 = vadd.f32 %v2689, %v2690
    %v2692 = vtanh.pop %v2691
    %v2693 = vmul.f32 %v2685, %v2692
    %v2695 = vrot.slane %v2693, 6
    %2697 = vmatprep.subr.mxu0 %v2070
    %2698 = vmatpush1.msra.mxu0 %v2069
    %2699 = vmatprep.subr.mxu0 %v2074
    %2700 = vmatpush1.msra.mxu0 %v2073
    %2701 = vmatprep.subr.mxu0 %v2078
    %2702 = vmatpush1.msra.mxu0 %v2077
    %2703 = vmatprep.subr.mxu0 %v2082
    %2704 = vmatpush1.msra.mxu0 %v2081
    %2705 = vmatprep.subr.mxu0 %v2086
    %2706 = vmatpush1.msra.mxu0 %v2085
    %2707 = vmatprep.subr.mxu0 %v2090
    %2708 = vmatpush1.msra.mxu0 %v2089
    %2709 = vmatprep.subr.mxu0 %v2094
    %2710 = vmatpush1.msra.mxu0 %v2093
    %2711 = vmatprep.subr.mxu0 %v2098
    %2712 = vmatpush1.msra.mxu0 %v2097
    %2713 = vmatprep.subr.mxu0 %v2102
    %2714 = vmatpush1.msra.mxu0 %v2101
    %2715 = vmatprep.subr.mxu0 %v2106
    %2716 = vmatpush1.msra.mxu0 %v2105
    %2717 = vmatprep.subr.mxu0 %v2110
    %2718 = vmatpush1.msra.mxu0 %v2109
    %2719 = vmatprep.subr.mxu0 %v2114
    %2720 = vmatpush1.msra.mxu0 %v2113
    %2721 = vmatprep.subr.mxu0 %v2118
    %2722 = vmatpush1.msra.mxu0 %v2117
    %2723 = vmatprep.subr.mxu0 %v2122
    %2724 = vmatpush1.msra.mxu0 %v2121
    %2725 = vmatprep.subr.mxu0 %v2126
    %2726 = vmatpush1.msra.mxu0 %v2125
    %2727 = vmatprep.subr.mxu0 %v2130
    %2728 = vmatpush1.msra.mxu0 %v2129
    %2729 = vmatprep.subr.mxu0 0.0
    %2730 = vmatpush1.msra.mxu0 0.0
    %2731 = vmatprep.subr.mxu0 0.0
    %2732 = vmatpush1.msra.mxu0 0.0
    %2733 = vmatprep.subr.mxu0 0.0
    %2734 = vmatpush1.msra.mxu0 0.0
    %2735 = vmatprep.subr.mxu0 0.0
    %2736 = vmatpush1.msra.mxu0 0.0
    %2737 = vmatprep.subr.mxu0 0.0
    %2738 = vmatpush1.msra.mxu0 0.0
    %2739 = vmatprep.subr.mxu0 0.0
    %2740 = vmatpush1.msra.mxu0 0.0
    %2741 = vmatprep.subr.mxu0 0.0
    %2742 = vmatpush1.msra.mxu0 0.0
    %2743 = vmatprep.subr.mxu0 0.0
    %2744 = vmatpush1.msra.mxu0 0.0
    %2745 = vmatprep.subr.mxu0 0.0
    %2746 = vmatpush1.msra.mxu0 0.0
    %2747 = vmatprep.subr.mxu0 0.0
    %2748 = vmatpush1.msra.mxu0 0.0
    %2749 = vmatprep.subr.mxu0 0.0
    %2750 = vmatpush1.msra.mxu0 0.0
    %2751 = vmatprep.subr.mxu0 0.0
    %2752 = vmatpush1.msra.mxu0 0.0
    %2753 = vmatprep.subr.mxu0 0.0
    %2754 = vmatpush1.msra.mxu0 0.0
    %2755 = vmatprep.subr.mxu0 0.0
    %2756 = vmatpush1.msra.mxu0 0.0
    %2757 = vmatprep.subr.mxu0 0.0
    %2758 = vmatpush1.msra.mxu0 0.0
    %2759 = vmatprep.subr.mxu0 0.0
    %2760 = vmatpush1.msra.mxu0 0.0
    %2761 = vmatprep.mubr.f32.mxu0 0.0
    %2762 = vmatmul.mubr.f32.gmra.mrb[0].mxu0 %v2695
    %v2763 = vpop.f32.mrb[0].mxu0
    %v2764 = vadd.f32 0.0, %v2763
    %v2765 = vpop.f32.mrb[0].mxu0
    %v2766 = vadd.f32 0.0, %v2765
    %2767 = vdwg.mxu0
    %2768 = vmatprep.subr.mxu0 %v2072
    %2769 = vmatpush1.msra.mxu0 %v2071
    %2770 = vmatprep.subr.mxu0 %v2076
    %2771 = vmatpush1.msra.mxu0 %v2075
    %2772 = vmatprep.subr.mxu0 %v2080
    %2773 = vmatpush1.msra.mxu0 %v2079
    %2774 = vmatprep.subr.mxu0 %v2084
    %2775 = vmatpush1.msra.mxu0 %v2083
    %2776 = vmatprep.subr.mxu0 %v2088
    %2777 = vmatpush1.msra.mxu0 %v2087
    %2778 = vmatprep.subr.mxu0 %v2092
    %2779 = vmatpush1.msra.mxu0 %v2091
    %2780 = vmatprep.subr.mxu0 %v2096
    %2781 = vmatpush1.msra.mxu0 %v2095
    %2782 = vmatprep.subr.mxu0 %v2100
    %2783 = vmatpush1.msra.mxu0 %v2099
    %2784 = vmatprep.subr.mxu0 %v2104
    %2785 = vmatpush1.msra.mxu0 %v2103
    %2786 = vmatprep.subr.mxu0 %v2108
    %2787 = vmatpush1.msra.mxu0 %v2107
    %2788 = vmatprep.subr.mxu0 %v2112
    %2789 = vmatpush1.msra.mxu0 %v2111
    %2790 = vmatprep.subr.mxu0 %v2116
    %2791 = vmatpush1.msra.mxu0 %v2115
    %2792 = vmatprep.subr.mxu0 %v2120
    %2793 = vmatpush1.msra.mxu0 %v2119
    %2794 = vmatprep.subr.mxu0 %v2124
    %2795 = vmatpush1.msra.mxu0 %v2123
    %2796 = vmatprep.subr.mxu0 %v2128
    %2797 = vmatpush1.msra.mxu0 %v2127
    %2798 = vmatprep.subr.mxu0 %v2132
    %2799 = vmatpush1.msra.mxu0 %v2131
    %2800 = vmatprep.subr.mxu0 0.0
    %2801 = vmatpush1.msra.mxu0 0.0
    %2802 = vmatprep.subr.mxu0 0.0
    %2803 = vmatpush1.msra.mxu0 0.0
    %2804 = vmatprep.subr.mxu0 0.0
    %2805 = vmatpush1.msra.mxu0 0.0
    %2806 = vmatprep.subr.mxu0 0.0
    %2807 = vmatpush1.msra.mxu0 0.0
    %2808 = vmatprep.subr.mxu0 0.0
    %2809 = vmatpush1.msra.mxu0 0.0
    %2810 = vmatprep.subr.mxu0 0.0
    %2811 = vmatpush1.msra.mxu0 0.0
    %2812 = vmatprep.subr.mxu0 0.0
    %2813 = vmatpush1.msra.mxu0 0.0
    %2814 = vmatprep.subr.mxu0 0.0
    %2815 = vmatpush1.msra.mxu0 0.0
    %2816 = vmatprep.subr.mxu0 0.0
    %2817 = vmatpush1.msra.mxu0 0.0
    %2818 = vmatprep.subr.mxu0 0.0
    %2819 = vmatpush1.msra.mxu0 0.0
    %2820 = vmatprep.subr.mxu0 0.0
    %2821 = vmatpush1.msra.mxu0 0.0
    %2822 = vmatprep.subr.mxu0 0.0
    %2823 = vmatpush1.msra.mxu0 0.0
    %2824 = vmatprep.subr.mxu0 0.0
    %2825 = vmatpush1.msra.mxu0 0.0
    %2826 = vmatprep.subr.mxu0 0.0
    %2827 = vmatpush1.msra.mxu0 0.0
    %2828 = vmatprep.subr.mxu0 0.0
    %2829 = vmatpush1.msra.mxu0 0.0
    %2830 = vmatprep.subr.mxu0 0.0
    %2831 = vmatpush1.msra.mxu0 0.0
    %2832 = vmatprep.mubr.f32.mxu0 0.0
    %2833 = vmatmul.mubr.f32.gmra.mrb[0].mxu0 %v2695
    %v2834 = vpop.f32.mrb[0].mxu0
    %v2835 = vadd.f32 0.0, %v2834
    %v2836 = vpop.f32.mrb[0].mxu0
    %v2837 = vadd.f32 0.0, %v2836
    %2838 = vdwg.mxu0
    %v2839 = vadd.f32 %v1964, %v2764
    %v2840 = vadd.f32 %v1966, %v2766
    %v2841 = vadd.f32 %v2041, %v2835
    %v2842 = vadd.f32 %v2043, %v2837
    %v2843 = vxor.u32 %v2839, 2147483648
    %v2844 = vmul.f32 %v2843, 1.442695
    %v2845 = vpow.pop %v2844
    %v2846 = vadd.f32 %v2845, 1.0
    %v2847 = vrcp.pop %v2846
    %v2848 = vmul.f32 1.0, %v2847
    %v2849 = vxor.u32 %v2840, 2147483648
    %v2850 = vmul.f32 %v2849, 1.442695
    %v2851 = vpow.pop %v2850
    %v2852 = vadd.f32 %v2851, 1.0
    %v2853 = vrcp.pop %v2852
    %v2854 = vmul.f32 1.0, %v2853
    %v2855 = vtanh.pop %v2841
    %v2856 = vxor.u32 %v2842, 2147483648
    %v2857 = vmul.f32 %v2856, 1.442695
    %v2858 = vpow.pop %v2857
    %v2859 = vadd.f32 %v2858, 1.0
    %v2860 = vrcp.pop %v2859
    %v2861 = vmul.f32 1.0, %v2860
    %v2863 = vrot.slane %v2691, 6
    %v2865 = vmul.f32 %v2854, %v2863
    %v2866 = vmul.f32 %v2848, %v2855
    %v2867 = vadd.f32 %v2865, %v2866
    %v2868 = vtanh.pop %v2867
    %v2869 = vmul.f32 %v2861, %v2868
    %2870 = vmatprep.subr.mxu0 %v2070
    %2871 = vmatpush1.msra.mxu0 %v2069
    %2872 = vmatprep.subr.mxu0 %v2074
    %2873 = vmatpush1.msra.mxu0 %v2073
    %2874 = vmatprep.subr.mxu0 %v2078
    %2875 = vmatpush1.msra.mxu0 %v2077
    %2876 = vmatprep.subr.mxu0 %v2082
    %2877 = vmatpush1.msra.mxu0 %v2081
    %2878 = vmatprep.subr.mxu0 %v2086
    %2879 = vmatpush1.msra.mxu0 %v2085
    %2880 = vmatprep.subr.mxu0 %v2090
    %2881 = vmatpush1.msra.mxu0 %v2089
    %2882 = vmatprep.subr.mxu0 %v2094
    %2883 = vmatpush1.msra.mxu0 %v2093
    %2884 = vmatprep.subr.mxu0 %v2098
    %2885 = vmatpush1.msra.mxu0 %v2097
    %2886 = vmatprep.subr.mxu0 %v2102
    %2887 = vmatpush1.msra.mxu0 %v2101
    %2888 = vmatprep.subr.mxu0 %v2106
    %2889 = vmatpush1.msra.mxu0 %v2105
    %2890 = vmatprep.subr.mxu0 %v2110
    %2891 = vmatpush1.msra.mxu0 %v2109
    %2892 = vmatprep.subr.mxu0 %v2114
    %2893 = vmatpush1.msra.mxu0 %v2113
    %2894 = vmatprep.subr.mxu0 %v2118
    %2895 = vmatpush1.msra.mxu0 %v2117
    %2896 = vmatprep.subr.mxu0 %v2122
    %2897 = vmatpush1.msra.mxu0 %v2121
    %2898 = vmatprep.subr.mxu0 %v2126
    %2899 = vmatpush1.msra.mxu0 %v2125
    %2900 = vmatprep.subr.mxu0 %v2130
    %2901 = vmatpush1.msra.mxu0 %v2129
    %2902 = vmatprep.subr.mxu0 0.0
    %2903 = vmatpush1.msra.mxu0 0.0
    %2904 = vmatprep.subr.mxu0 0.0
    %2905 = vmatpush1.msra.mxu0 0.0
    %2906 = vmatprep.subr.mxu0 0.0
    %2907 = vmatpush1.msra.mxu0 0.0
    %2908 = vmatprep.subr.mxu0 0.0
    %2909 = vmatpush1.msra.mxu0 0.0
    %2910 = vmatprep.subr.mxu0 0.0
    %2911 = vmatpush1.msra.mxu0 0.0
    %2912 = vmatprep.subr.mxu0 0.0
    %2913 = vmatpush1.msra.mxu0 0.0
    %2914 = vmatprep.subr.mxu0 0.0
    %2915 = vmatpush1.msra.mxu0 0.0
    %2916 = vmatprep.subr.mxu0 0.0
    %2917 = vmatpush1.msra.mxu0 0.0
    %2918 = vmatprep.subr.mxu0 0.0
    %2919 = vmatpush1.msra.mxu0 0.0
    %2920 = vmatprep.subr.mxu0 0.0
    %2921 = vmatpush1.msra.mxu0 0.0
    %2922 = vmatprep.subr.mxu0 0.0
    %2923 = vmatpush1.msra.mxu0 0.0
    %2924 = vmatprep.subr.mxu0 0.0
    %2925 = vmatpush1.msra.mxu0 0.0
    %2926 = vmatprep.subr.mxu0 0.0
    %2927 = vmatpush1.msra.mxu0 0.0
    %2928 = vmatprep.subr.mxu0 0.0
    %2929 = vmatpush1.msra.mxu0 0.0
    %2930 = vmatprep.subr.mxu0 0.0
    %2931 = vmatpush1.msra.mxu0 0.0
    %2932 = vmatprep.subr.mxu0 0.0
    %2933 = vmatpush1.msra.mxu0 0.0
    %2934 = vmatprep.mubr.f32.mxu0 0.0
    %2935 = vmatmul.mubr.f32.gmra.mrb[0].mxu0 %v2869
    %v2936 = vpop.f32.mrb[0].mxu0
    %v2937 = vadd.f32 0.0, %v2936
    %v2938 = vpop.f32.mrb[0].mxu0
    %v2939 = vadd.f32 0.0, %v2938
    %2940 = vdwg.mxu0
    %2941 = vmatprep.subr.mxu0 %v2072
    %2942 = vmatpush1.msra.mxu0 %v2071
    %2943 = vmatprep.subr.mxu0 %v2076
    %2944 = vmatpush1.msra.mxu0 %v2075
    %2945 = vmatprep.subr.mxu0 %v2080
    %2946 = vmatpush1.msra.mxu0 %v2079
    %2947 = vmatprep.subr.mxu0 %v2084
    %2948 = vmatpush1.msra.mxu0 %v2083
    %2949 = vmatprep.subr.mxu0 %v2088
    %2950 = vmatpush1.msra.mxu0 %v2087
    %2951 = vmatprep.subr.mxu0 %v2092
    %2952 = vmatpush1.msra.mxu0 %v2091
    %2953 = vmatprep.subr.mxu0 %v2096
    %2954 = vmatpush1.msra.mxu0 %v2095
    %2955 = vmatprep.subr.mxu0 %v2100
    %2956 = vmatpush1.msra.mxu0 %v2099
    %2957 = vmatprep.subr.mxu0 %v2104
    %2958 = vmatpush1.msra.mxu0 %v2103
    %2959 = vmatprep.subr.mxu0 %v2108
    %2960 = vmatpush1.msra.mxu0 %v2107
    %2961 = vmatprep.subr.mxu0 %v2112
    %2962 = vmatpush1.msra.mxu0 %v2111
    %2963 = vmatprep.subr.mxu0 %v2116
    %2964 = vmatpush1.msra.mxu0 %v2115
    %2965 = vmatprep.subr.mxu0 %v2120
    %2966 = vmatpush1.msra.mxu0 %v2119
    %2967 = vmatprep.subr.mxu0 %v2124
    %2968 = vmatpush1.msra.mxu0 %v2123
    %2969 = vmatprep.subr.mxu0 %v2128
    %2970 = vmatpush1.msra.mxu0 %v2127
    %2971 = vmatprep.subr.mxu0 %v2132
    %2972 = vmatpush1.msra.mxu0 %v2131
    %2973 = vmatprep.subr.mxu0 0.0
    %2974 = vmatpush1.msra.mxu0 0.0
    %2975 = vmatprep.subr.mxu0 0.0
    %2976 = vmatpush1.msra.mxu0 0.0
    %2977 = vmatprep.subr.mxu0 0.0
    %2978 = vmatpush1.msra.mxu0 0.0
    %2979 = vmatprep.subr.mxu0 0.0
    %2980 = vmatpush1.msra.mxu0 0.0
    %2981 = vmatprep.subr.mxu0 0.0
    %2982 = vmatpush1.msra.mxu0 0.0
    %2983 = vmatprep.subr.mxu0 0.0
    %2984 = vmatpush1.msra.mxu0 0.0
    %2985 = vmatprep.subr.mxu0 0.0
    %2986 = vmatpush1.msra.mxu0 0.0
    %2987 = vmatprep.subr.mxu0 0.0
    %2988 = vmatpush1.msra.mxu0 0.0
    %2989 = vmatprep.subr.mxu0 0.0
    %2990 = vmatpush1.msra.mxu0 0.0
    %2991 = vmatprep.subr.mxu0 0.0
    %2992 = vmatpush1.msra.mxu0 0.0
    %2993 = vmatprep.subr.mxu0 0.0
    %2994 = vmatpush1.msra.mxu0 0.0
    %2995 = vmatprep.subr.mxu0 0.0
    %2996 = vmatpush1.msra.mxu0 0.0
    %2997 = vmatprep.subr.mxu0 0.0
    %2998 = vmatpush1.msra.mxu0 0.0
    %2999 = vmatprep.subr.mxu0 0.0
    %3000 = vmatpush1.msra.mxu0 0.0
    %3001 = vmatprep.subr.mxu0 0.0
    %3002 = vmatpush1.msra.mxu0 0.0
    %3003 = vmatprep.subr.mxu0 0.0
    %3004 = vmatpush1.msra.mxu0 0.0
    %3005 = vmatprep.mubr.f32.mxu0 0.0
    %3006 = vmatmul.mubr.f32.gmra.mrb[0].mxu0 %v2869
    %v3007 = vpop.f32.mrb[0].mxu0
    %v3008 = vadd.f32 0.0, %v3007
    %v3009 = vpop.f32.mrb[0].mxu0
    %v3010 = vadd.f32 0.0, %v3009
    %3011 = vdwg.mxu0
    %v3016 = vrot.slane %v2937, 6
    %v3017 = vrot.slane %v2939, 6
    %v3018 = vrot.slane %v3008, 6
    %v3019 = vrot.slane %v3010, 6
    %v3024 = vadd.f32 %v1964, %v3016
    %v3025 = vadd.f32 %v1966, %v3017
    %v3026 = vadd.f32 %v2041, %v3018
    %v3027 = vadd.f32 %v2043, %v3019
    %v3028 = vxor.u32 %v3024, 2147483648
    %v3029 = vmul.f32 %v3028, 1.442695
    %v3030 = vpow.pop %v3029
    %v3031 = vadd.f32 %v3030, 1.0
    %v3032 = vrcp.pop %v3031
    %v3033 = vmul.f32 1.0, %v3032
    %v3034 = vxor.u32 %v3025, 2147483648
    %v3035 = vmul.f32 %v3034, 1.442695
    %v3036 = vpow.pop %v3035
    %v3037 = vadd.f32 %v3036, 1.0
    %v3038 = vrcp.pop %v3037
    %v3039 = vmul.f32 1.0, %v3038
    %v3040 = vtanh.pop %v3026
    %v3041 = vxor.u32 %v3027, 2147483648
    %v3042 = vmul.f32 %v3041, 1.442695
    %v3043 = vpow.pop %v3042
    %v3044 = vadd.f32 %v3043, 1.0
    %v3045 = vrcp.pop %v3044
    %v3046 = vmul.f32 1.0, %v3045
    %v3048 = vrot.slane %v2867, 6
    %v3050 = vmul.f32 %v3039, %v3048
    %v3051 = vmul.f32 %v3033, %v3040
    %v3052 = vadd.f32 %v3050, %v3051
    %v3053 = vtanh.pop %v3052
    %v3054 = vmul.f32 %v3046, %v3053
    %v3056 = vrot.slane %v3054, 2
    %3058 = vmatprep.subr.mxu0 %v2070
    %3059 = vmatpush1.msra.mxu0 %v2069
    %3060 = vmatprep.subr.mxu0 %v2074
    %3061 = vmatpush1.msra.mxu0 %v2073
    %3062 = vmatprep.subr.mxu0 %v2078
    %3063 = vmatpush1.msra.mxu0 %v2077
    %3064 = vmatprep.subr.mxu0 %v2082
    %3065 = vmatpush1.msra.mxu0 %v2081
    %3066 = vmatprep.subr.mxu0 %v2086
    %3067 = vmatpush1.msra.mxu0 %v2085
    %3068 = vmatprep.subr.mxu0 %v2090
    %3069 = vmatpush1.msra.mxu0 %v2089
    %3070 = vmatprep.subr.mxu0 %v2094
    %3071 = vmatpush1.msra.mxu0 %v2093
    %3072 = vmatprep.subr.mxu0 %v2098
    %3073 = vmatpush1.msra.mxu0 %v2097
    %3074 = vmatprep.subr.mxu0 %v2102
    %3075 = vmatpush1.msra.mxu0 %v2101
    %3076 = vmatprep.subr.mxu0 %v2106
    %3077 = vmatpush1.msra.mxu0 %v2105
    %3078 = vmatprep.subr.mxu0 %v2110
    %3079 = vmatpush1.msra.mxu0 %v2109
    %3080 = vmatprep.subr.mxu0 %v2114
    %3081 = vmatpush1.msra.mxu0 %v2113
    %3082 = vmatprep.subr.mxu0 %v2118
    %3083 = vmatpush1.msra.mxu0 %v2117
    %3084 = vmatprep.subr.mxu0 %v2122
    %3085 = vmatpush1.msra.mxu0 %v2121
    %3086 = vmatprep.subr.mxu0 %v2126
    %3087 = vmatpush1.msra.mxu0 %v2125
    %3088 = vmatprep.subr.mxu0 %v2130
    %3089 = vmatpush1.msra.mxu0 %v2129
    %3090 = vmatprep.subr.mxu0 0.0
    %3091 = vmatpush1.msra.mxu0 0.0
    %3092 = vmatprep.subr.mxu0 0.0
    %3093 = vmatpush1.msra.mxu0 0.0
    %3094 = vmatprep.subr.mxu0 0.0
    %3095 = vmatpush1.msra.mxu0 0.0
    %3096 = vmatprep.subr.mxu0 0.0
    %3097 = vmatpush1.msra.mxu0 0.0
    %3098 = vmatprep.subr.mxu0 0.0
    %3099 = vmatpush1.msra.mxu0 0.0
    %3100 = vmatprep.subr.mxu0 0.0
    %3101 = vmatpush1.msra.mxu0 0.0
    %3102 = vmatprep.subr.mxu0 0.0
    %3103 = vmatpush1.msra.mxu0 0.0
    %3104 = vmatprep.subr.mxu0 0.0
    %3105 = vmatpush1.msra.mxu0 0.0
    %3106 = vmatprep.subr.mxu0 0.0
    %3107 = vmatpush1.msra.mxu0 0.0
    %3108 = vmatprep.subr.mxu0 0.0
    %3109 = vmatpush1.msra.mxu0 0.0
    %3110 = vmatprep.subr.mxu0 0.0
    %3111 = vmatpush1.msra.mxu0 0.0
    %3112 = vmatprep.subr.mxu0 0.0
    %3113 = vmatpush1.msra.mxu0 0.0
    %3114 = vmatprep.subr.mxu0 0.0
    %3115 = vmatpush1.msra.mxu0 0.0
    %3116 = vmatprep.subr.mxu0 0.0
    %3117 = vmatpush1.msra.mxu0 0.0
    %3118 = vmatprep.subr.mxu0 0.0
    %3119 = vmatpush1.msra.mxu0 0.0
    %3120 = vmatprep.subr.mxu0 0.0
    %3121 = vmatpush1.msra.mxu0 0.0
    %3122 = vmatprep.mubr.f32.mxu0 0.0
    %3123 = vmatmul.mubr.f32.gmra.mrb[0].mxu0 %v3056
    %v3124 = vpop.f32.mrb[0].mxu0
    %v3125 = vadd.f32 0.0, %v3124
    %v3126 = vpop.f32.mrb[0].mxu0
    %v3127 = vadd.f32 0.0, %v3126
    %3128 = vdwg.mxu0
    %3129 = vmatprep.subr.mxu0 %v2072
    %3130 = vmatpush1.msra.mxu0 %v2071
    %3131 = vmatprep.subr.mxu0 %v2076
    %3132 = vmatpush1.msra.mxu0 %v2075
    %3133 = vmatprep.subr.mxu0 %v2080
    %3134 = vmatpush1.msra.mxu0 %v2079
    %3135 = vmatprep.subr.mxu0 %v2084
    %3136 = vmatpush1.msra.mxu0 %v2083
    %3137 = vmatprep.subr.mxu0 %v2088
    %3138 = vmatpush1.msra.mxu0 %v2087
    %3139 = vmatprep.subr.mxu0 %v2092
    %3140 = vmatpush1.msra.mxu0 %v2091
    %3141 = vmatprep.subr.mxu0 %v2096
    %3142 = vmatpush1.msra.mxu0 %v2095
    %3143 = vmatprep.subr.mxu0 %v2100
    %3144 = vmatpush1.msra.mxu0 %v2099
    %3145 = vmatprep.subr.mxu0 %v2104
    %3146 = vmatpush1.msra.mxu0 %v2103
    %3147 = vmatprep.subr.mxu0 %v2108
    %3148 = vmatpush1.msra.mxu0 %v2107
    %3149 = vmatprep.subr.mxu0 %v2112
    %3150 = vmatpush1.msra.mxu0 %v2111
    %3151 = vmatprep.subr.mxu0 %v2116
    %3152 = vmatpush1.msra.mxu0 %v2115
    %3153 = vmatprep.subr.mxu0 %v2120
    %3154 = vmatpush1.msra.mxu0 %v2119
    %3155 = vmatprep.subr.mxu0 %v2124
    %3156 = vmatpush1.msra.mxu0 %v2123
    %3157 = vmatprep.subr.mxu0 %v2128
    %3158 = vmatpush1.msra.mxu0 %v2127
    %3159 = vmatprep.subr.mxu0 %v2132
    %3160 = vmatpush1.msra.mxu0 %v2131
    %3161 = vmatprep.subr.mxu0 0.0
    %3162 = vmatpush1.msra.mxu0 0.0
    %3163 = vmatprep.subr.mxu0 0.0
    %3164 = vmatpush1.msra.mxu0 0.0
    %3165 = vmatprep.subr.mxu0 0.0
    %3166 = vmatpush1.msra.mxu0 0.0
    %3167 = vmatprep.subr.mxu0 0.0
    %3168 = vmatpush1.msra.mxu0 0.0
    %3169 = vmatprep.subr.mxu0 0.0
    %3170 = vmatpush1.msra.mxu0 0.0
    %3171 = vmatprep.subr.mxu0 0.0
    %3172 = vmatpush1.msra.mxu0 0.0
    %3173 = vmatprep.subr.mxu0 0.0
    %3174 = vmatpush1.msra.mxu0 0.0
    %3175 = vmatprep.subr.mxu0 0.0
    %3176 = vmatpush1.msra.mxu0 0.0
    %3177 = vmatprep.subr.mxu0 0.0
    %3178 = vmatpush1.msra.mxu0 0.0
    %3179 = vmatprep.subr.mxu0 0.0
    %3180 = vmatpush1.msra.mxu0 0.0
    %3181 = vmatprep.subr.mxu0 0.0
    %3182 = vmatpush1.msra.mxu0 0.0
    %3183 = vmatprep.subr.mxu0 0.0
    %3184 = vmatpush1.msra.mxu0 0.0
    %3185 = vmatprep.subr.mxu0 0.0
    %3186 = vmatpush1.msra.mxu0 0.0
    %3187 = vmatprep.subr.mxu0 0.0
    %3188 = vmatpush1.msra.mxu0 0.0
    %3189 = vmatprep.subr.mxu0 0.0
    %3190 = vmatpush1.msra.mxu0 0.0
    %3191 = vmatprep.subr.mxu0 0.0
    %3192 = vmatpush1.msra.mxu0 0.0
    %3193 = vmatprep.mubr.f32.mxu0 0.0
    %3194 = vmatmul.mubr.f32.gmra.mrb[0].mxu0 %v3056
    %v3195 = vpop.f32.mrb[0].mxu0
    %v3196 = vadd.f32 0.0, %v3195
    %v3197 = vpop.f32.mrb[0].mxu0
    %v3198 = vadd.f32 0.0, %v3197
    %3199 = vdwg.mxu0
    %v3204 = vrot.slane %v3125, 4
    %v3205 = vrot.slane %v3127, 4
    %v3206 = vrot.slane %v3196, 4
    %v3207 = vrot.slane %v3198, 4
    %v3212 = vadd.f32 %v1964, %v3204
    %v3213 = vadd.f32 %v1966, %v3205
    %v3214 = vadd.f32 %v2041, %v3206
    %v3215 = vadd.f32 %v2043, %v3207
    %v3216 = vxor.u32 %v3212, 2147483648
    %v3217 = vmul.f32 %v3216, 1.442695
    %v3218 = vpow.pop %v3217
    %v3219 = vadd.f32 %v3218, 1.0
    %v3220 = vrcp.pop %v3219
    %v3221 = vmul.f32 1.0, %v3220
    %v3222 = vxor.u32 %v3213, 2147483648
    %v3223 = vmul.f32 %v3222, 1.442695
    %v3224 = vpow.pop %v3223
    %v3225 = vadd.f32 %v3224, 1.0
    %v3226 = vrcp.pop %v3225
    %v3227 = vmul.f32 1.0, %v3226
    %v3228 = vtanh.pop %v3214
    %v3229 = vxor.u32 %v3215, 2147483648
    %v3230 = vmul.f32 %v3229, 1.442695
    %v3231 = vpow.pop %v3230
    %v3232 = vadd.f32 %v3231, 1.0
    %v3233 = vrcp.pop %v3232
    %v3234 = vmul.f32 1.0, %v3233
    %v3236 = vrot.slane %v3052, 6
    %v3238 = vmul.f32 %v3227, %v3236
    %v3239 = vmul.f32 %v3221, %v3228
    %v3240 = vadd.f32 %v3238, %v3239
    %v3241 = vtanh.pop %v3240
    %v3242 = vmul.f32 %v3234, %v3241
    %v3244 = vrot.slane %v3242, 4
    %3246 = vmatprep.subr.mxu0 %v2070
    %3247 = vmatpush1.msra.mxu0 %v2069
    %3248 = vmatprep.subr.mxu0 %v2074
    %3249 = vmatpush1.msra.mxu0 %v2073
    %3250 = vmatprep.subr.mxu0 %v2078
    %3251 = vmatpush1.msra.mxu0 %v2077
    %3252 = vmatprep.subr.mxu0 %v2082
    %3253 = vmatpush1.msra.mxu0 %v2081
    %3254 = vmatprep.subr.mxu0 %v2086
    %3255 = vmatpush1.msra.mxu0 %v2085
    %3256 = vmatprep.subr.mxu0 %v2090
    %3257 = vmatpush1.msra.mxu0 %v2089
    %3258 = vmatprep.subr.mxu0 %v2094
    %3259 = vmatpush1.msra.mxu0 %v2093
    %3260 = vmatprep.subr.mxu0 %v2098
    %3261 = vmatpush1.msra.mxu0 %v2097
    %3262 = vmatprep.subr.mxu0 %v2102
    %3263 = vmatpush1.msra.mxu0 %v2101
    %3264 = vmatprep.subr.mxu0 %v2106
    %3265 = vmatpush1.msra.mxu0 %v2105
    %3266 = vmatprep.subr.mxu0 %v2110
    %3267 = vmatpush1.msra.mxu0 %v2109
    %3268 = vmatprep.subr.mxu0 %v2114
    %3269 = vmatpush1.msra.mxu0 %v2113
    %3270 = vmatprep.subr.mxu0 %v2118
    %3271 = vmatpush1.msra.mxu0 %v2117
    %3272 = vmatprep.subr.mxu0 %v2122
    %3273 = vmatpush1.msra.mxu0 %v2121
    %3274 = vmatprep.subr.mxu0 %v2126
    %3275 = vmatpush1.msra.mxu0 %v2125
    %3276 = vmatprep.subr.mxu0 %v2130
    %3277 = vmatpush1.msra.mxu0 %v2129
    %3278 = vmatprep.subr.mxu0 0.0
    %3279 = vmatpush1.msra.mxu0 0.0
    %3280 = vmatprep.subr.mxu0 0.0
    %3281 = vmatpush1.msra.mxu0 0.0
    %3282 = vmatprep.subr.mxu0 0.0
    %3283 = vmatpush1.msra.mxu0 0.0
    %3284 = vmatprep.subr.mxu0 0.0
    %3285 = vmatpush1.msra.mxu0 0.0
    %3286 = vmatprep.subr.mxu0 0.0
    %3287 = vmatpush1.msra.mxu0 0.0
    %3288 = vmatprep.subr.mxu0 0.0
    %3289 = vmatpush1.msra.mxu0 0.0
    %3290 = vmatprep.subr.mxu0 0.0
    %3291 = vmatpush1.msra.mxu0 0.0
    %3292 = vmatprep.subr.mxu0 0.0
    %3293 = vmatpush1.msra.mxu0 0.0
    %3294 = vmatprep.subr.mxu0 0.0
    %3295 = vmatpush1.msra.mxu0 0.0
    %3296 = vmatprep.subr.mxu0 0.0
    %3297 = vmatpush1.msra.mxu0 0.0
    %3298 = vmatprep.subr.mxu0 0.0
    %3299 = vmatpush1.msra.mxu0 0.0
    %3300 = vmatprep.subr.mxu0 0.0
    %3301 = vmatpush1.msra.mxu0 0.0
    %3302 = vmatprep.subr.mxu0 0.0
    %3303 = vmatpush1.msra.mxu0 0.0
    %3304 = vmatprep.subr.mxu0 0.0
    %3305 = vmatpush1.msra.mxu0 0.0
    %3306 = vmatprep.subr.mxu0 0.0
    %3307 = vmatpush1.msra.mxu0 0.0
    %3308 = vmatprep.subr.mxu0 0.0
    %3309 = vmatpush1.msra.mxu0 0.0
    %3310 = vmatprep.mubr.f32.mxu0 0.0
    %3311 = vmatmul.mubr.f32.gmra.mrb[0].mxu0 %v3244
    %v3312 = vpop.f32.mrb[0].mxu0
    %v3313 = vadd.f32 0.0, %v3312
    %v3314 = vpop.f32.mrb[0].mxu0
    %v3315 = vadd.f32 0.0, %v3314
    %3316 = vdwg.mxu0
    %3317 = vmatprep.subr.mxu0 %v2072
    %3318 = vmatpush1.msra.mxu0 %v2071
    %3319 = vmatprep.subr.mxu0 %v2076
    %3320 = vmatpush1.msra.mxu0 %v2075
    %3321 = vmatprep.subr.mxu0 %v2080
    %3322 = vmatpush1.msra.mxu0 %v2079
    %3323 = vmatprep.subr.mxu0 %v2084
    %3324 = vmatpush1.msra.mxu0 %v2083
    %3325 = vmatprep.subr.mxu0 %v2088
    %3326 = vmatpush1.msra.mxu0 %v2087
    %3327 = vmatprep.subr.mxu0 %v2092
    %3328 = vmatpush1.msra.mxu0 %v2091
    %3329 = vmatprep.subr.mxu0 %v2096
    %3330 = vmatpush1.msra.mxu0 %v2095
    %3331 = vmatprep.subr.mxu0 %v2100
    %3332 = vmatpush1.msra.mxu0 %v2099
    %3333 = vmatprep.subr.mxu0 %v2104
    %3334 = vmatpush1.msra.mxu0 %v2103
    %3335 = vmatprep.subr.mxu0 %v2108
    %3336 = vmatpush1.msra.mxu0 %v2107
    %3337 = vmatprep.subr.mxu0 %v2112
    %3338 = vmatpush1.msra.mxu0 %v2111
    %3339 = vmatprep.subr.mxu0 %v2116
    %3340 = vmatpush1.msra.mxu0 %v2115
    %3341 = vmatprep.subr.mxu0 %v2120
    %3342 = vmatpush1.msra.mxu0 %v2119
    %3343 = vmatprep.subr.mxu0 %v2124
    %3344 = vmatpush1.msra.mxu0 %v2123
    %3345 = vmatprep.subr.mxu0 %v2128
    %3346 = vmatpush1.msra.mxu0 %v2127
    %3347 = vmatprep.subr.mxu0 %v2132
    %3348 = vmatpush1.msra.mxu0 %v2131
    %3349 = vmatprep.subr.mxu0 0.0
    %3350 = vmatpush1.msra.mxu0 0.0
    %3351 = vmatprep.subr.mxu0 0.0
    %3352 = vmatpush1.msra.mxu0 0.0
    %3353 = vmatprep.subr.mxu0 0.0
    %3354 = vmatpush1.msra.mxu0 0.0
    %3355 = vmatprep.subr.mxu0 0.0
    %3356 = vmatpush1.msra.mxu0 0.0
    %3357 = vmatprep.subr.mxu0 0.0
    %3358 = vmatpush1.msra.mxu0 0.0
    %3359 = vmatprep.subr.mxu0 0.0
    %3360 = vmatpush1.msra.mxu0 0.0
    %3361 = vmatprep.subr.mxu0 0.0
    %3362 = vmatpush1.msra.mxu0 0.0
    %3363 = vmatprep.subr.mxu0 0.0
    %3364 = vmatpush1.msra.mxu0 0.0
    %3365 = vmatprep.subr.mxu0 0.0
    %3366 = vmatpush1.msra.mxu0 0.0
    %3367 = vmatprep.subr.mxu0 0.0
    %3368 = vmatpush1.msra.mxu0 0.0
    %3369 = vmatprep.subr.mxu0 0.0
    %3370 = vmatpush1.msra.mxu0 0.0
    %3371 = vmatprep.subr.mxu0 0.0
    %3372 = vmatpush1.msra.mxu0 0.0
    %3373 = vmatprep.subr.mxu0 0.0
    %3374 = vmatpush1.msra.mxu0 0.0
    %3375 = vmatprep.subr.mxu0 0.0
    %3376 = vmatpush1.msra.mxu0 0.0
    %3377 = vmatprep.subr.mxu0 0.0
    %3378 = vmatpush1.msra.mxu0 0.0
    %3379 = vmatprep.subr.mxu0 0.0
    %3380 = vmatpush1.msra.mxu0 0.0
    %3381 = vmatprep.mubr.f32.mxu0 0.0
    %3382 = vmatmul.mubr.f32.gmra.mrb[0].mxu0 %v3244
    %v3383 = vpop.f32.mrb[0].mxu0
    %v3384 = vadd.f32 0.0, %v3383
    %v3385 = vpop.f32.mrb[0].mxu0
    %v3386 = vadd.f32 0.0, %v3385
    %3387 = vdwg.mxu0
    %v3392 = vrot.slane %v3313, 2
    %v3393 = vrot.slane %v3315, 2
    %v3394 = vrot.slane %v3384, 2
    %v3395 = vrot.slane %v3386, 2
    %v3400 = vadd.f32 %v1964, %v3392
    %v3401 = vadd.f32 %v1966, %v3393
    %v3402 = vadd.f32 %v2041, %v3394
    %v3403 = vadd.f32 %v2043, %v3395
    %v3404 = vxor.u32 %v3400, 2147483648
    %v3405 = vmul.f32 %v3404, 1.442695
    %v3406 = vpow.pop %v3405
    %v3407 = vadd.f32 %v3406, 1.0
    %v3408 = vrcp.pop %v3407
    %v3409 = vmul.f32 1.0, %v3408
    %v3410 = vxor.u32 %v3401, 2147483648
    %v3411 = vmul.f32 %v3410, 1.442695
    %v3412 = vpow.pop %v3411
    %v3413 = vadd.f32 %v3412, 1.0
    %v3414 = vrcp.pop %v3413
    %v3415 = vmul.f32 1.0, %v3414
    %v3416 = vtanh.pop %v3402
    %v3417 = vxor.u32 %v3403, 2147483648
    %v3418 = vmul.f32 %v3417, 1.442695
    %v3419 = vpow.pop %v3418
    %v3420 = vadd.f32 %v3419, 1.0
    %v3421 = vrcp.pop %v3420
    %v3422 = vmul.f32 1.0, %v3421
    %v3424 = vrot.slane %v3240, 6
    %v3426 = vmul.f32 %v3415, %v3424
    %v3427 = vmul.f32 %v3409, %v3416
    %v3428 = vadd.f32 %v3426, %v3427
    %v3429 = vtanh.pop %v3428
    %v3430 = vmul.f32 %v3422, %v3429
    %v3431 = vlaneseq
    %v3432 = vand.u32 %v3431, 127
    %vm3433 = vcmp.lt.s32.totalorder %v3432, 32
    %vm3434 = vcmp.ge.s32.totalorder %v3432, 64
    %vm3435 = vcmp.lt.s32.totalorder %v3432, 96
    %vm3436 = vmand %vm3434, %vm3435
    %vm3437 = vmor %vm3433, %vm3436
    %v3438 = vsel %vm3437, 1, 0
    %vm3439 = vcmp.eq.s32.totalorder %v3438, 1
    %v3441 = vrot.slane %v3430, 6
    %v3443 = vsel %vm3439, %v2068, %v3441
    %3445 = vrot.lane.b32.xlu0 %v3443, 64
    %v3446 = vpop.permute.xlu0 %3445
    %v3448 = vsub.f32 %v3443, %v3446
    %vm3449 = vcmask 523264
    %v3450 = vsel %vm3449, %v3448, %v3443
    %3451 = vst [vmem:[%s7] sm:$0x3] %v3450
    %v3452 = vrot.slane %v3242, 2
    %v3454 = vsel %vm3439, %v2317, %v3452
    %3456 = vrot.lane.b32.xlu0 %v3454, 64
    %v3457 = vpop.permute.xlu0 %3456
    %v3459 = vsub.f32 %v3454, %v3457
    %v3460 = vsel %vm3449, %v3459, %v3454
    %s3461 = scalar_lea.vmem %s7, 2
    %3462 = vst [vmem:[%s3461 - $0x2] sm:$0xc] %v3460
    %v3463 = vrot.slane %v3054, 6
    %v3465 = vsel %vm3439, %v2505, %v3463
    %3467 = vrot.lane.b32.xlu0 %v3465, 64
    %v3468 = vpop.permute.xlu0 %3467
    %v3470 = vsub.f32 %v3465, %v3468
    %v3471 = vsel %vm3449, %v3470, %v3465
    %s3472 = scalar_lea.vmem %s7, 4
    %3473 = vst [vmem:[%s3472 - $0x4] sm:$0x30] %v3471
    %v3475 = vrot.slane %v2869, 2
    %v3477 = vsel %vm3439, %v2693, %v3475
    %3479 = vrot.lane.b32.xlu0 %v3477, 64
    %v3480 = vpop.permute.xlu0 %3479
    %v3482 = vsub.f32 %v3477, %v3480
    %v3483 = vsel %vm3449, %v3482, %v3477
    %s3484 = scalar_lea.vmem %s7, 6
    %3485 = vst [vmem:[%s3484 - $0x6] sm:$0xc0] %v3483
    %v3486 = vsel %vm3439, %v2869, %v2695
    %3488 = vrot.lane.b32.xlu0 %v3486, 64
    %v3489 = vpop.permute.xlu0 %3488
    %v3491 = vsub.f32 %v3486, %v3489
    %v3492 = vsel %vm3449, %v3491, %v3486
    %s3493 = scalar_lea.vmem %s7, 8
    %3494 = vst [vmem:[%s3493] sm:$0x3] %v3492
    %v3495 = vrot.slane %v2505, 2
    %v3497 = vsel %vm3439, %v3054, %v3495
    %3499 = vrot.lane.b32.xlu0 %v3497, 64
    %v3500 = vpop.permute.xlu0 %3499
    %v3502 = vsub.f32 %v3497, %v3500
    %v3503 = vsel %vm3449, %v3502, %v3497
    %s3504 = scalar_lea.vmem %s7, 10
    %3505 = vst [vmem:[%s3504 - $0x2] sm:$0xc] %v3503
    %v3506 = vrot.slane %v2317, 6
    %v3508 = vsel %vm3439, %v3242, %v3506
    %3510 = vrot.lane.b32.xlu0 %v3508, 64
    %v3511 = vpop.permute.xlu0 %3510
    %v3513 = vsub.f32 %v3508, %v3511
    %v3514 = vsel %vm3449, %v3513, %v3508
    %s3515 = scalar_lea.vmem %s7, 12
    %3516 = vst [vmem:[%s3515 - $0x4] sm:$0x30] %v3514
    %v3518 = vrot.slane %v2068, 2
    %v3520 = vsel %vm3439, %v3430, %v3518
    %3522 = vrot.lane.b32.xlu0 %v3520, 64
    %v3523 = vpop.permute.xlu0 %3522
    %v3525 = vsub.f32 %v3520, %v3523
    %v3526 = vsel %vm3449, %v3525, %v3520
    %s3527 = scalar_lea.vmem %s7, 14
    %3528 = vst [vmem:[%s3527 - $0x6] sm:$0xc0] %v3526
    // Predicated region
    $region46: #{mrs_forward.1} parent=1 // pred_check
      _
    $region47: #{mrs_forward.1} parent=1 // pred_check_branch
      %3530 = sbr.rel (0) target = $region49
    $region48: #{mrs_forward.1} parent=1 // pred_region
      _
    $region49: #{mrs_forward.1} parent=1 // pred_fallthru
      _
    // Predicated region
    $region50: #{mrs_forward.1} parent=1 // pred_check
      _
    $region51: #{mrs_forward.1} parent=1 // pred_check_branch
      %3532 = sbr.rel (0) target = $region53
    $region52: #{mrs_forward.1} parent=1 // pred_region
      _
    $region53: #{mrs_forward.1} parent=1 // pred_fallthru
      _
    %3533 = vsyncpa [#allocation3], 1
    %3534 = vsyncpa [#allocation5], 1
    %3535 = vsyncpa [#allocation8], 1

</llo_original>
